<compile_context>
chip_gen: v6e
topology: v6e:2x2x1
jax: 0.10.0
libtpu: 0.0.40
codegen_flags: <defaults>
</compile_context>

<pallas_src>
import jax
import jax.numpy as jnp
from jax import lax
from jax.experimental import pallas as pl
from jax.experimental.pallas import tpu as pltpu


# --------------------------------------------------------------------------
# Shared per-layer tail: update MLP -> BatchNorm1d -> ReLU -> residual
# --------------------------------------------------------------------------
def _mlp_bn_relu_residual(z, x, w1, b1, w2, b2, gamma, beta):
    # Linear(emb, 2emb) -> ReLU -> Linear(2emb, emb); bf16 MXU inputs, f32 acc.
    h1 = jnp.maximum(
        jnp.dot(z.astype(jnp.bfloat16), w1,
                preferred_element_type=jnp.float32) + b1, 0.0)
    h = jnp.dot(h1.astype(jnp.bfloat16), w2,
                preferred_element_type=jnp.float32) + b2
    # BatchNorm1d (training-mode batch stats), two-pass centered variance.
    inv_n = 1.0 / h.shape[0]
    mu = jnp.sum(h, axis=0, keepdims=True) * inv_n
    hc = h - mu
    var = jnp.sum(hc * hc, axis=0, keepdims=True) * inv_n
    h = hc * (gamma * lax.rsqrt(var + 1e-5)) + beta
    # ReLUActivation + residual.
    return jnp.maximum(h, 0.0) + x


# --------------------------------------------------------------------------
# Primary kernel: index-driven gather / scatter-add (one grid step == one layer)
# --------------------------------------------------------------------------
def gine_layer_indexed_kernel(src_ref, dst_ref, et_ref,          # SMEM int32 (E,)
                              x0_ref,                             # (N, emb) f32
                              etab_ref,                           # (8, emb) f32 per layer
                              w1_ref, b1_ref, w2_ref, b2_ref,     # per-layer MLP params
                              gamma_ref, beta_ref,                # per-layer BN affine
                              xout_ref,                           # (N, emb) f32 out == carry
                              agg_scr):                           # (N, emb) f32 scratch
    l = pl.program_id(0)
    n_edges = src_ref.shape[0]

    # Layer 0: initialize the carry held in the resident output block.
    @pl.when(l == 0)
    def _():
        xout_ref[...] = x0_ref[...]

    # agg starts at (1 + eps) * x_i with eps = 0 (GINEConv default).
    agg_scr[...] = xout_ref[...]

    # agg[dst] += ReLU(x[src] + edge_type_embedding)   (exact f32 accumulation)
    @pl.loop(0, n_edges)
    def _(e):
        s = src_ref[e]
        d = dst_ref[e]
        t = et_ref[e]
        x_src = xout_ref[pl.ds(s, 1), :]           # (1, emb) gather of source node
        e_emb = etab_ref[pl.ds(t, 1), :]           # (1, emb) edge-type lookup
        msg = jnp.maximum(x_src + e_emb, 0.0)
        agg_scr[pl.ds(d, 1), :] = agg_scr[pl.ds(d, 1), :] + msg

    x_new = _mlp_bn_relu_residual(
        agg_scr[...], xout_ref[...],
        w1_ref[...], b1_ref[...], w2_ref[...], b2_ref[...],
        gamma_ref[...], beta_ref[...])
    xout_ref[...] = x_new


# --------------------------------------------------------------------------
# Fallback kernel: dense bf16 one-hot operators (proven lowering path)
# --------------------------------------------------------------------------
def gine_layer_dense_kernel(x0_ref, g_ref, s_ref, eoh_ref, etab_ref,
                            w1_ref, b1_ref, w2_ref, b2_ref, gamma_ref, beta_ref,
                            xout_ref):
    l = pl.program_id(0)

    @pl.when(l == 0)
    def _():
        xout_ref[...] = x0_ref[...]

    x = xout_ref[...]
    xb = x.astype(jnp.bfloat16)

    # Per-edge edge embedding on the VPU (broadcast FMAs) instead of a K=4 MXU dot.
    etab = etab_ref[...]                                   # (n_et, emb) f32
    ee = eoh_ref[:, 0:1].astype(jnp.float32) * etab[0:1, :]
    for t in range(1, etab.shape[0]):                      # n_et = 4, unrolled
        ee = ee + eoh_ref[:, t:t + 1].astype(jnp.float32) * etab[t:t + 1, :]

    # gather x_src: (E,N) bf16 one-hot @ (N,emb) bf16 -> f32 accum
    xg = jnp.dot(g_ref[...], xb, preferred_element_type=jnp.float32)
    msg = jnp.maximum(xg + ee, 0.0)
    # scatter-add to dst: (N,E) bf16 one-hot @ (E,emb) bf16 -> f32 accum
    agg = jnp.dot(s_ref[...], msg.astype(jnp.bfloat16),
                  preferred_element_type=jnp.float32)
    z = x + agg

    xout_ref[...] = _mlp_bn_relu_residual(
        z, x, w1_ref[...], b1_ref[...], w2_ref[...], b2_ref[...],
        gamma_ref[...], beta_ref[...])


# --------------------------------------------------------------------------
# Wrapper
# --------------------------------------------------------------------------
def _vmem_limit_bytes():
    """Generation-aware VMEM limit: ~75% of physical capacity (capped at 128 MiB)."""
    try:
        cap = pltpu.get_tpu_info().vmem_capacity_bytes
    except Exception:
        cap = 64 * 1024 * 1024
    return int(min(cap, 128 * 1024 * 1024)) * 3 // 4


def gine_stack(x, edge_index, edge_attr, params):
    """Run all GINE layers (message passing + MLP + BN + ReLU + residual)."""
    N, emb = x.shape
    E = edge_index.shape[1]
    L = params["w1"].shape[0]
    two_emb = params["w1"].shape[-1]
    n_et = params["etab"].shape[1]

    x0 = x.astype(jnp.float32)
    src = edge_index[0].reshape(-1).astype(jnp.int32)
    dst = edge_index[1].reshape(-1).astype(jnp.int32)
    etype = edge_attr.reshape(-1).astype(jnp.int32)

    cparams = pltpu.CompilerParams(
        dimension_semantics=("arbitrary",),        # layer recurrence is sequential
        vmem_limit_bytes=_vmem_limit_bytes())
    out_shape = jax.ShapeDtypeStruct((N, emb), jnp.float32)

    def _run_indexed(single_buffer_x0):
        # Pad the tiny edge-type table to a full sublane group so the dynamic
        # per-edge lookup slices a cleanly tiled ref.
        n_et_pad = max(8, n_et)
        etab = jnp.pad(params["etab"],
                       ((0, 0), (0, n_et_pad - n_et), (0, 0)))
        x0_kwargs = ({"pipeline_mode": pl.Buffered(1)}
                     if single_buffer_x0 else {})
        grid_spec = pltpu.PrefetchScalarGridSpec(
            num_scalar_prefetch=3, grid=(L,),
            in_specs=[
                pl.BlockSpec((N, emb), lambda l, *_: (0, 0), **x0_kwargs),     # x0 (fetched once)
                pl.BlockSpec((None, n_et_pad, emb), lambda l, *_: (l, 0, 0)),  # edge-type table
                pl.BlockSpec((None, emb, two_emb), lambda l, *_: (l, 0, 0)),   # w1 (streamed)
                pl.BlockSpec((None, 1, two_emb), lambda l, *_: (l, 0, 0)),     # b1
                pl.BlockSpec((None, two_emb, emb), lambda l, *_: (l, 0, 0)),   # w2 (streamed)
                pl.BlockSpec((None, 1, emb), lambda l, *_: (l, 0, 0)),         # b2
                pl.BlockSpec((None, 1, emb), lambda l, *_: (l, 0, 0)),         # gamma
                pl.BlockSpec((None, 1, emb), lambda l, *_: (l, 0, 0)),         # beta
            ],
            out_specs=pl.BlockSpec((N, emb), lambda l, *_: (0, 0)),            # resident carry
            scratch_shapes=[pltpu.VMEM((N, emb), jnp.float32)])                # aggregation
        return pl.pallas_call(
            gine_layer_indexed_kernel, out_shape=out_shape,
            grid_spec=grid_spec, compiler_params=cparams,
        )(src, dst, etype, x0, etab, params["w1"], params["b1"],
          params["w2"], params["b2"], params["gamma"], params["beta"])

    def _run_dense():
        node_ids = jnp.arange(N)
        G = (src[:, None] == node_ids[None, :]).astype(jnp.bfloat16)   # (E, N)
        S = (node_ids[:, None] == dst[None, :]).astype(jnp.bfloat16)   # (N, E)
        eoh = (etype[:, None] == jnp.arange(n_et)[None, :]).astype(jnp.bfloat16)
        grid_spec = pltpu.PrefetchScalarGridSpec(
            num_scalar_prefetch=0, grid=(L,),
            in_specs=[
                pl.BlockSpec((N, emb), lambda l: (0, 0)),
                pl.BlockSpec((E, N), lambda l: (0, 0)),
                pl.BlockSpec((N, E), lambda l: (0, 0)),
                pl.BlockSpec((E, n_et), lambda l: (0, 0)),
                pl.BlockSpec((None, n_et, emb), lambda l: (l, 0, 0)),
                pl.BlockSpec((None, emb, two_emb), lambda l: (l, 0, 0)),
                pl.BlockSpec((None, 1, two_emb), lambda l: (l, 0, 0)),
                pl.BlockSpec((None, two_emb, emb), lambda l: (l, 0, 0)),
                pl.BlockSpec((None, 1, emb), lambda l: (l, 0, 0)),
                pl.BlockSpec((None, 1, emb), lambda l: (l, 0, 0)),
                pl.BlockSpec((None, 1, emb), lambda l: (l, 0, 0)),
            ],
            out_specs=pl.BlockSpec((N, emb), lambda l: (0, 0)))
        return pl.pallas_call(
            gine_layer_dense_kernel, out_shape=out_shape,
            grid_spec=grid_spec, compiler_params=cparams,
        )(x0, G, S, eoh, params["etab"], params["w1"], params["b1"],
          params["w2"], params["b2"], params["gamma"], params["beta"])

    builders = (lambda: _run_indexed(True),     # preferred: indexed + Buffered(1)
                lambda: _run_indexed(False),    # indexed, default buffering
                _run_dense)                     # dense one-hot safety net
    err = None
    for build in builders:
        try:
            x_nodes = build()
            jax.block_until_ready(x_nodes)
            return x_nodes
        except Exception as e:                  # fall back to the next lowering path
            err = e
    raise err


def approxnet_forward(x, edge_index, edge_attr, batch, params, num_graphs):
    # NOTE: approxNet.forward (unlike GINENetv2.forward) does NOT apply
    # self.feature_encoder -- `x` must already be (N, emb) node features.
    L = params["w1"].shape[0]
    emb = x.shape[1]

    x_nodes = gine_stack(x, edge_index, edge_attr, params)

    # ---- global mean pool + final head (tiny, lane-sparse; run in XLA) ----
    seg_sum = jnp.zeros((num_graphs, emb), jnp.float32).at[batch].add(x_nodes)
    counts = jnp.zeros((num_graphs,), jnp.float32).at[batch].add(1.0)
    pooled = seg_sum / jnp.maximum(counts, 1.0)[:, None]

    f1 = pooled @ params["wf1"] + params["bf1"]
    mu = jnp.mean(f1, axis=0, keepdims=True)
    var = jnp.mean((f1 - mu) ** 2, axis=0, keepdims=True)
    f1 = (f1 - mu) * lax.rsqrt(var + 1e-5) * params["gamma_f"] + params["beta_f"]
    f1 = jnp.maximum(f1, 0.0)
    out = f1 @ params["wf2"] + params["bf2"]

    thetas = [None] * L                         # ReLUActivation returns no theta
    return out, thetas


# --------------------------------------------------------------------------
# Pure-JAX reference of the GNN stack (same precision policy) for verification
# --------------------------------------------------------------------------
def gine_stack_ref(x, edge_index, edge_attr, params):
    src, dst = edge_index[0], edge_index[1]
    L = params["w1"].shape[0]
    xc = x.astype(jnp.float32)
    for l in range(L):
        ee = params["etab"][l][edge_attr]                        # (E, emb)
        msg = jnp.maximum(xc[src] + ee, 0.0)
        agg = xc + jnp.zeros_like(xc).at[dst].add(msg)
        h1 = jnp.maximum(
            jnp.dot(agg.astype(jnp.bfloat16), params["w1"][l],
                    preferred_element_type=jnp.float32) + params["b1"][l], 0.0)
        h = jnp.dot(h1.astype(jnp.bfloat16), params["w2"][l],
                    preferred_element_type=jnp.float32) + params["b2"][l]
        mu = jnp.mean(h, axis=0, keepdims=True)
        var = jnp.mean((h - mu) ** 2, axis=0, keepdims=True)
        h = (h - mu) * lax.rsqrt(var + 1e-5) * params["gamma"][l] + params["beta"][l]
        xc = jnp.maximum(h, 0.0) + xc
    return xc


# --------------------------------------------------------------------------
# Parameter initialization (mirrors the PyTorch module's shapes)
# --------------------------------------------------------------------------
def init_params(key, emb, num_layers, num_tasks=1,
                num_node_types=21, num_edge_types=4):
    ks = jax.random.split(key, 6)

    def xavier(k, shape, dtype=jnp.float32):
        fan_in, fan_out = shape[-2], shape[-1]
        std = (2.0 / (fan_in + fan_out)) ** 0.5
        return (std * jax.random.normal(k, shape, jnp.float32)).astype(dtype)

    return dict(
        # nn.Embedding(21, emb) with xavier_normal init (constructed in __init__;
        # approxNet.forward does not apply it -- used only for demo data prep).
        node_emb=xavier(ks[0], (num_node_types, emb)),
        # per-layer edge (bond-type) embedding tables, f32 (tiny, exact)
        etab=0.1 * jax.random.normal(ks[1], (num_layers, num_edge_types, emb),
                                     jnp.float32),
        # GINE update MLP weights in bf16 (MXU inputs); biases / BN params f32
        w1=xavier(ks[2], (num_layers, emb, 2 * emb), jnp.bfloat16),
        b1=jnp.zeros((num_layers, 1, 2 * emb), jnp.float32),
        w2=xavier(ks[3], (num_layers, 2 * emb, emb), jnp.bfloat16),
        b2=jnp.zeros((num_layers, 1, emb), jnp.float32),
        gamma=jnp.ones((num_layers, 1, emb), jnp.float32),
        beta=jnp.zeros((num_layers, 1, emb), jnp.float32),
        # final head: Linear(emb,2emb) -> BatchNorm1d(2emb) -> ReLU -> Linear(2emb,tasks)
        wf1=xavier(ks[4], (emb, 2 * emb)),
        bf1=jnp.zeros((1, 2 * emb), jnp.float32),
        gamma_f=jnp.ones((1, 2 * emb), jnp.float32),
        beta_f=jnp.zeros((1, 2 * emb), jnp.float32),
        wf2=xavier(ks[5], (2 * emb, num_tasks)),
        bf2=jnp.zeros((1, num_tasks), jnp.float32),
    )


if __name__ == "__main__":
    key = jax.random.PRNGKey(0)
    # emb lane-dense (multiple of 128); N bumped to 128 to better fill the MXU M dim.
    N, E, EMB, L, NUM_GRAPHS, NUM_TASKS = 128, 256, 128, 3, 2, 1

    kp, kx, ks_, kd, ke = jax.random.split(key, 5)
    params = init_params(kp, EMB, L, NUM_TASKS)

    # approxNet.forward does not encode; prepare (N, emb) node features outside
    # forward via the xavier-initialized embedding table lookup.
    x_idx = jax.random.randint(kx, (N,), 0, 21)
    x_feat = params["node_emb"][x_idx]                              # (N, EMB) f32

    # edges stay within each graph (nodes 0..63 -> graph 0, 64..127 -> graph 1)
    half = E // 2
    src0 = jax.random.randint(ks_, (half,), 0, N // 2)
    dst0 = jax.random.randint(kd, (half,), 0, N // 2)
    edge_index = jnp.stack([jnp.concatenate([src0, src0 + N // 2]),
                            jnp.concatenate([dst0, dst0 + N // 2])]).astype(jnp.int32)
    edge_attr = jax.random.randint(ke, (E,), 0, 4)
    batch = jnp.concatenate([jnp.zeros(N // 2, jnp.int32),
                             jnp.ones(N // 2, jnp.int32)])

    out, thetas = approxnet_forward(x_feat, edge_index, edge_attr, batch,
                                    params, NUM_GRAPHS)
    jax.block_until_ready(out)
    assert out.shape == (NUM_GRAPHS, NUM_TASKS)
    assert len(thetas) == L and all(t is None for t in thetas)
    assert bool(jnp.isfinite(out).all())

    # tolerance-asserted pure-JAX reference of the kernel's output (GNN stack)
    x_nodes = gine_stack(x_feat, edge_index, edge_attr, params)
    x_nodes_ref = gine_stack_ref(x_feat, edge_index, edge_attr, params)
    assert bool(jnp.allclose(x_nodes, x_nodes_ref, atol=3e-2, rtol=3e-2))

    print("KERNEL_OK")
</pallas_src>

<mosaic_0001>
module attributes {stable_mosaic.version = 11 : i64} {
  func.func @gine_layer_indexed_kernel(%arg0: i32, %arg1: memref<256xi32, #tpu.memory_space<smem>>, %arg2: memref<256xi32, #tpu.memory_space<smem>>, %arg3: memref<256xi32, #tpu.memory_space<smem>>, %arg4: memref<128x128xf32, #tpu.memory_space<vmem>>, %arg5: memref<1x8x128xf32, #tpu.memory_space<vmem>>, %arg6: memref<1x128x256xbf16, #tpu.memory_space<vmem>>, %arg7: memref<1x1x256xf32, #tpu.memory_space<vmem>>, %arg8: memref<1x256x128xbf16, #tpu.memory_space<vmem>>, %arg9: memref<1x1x128xf32, #tpu.memory_space<vmem>>, %arg10: memref<1x1x128xf32, #tpu.memory_space<vmem>>, %arg11: memref<1x1x128xf32, #tpu.memory_space<vmem>>, %arg12: memref<128x128xf32, #tpu.memory_space<vmem>>, %arg13: memref<128x128xf32, #tpu.memory_space<vmem>>) attributes {dimension_semantics = [#tpu.dimension_semantics<arbitrary>], iteration_bounds = array<i64: 3>, scalar_prefetch = 3 : i64, scratch_operands = 1 : i64, tpu.core_type = #tpu.core_type<tc>, window_params = [{pipeline_mode = #tpu.pipeline_mode<synchronous>, transform_indices = @transform_0, window_bounds = array<i64: 128, 128>}, {transform_indices = @transform_1, window_bounds = array<i64: 1, 8, 128>}, {transform_indices = @transform_2, window_bounds = array<i64: 1, 128, 256>}, {transform_indices = @transform_3, window_bounds = array<i64: 1, 1, 256>}, {transform_indices = @transform_4, window_bounds = array<i64: 1, 256, 128>}, {transform_indices = @transform_5, window_bounds = array<i64: 1, 1, 128>}, {transform_indices = @transform_6, window_bounds = array<i64: 1, 1, 128>}, {transform_indices = @transform_7, window_bounds = array<i64: 1, 1, 128>}, {pipeline_mode = #tpu.pipeline_mode<synchronous>, transform_indices = @transform_8, window_bounds = array<i64: 128, 128>}]} {
    %c0_i32 = arith.constant 0 : i32
    %0 = arith.cmpi eq, %arg0, %c0_i32 : i32
    %1 = arith.extui %0 : i1 to i32
    %c0_i32_0 = arith.constant 0 : i32
    %2 = arith.cmpi ne, %1, %c0_i32_0 : i32
    scf.if %2 {
      %c0_38 = arith.constant 0 : index
      %c0_39 = arith.constant 0 : index
      %53 = vector.load %arg4[%c0_38, %c0_39] : memref<128x128xf32, #tpu.memory_space<vmem>>, vector<128x128xf32>
      %c0_40 = arith.constant 0 : index
      %c0_41 = arith.constant 0 : index
      %54 = vector.load %arg12[%c0_40, %c0_41] : memref<128x128xf32, #tpu.memory_space<vmem>>, vector<128x128xf32>
      tpu.vector_store %arg12[%c0_40, %c0_41], %53 {strides = array<i32>} : memref<128x128xf32, #tpu.memory_space<vmem>>, vector<128x128xf32>,
    } else {
    }
    %c0 = arith.constant 0 : index
    %c0_1 = arith.constant 0 : index
    %3 = vector.load %arg12[%c0, %c0_1] : memref<128x128xf32, #tpu.memory_space<vmem>>, vector<128x128xf32>
    %c0_2 = arith.constant 0 : index
    %c0_3 = arith.constant 0 : index
    %4 = vector.load %arg13[%c0_2, %c0_3] : memref<128x128xf32, #tpu.memory_space<vmem>>, vector<128x128xf32>
    tpu.vector_store %arg13[%c0_2, %c0_3], %3 {strides = array<i32>} : memref<128x128xf32, #tpu.memory_space<vmem>>, vector<128x128xf32>,
    %c0_i32_4 = arith.constant 0 : i32
    %c256_i32 = arith.constant 256 : i32
    %5 = arith.addi %c0_i32_4, %c256_i32 : i32
    %c1_i32 = arith.constant 1 : i32
    scf.for %arg14 = %c0_i32_4 to %5 step %c1_i32  : i32 {
      %c1_i32_38 = arith.constant 1 : i32
      %53 = arith.muli %arg14, %c1_i32_38 : i32
      %c0_i32_39 = arith.constant 0 : i32
      %54 = arith.addi %c0_i32_39, %53 : i32
      %55 = arith.index_cast %54 : i32 to index
      %56 = memref.load %arg1[%55] : memref<256xi32, #tpu.memory_space<smem>>
      %57 = arith.index_cast %54 : i32 to index
      %58 = memref.load %arg2[%57] : memref<256xi32, #tpu.memory_space<smem>>
      %59 = arith.index_cast %54 : i32 to index
      %60 = memref.load %arg3[%59] : memref<256xi32, #tpu.memory_space<smem>>
      %61 = arith.index_cast %56 : i32 to index
      %c0_40 = arith.constant 0 : index
      %62 = vector.load %arg12[%61, %c0_40] : memref<128x128xf32, #tpu.memory_space<vmem>>, vector<1x128xf32>
      %c0_41 = arith.constant 0 : index
      %63 = arith.index_cast %60 : i32 to index
      %c0_42 = arith.constant 0 : index
      %64 = vector.load %arg5[%c0_41, %63, %c0_42] : memref<1x8x128xf32, #tpu.memory_space<vmem>>, vector<1x1x128xf32>
      %65 = vector.shape_cast %64 : vector<1x1x128xf32> to vector<1x128xf32>
      %66 = arith.addf %62, %65 : vector<1x128xf32>
      %cst_43 = arith.constant 0.000000e+00 : f32
      %67 = vector.broadcast %cst_43 : f32 to vector<1x128xf32>
      %68 = arith.maximumf %66, %67 : vector<1x128xf32>
      %69 = arith.index_cast %58 : i32 to index
      %c0_44 = arith.constant 0 : index
      %70 = vector.load %arg13[%69, %c0_44] : memref<128x128xf32, #tpu.memory_space<vmem>>, vector<1x128xf32>
      %71 = arith.addf %70, %68 : vector<1x128xf32>
      %72 = arith.index_cast %58 : i32 to index
      %c0_45 = arith.constant 0 : index
      %73 = vector.load %arg13[%72, %c0_45] : memref<128x128xf32, #tpu.memory_space<vmem>>, vector<1x128xf32>
      tpu.vector_store %arg13[%72, %c0_45], %71 {strides = array<i32>} : memref<128x128xf32, #tpu.memory_space<vmem>>, vector<1x128xf32>,
    }
    %c256_i32_5 = arith.constant 256 : i32
    %c0_6 = arith.constant 0 : index
    %c0_7 = arith.constant 0 : index
    %6 = vector.load %arg13[%c0_6, %c0_7] : memref<128x128xf32, #tpu.memory_space<vmem>>, vector<128x128xf32>
    %c0_8 = arith.constant 0 : index
    %c0_9 = arith.constant 0 : index
    %7 = vector.load %arg12[%c0_8, %c0_9] : memref<128x128xf32, #tpu.memory_space<vmem>>, vector<128x128xf32>
    %c0_10 = arith.constant 0 : index
    %c0_11 = arith.constant 0 : index
    %c0_12 = arith.constant 0 : index
    %8 = vector.load %arg6[%c0_10, %c0_11, %c0_12] : memref<1x128x256xbf16, #tpu.memory_space<vmem>>, vector<1x128x256xbf16>
    %9 = vector.shape_cast %8 : vector<1x128x256xbf16> to vector<128x256xbf16>
    %c0_13 = arith.constant 0 : index
    %c0_14 = arith.constant 0 : index
    %c0_15 = arith.constant 0 : index
    %10 = vector.load %arg7[%c0_13, %c0_14, %c0_15] : memref<1x1x256xf32, #tpu.memory_space<vmem>>, vector<1x1x256xf32>
    %11 = vector.shape_cast %10 : vector<1x1x256xf32> to vector<1x256xf32>
    %c0_16 = arith.constant 0 : index
    %c0_17 = arith.constant 0 : index
    %c0_18 = arith.constant 0 : index
    %12 = vector.load %arg8[%c0_16, %c0_17, %c0_18] : memref<1x256x128xbf16, #tpu.memory_space<vmem>>, vector<1x256x128xbf16>
    %13 = vector.shape_cast %12 : vector<1x256x128xbf16> to vector<256x128xbf16>
    %c0_19 = arith.constant 0 : index
    %c0_20 = arith.constant 0 : index
    %c0_21 = arith.constant 0 : index
    %14 = vector.load %arg9[%c0_19, %c0_20, %c0_21] : memref<1x1x128xf32, #tpu.memory_space<vmem>>, vector<1x1x128xf32>
    %15 = vector.shape_cast %14 : vector<1x1x128xf32> to vector<1x128xf32>
    %c0_22 = arith.constant 0 : index
    %c0_23 = arith.constant 0 : index
    %c0_24 = arith.constant 0 : index
    %16 = vector.load %arg10[%c0_22, %c0_23, %c0_24] : memref<1x1x128xf32, #tpu.memory_space<vmem>>, vector<1x1x128xf32>
    %17 = vector.shape_cast %16 : vector<1x1x128xf32> to vector<1x128xf32>
    %c0_25 = arith.constant 0 : index
    %c0_26 = arith.constant 0 : index
    %c0_27 = arith.constant 0 : index
    %18 = vector.load %arg11[%c0_25, %c0_26, %c0_27] : memref<1x1x128xf32, #tpu.memory_space<vmem>>, vector<1x1x128xf32>
    %19 = vector.shape_cast %18 : vector<1x1x128xf32> to vector<1x128xf32>
    %20 = arith.truncf %6 : vector<128x128xf32> to vector<128x128xbf16>
    %cst = arith.constant dense<0.000000e+00> : vector<128x256xf32>
    %21 = tpu.matmul %20, %9, %cst {dimension_numbers = #tpu.dot_dimension_numbers<[1], [0], [0], [1], [0, 0, 1, 1], [], []>} : vector<128x128xbf16>, vector<128x256xbf16>, vector<128x256xf32> -> vector<128x256xf32>
    %22 = vector.broadcast %11 : vector<1x256xf32> to vector<128x256xf32>
    %23 = arith.addf %21, %22 : vector<128x256xf32>
    %cst_28 = arith.constant 0.000000e+00 : f32
    %24 = vector.broadcast %cst_28 : f32 to vector<128x256xf32>
    %25 = arith.maximumf %23, %24 : vector<128x256xf32>
    %26 = arith.truncf %25 : vector<128x256xf32> to vector<128x256xbf16>
    %cst_29 = arith.constant dense<0.000000e+00> : vector<128x128xf32>
    %27 = tpu.matmul %26, %13, %cst_29 {dimension_numbers = #tpu.dot_dimension_numbers<[1], [0], [0], [1], [0, 0, 1, 1], [], []>} : vector<128x256xbf16>, vector<256x128xbf16>, vector<128x128xf32> -> vector<128x128xf32>
    %28 = vector.broadcast %15 : vector<1x128xf32> to vector<128x128xf32>
    %29 = arith.addf %27, %28 : vector<128x128xf32>
    %cst_30 = arith.constant dense<0.000000e+00> : vector<128xf32>
    %30 = vector.multi_reduction <add>, %29, %cst_30 [0] : vector<128x128xf32> to vector<128xf32>
    %31 = vector.shape_cast %30 : vector<128xf32> to vector<1x128xf32>
    %cst_31 = arith.constant 7.812500e-03 : f32
    %32 = vector.broadcast %cst_31 : f32 to vector<1x128xf32>
    %33 = arith.mulf %31, %32 : vector<1x128xf32>
    %34 = vector.broadcast %33 : vector<1x128xf32> to vector<128x128xf32>
    %35 = arith.subf %29, %34 : vector<128x128xf32>
    %36 = arith.mulf %35, %35 : vector<128x128xf32>
    %cst_32 = arith.constant dense<0.000000e+00> : vector<128xf32>
    %37 = vector.multi_reduction <add>, %36, %cst_32 [0] : vector<128x128xf32> to vector<128xf32>
    %38 = vector.shape_cast %37 : vector<128xf32> to vector<1x128xf32>
    %cst_33 = arith.constant 7.812500e-03 : f32
    %39 = vector.broadcast %cst_33 : f32 to vector<1x128xf32>
    %40 = arith.mulf %38, %39 : vector<1x128xf32>
    %cst_34 = arith.constant 9.99999974E-6 : f32
    %41 = vector.broadcast %cst_34 : f32 to vector<1x128xf32>
    %42 = arith.addf %40, %41 : vector<1x128xf32>
    %43 = math.rsqrt %42 : vector<1x128xf32>
    %44 = arith.mulf %17, %43 : vector<1x128xf32>
    %45 = vector.broadcast %44 : vector<1x128xf32> to vector<128x128xf32>
    %46 = arith.mulf %35, %45 : vector<128x128xf32>
    %47 = vector.broadcast %19 : vector<1x128xf32> to vector<128x128xf32>
    %48 = arith.addf %46, %47 : vector<128x128xf32>
    %cst_35 = arith.constant 0.000000e+00 : f32
    %49 = vector.broadcast %cst_35 : f32 to vector<128x128xf32>
    %50 = arith.maximumf %48, %49 : vector<128x128xf32>
    %51 = arith.addf %50, %7 : vector<128x128xf32>
    %c0_36 = arith.constant 0 : index
    %c0_37 = arith.constant 0 : index
    %52 = vector.load %arg12[%c0_36, %c0_37] : memref<128x128xf32, #tpu.memory_space<vmem>>, vector<128x128xf32>
    tpu.vector_store %arg12[%c0_36, %c0_37], %51 {strides = array<i32>} : memref<128x128xf32, #tpu.memory_space<vmem>>, vector<128x128xf32>,
    return
  }
  func.func @transform_0(%arg0: i32, %arg1: memref<256xi32, #tpu.memory_space<smem>>, %arg2: memref<256xi32, #tpu.memory_space<smem>>, %arg3: memref<256xi32, #tpu.memory_space<smem>>) -> (i32, i32) {
    %c0_i32 = arith.constant 0 : i32
    %c0_i32_0 = arith.constant 0 : i32
    %c0_i32_1 = arith.constant 0 : i32
    return %c0_i32, %c0_i32_0 : i32, i32
  }
  func.func @transform_1(%arg0: i32, %arg1: memref<256xi32, #tpu.memory_space<smem>>, %arg2: memref<256xi32, #tpu.memory_space<smem>>, %arg3: memref<256xi32, #tpu.memory_space<smem>>) -> (i32, i32, i32) {
    %c0_i32 = arith.constant 0 : i32
    %c0_i32_0 = arith.constant 0 : i32
    %c0_i32_1 = arith.constant 0 : i32
    return %arg0, %c0_i32, %c0_i32_0 : i32, i32, i32
  }
  func.func @transform_2(%arg0: i32, %arg1: memref<256xi32, #tpu.memory_space<smem>>, %arg2: memref<256xi32, #tpu.memory_space<smem>>, %arg3: memref<256xi32, #tpu.memory_space<smem>>) -> (i32, i32, i32) {
    %c0_i32 = arith.constant 0 : i32
    %c0_i32_0 = arith.constant 0 : i32
    %c0_i32_1 = arith.constant 0 : i32
    return %arg0, %c0_i32, %c0_i32_0 : i32, i32, i32
  }
  func.func @transform_3(%arg0: i32, %arg1: memref<256xi32, #tpu.memory_space<smem>>, %arg2: memref<256xi32, #tpu.memory_space<smem>>, %arg3: memref<256xi32, #tpu.memory_space<smem>>) -> (i32, i32, i32) {
    %c0_i32 = arith.constant 0 : i32
    %c0_i32_0 = arith.constant 0 : i32
    %c0_i32_1 = arith.constant 0 : i32
    return %arg0, %c0_i32, %c0_i32_0 : i32, i32, i32
  }
  func.func @transform_4(%arg0: i32, %arg1: memref<256xi32, #tpu.memory_space<smem>>, %arg2: memref<256xi32, #tpu.memory_space<smem>>, %arg3: memref<256xi32, #tpu.memory_space<smem>>) -> (i32, i32, i32) {
    %c0_i32 = arith.constant 0 : i32
    %c0_i32_0 = arith.constant 0 : i32
    %c0_i32_1 = arith.constant 0 : i32
    return %arg0, %c0_i32, %c0_i32_0 : i32, i32, i32
  }
  func.func @transform_5(%arg0: i32, %arg1: memref<256xi32, #tpu.memory_space<smem>>, %arg2: memref<256xi32, #tpu.memory_space<smem>>, %arg3: memref<256xi32, #tpu.memory_space<smem>>) -> (i32, i32, i32) {
    %c0_i32 = arith.constant 0 : i32
    %c0_i32_0 = arith.constant 0 : i32
    %c0_i32_1 = arith.constant 0 : i32
    return %arg0, %c0_i32, %c0_i32_0 : i32, i32, i32
  }
  func.func @transform_6(%arg0: i32, %arg1: memref<256xi32, #tpu.memory_space<smem>>, %arg2: memref<256xi32, #tpu.memory_space<smem>>, %arg3: memref<256xi32, #tpu.memory_space<smem>>) -> (i32, i32, i32) {
    %c0_i32 = arith.constant 0 : i32
    %c0_i32_0 = arith.constant 0 : i32
    %c0_i32_1 = arith.constant 0 : i32
    return %arg0, %c0_i32, %c0_i32_0 : i32, i32, i32
  }
  func.func @transform_7(%arg0: i32, %arg1: memref<256xi32, #tpu.memory_space<smem>>, %arg2: memref<256xi32, #tpu.memory_space<smem>>, %arg3: memref<256xi32, #tpu.memory_space<smem>>) -> (i32, i32, i32) {
    %c0_i32 = arith.constant 0 : i32
    %c0_i32_0 = arith.constant 0 : i32
    %c0_i32_1 = arith.constant 0 : i32
    return %arg0, %c0_i32, %c0_i32_0 : i32, i32, i32
  }
  func.func @transform_8(%arg0: i32, %arg1: memref<256xi32, #tpu.memory_space<smem>>, %arg2: memref<256xi32, #tpu.memory_space<smem>>, %arg3: memref<256xi32, #tpu.memory_space<smem>>) -> (i32, i32) {
    %c0_i32 = arith.constant 0 : i32
    %c0_i32_0 = arith.constant 0 : i32
    %c0_i32_1 = arith.constant 0 : i32
    return %c0_i32, %c0_i32_0 : i32, i32
  }
}

module attributes {stable_mosaic.version = 11 : i64} {
  func.func @gine_layer_indexed_kernel(%arg0: i32, %arg1: memref<256xi32, #tpu.memory_space<smem>>, %arg2: memref<256xi32, #tpu.memory_space<smem>>, %arg3: memref<256xi32, #tpu.memory_space<smem>>, %arg4: memref<128x128xf32, #tpu.memory_space<vmem>>, %arg5: memref<1x8x128xf32, #tpu.memory_space<vmem>>, %arg6: memref<1x128x256xbf16, #tpu.memory_space<vmem>>, %arg7: memref<1x1x256xf32, #tpu.memory_space<vmem>>, %arg8: memref<1x256x128xbf16, #tpu.memory_space<vmem>>, %arg9: memref<1x1x128xf32, #tpu.memory_space<vmem>>, %arg10: memref<1x1x128xf32, #tpu.memory_space<vmem>>, %arg11: memref<1x1x128xf32, #tpu.memory_space<vmem>>, %arg12: memref<128x128xf32, #tpu.memory_space<vmem>>, %arg13: memref<128x128xf32, #tpu.memory_space<vmem>>) attributes {dimension_semantics = [#tpu.dimension_semantics<arbitrary>], iteration_bounds = array<i64: 3>, scalar_prefetch = 3 : i64, scratch_operands = 1 : i64, tpu.core_type = #tpu.core_type<tc>, window_params = [{pipeline_mode = #tpu.pipeline_mode<synchronous>, transform_indices = @transform_0, window_bounds = array<i64: 128, 128>}, {transform_indices = @transform_1, window_bounds = array<i64: 1, 8, 128>}, {transform_indices = @transform_2, window_bounds = array<i64: 1, 128, 256>}, {transform_indices = @transform_3, window_bounds = array<i64: 1, 1, 256>}, {transform_indices = @transform_4, window_bounds = array<i64: 1, 256, 128>}, {transform_indices = @transform_5, window_bounds = array<i64: 1, 1, 128>}, {transform_indices = @transform_6, window_bounds = array<i64: 1, 1, 128>}, {transform_indices = @transform_7, window_bounds = array<i64: 1, 1, 128>}, {pipeline_mode = #tpu.pipeline_mode<synchronous>, transform_indices = @transform_8, window_bounds = array<i64: 128, 128>}]} {
    %c0_i32 = arith.constant 0 : i32
    %0 = arith.cmpi eq, %arg0, %c0_i32 : i32
    %1 = arith.extui %0 : i1 to i32
    %c0_i32_0 = arith.constant 0 : i32
    %2 = arith.cmpi ne, %1, %c0_i32_0 : i32
    scf.if %2 {
      %c0_38 = arith.constant 0 : index
      %c0_39 = arith.constant 0 : index
      %53 = vector.load %arg4[%c0_38, %c0_39] : memref<128x128xf32, #tpu.memory_space<vmem>>, vector<128x128xf32>
      %c0_40 = arith.constant 0 : index
      %c0_41 = arith.constant 0 : index
      %54 = vector.load %arg12[%c0_40, %c0_41] : memref<128x128xf32, #tpu.memory_space<vmem>>, vector<128x128xf32>
      tpu.vector_store %arg12[%c0_40, %c0_41], %53 {strides = array<i32>} : memref<128x128xf32, #tpu.memory_space<vmem>>, vector<128x128xf32>,
    } else {
    }
    %c0 = arith.constant 0 : index
    %c0_1 = arith.constant 0 : index
    %3 = vector.load %arg12[%c0, %c0_1] : memref<128x128xf32, #tpu.memory_space<vmem>>, vector<128x128xf32>
    %c0_2 = arith.constant 0 : index
    %c0_3 = arith.constant 0 : index
    %4 = vector.load %arg13[%c0_2, %c0_3] : memref<128x128xf32, #tpu.memory_space<vmem>>, vector<128x128xf32>
    tpu.vector_store %arg13[%c0_2, %c0_3], %3 {strides = array<i32>} : memref<128x128xf32, #tpu.memory_space<vmem>>, vector<128x128xf32>,
    %c0_i32_4 = arith.constant 0 : i32
    %c256_i32 = arith.constant 256 : i32
    %5 = arith.addi %c0_i32_4, %c256_i32 : i32
    %c1_i32 = arith.constant 1 : i32
    scf.for %arg14 = %c0_i32_4 to %5 step %c1_i32  : i32 {
      %c1_i32_38 = arith.constant 1 : i32
      %53 = arith.muli %arg14, %c1_i32_38 : i32
      %c0_i32_39 = arith.constant 0 : i32
      %54 = arith.addi %c0_i32_39, %53 : i32
      %55 = arith.index_cast %54 : i32 to index
      %56 = memref.load %arg1[%55] : memref<256xi32, #tpu.memory_space<smem>>
      %57 = arith.index_cast %54 : i32 to index
      %58 = memref.load %arg2[%57] : memref<256xi32, #tpu.memory_space<smem>>
      %59 = arith.index_cast %54 : i32 to index
      %60 = memref.load %arg3[%59] : memref<256xi32, #tpu.memory_space<smem>>
      %61 = arith.index_cast %56 : i32 to index
      %c0_40 = arith.constant 0 : index
      %62 = vector.load %arg12[%61, %c0_40] : memref<128x128xf32, #tpu.memory_space<vmem>>, vector<1x128xf32>
      %c0_41 = arith.constant 0 : index
      %63 = arith.index_cast %60 : i32 to index
      %c0_42 = arith.constant 0 : index
      %64 = vector.load %arg5[%c0_41, %63, %c0_42] : memref<1x8x128xf32, #tpu.memory_space<vmem>>, vector<1x1x128xf32>
      %65 = vector.shape_cast %64 : vector<1x1x128xf32> to vector<1x128xf32>
      %66 = arith.addf %62, %65 : vector<1x128xf32>
      %cst_43 = arith.constant 0.000000e+00 : f32
      %67 = vector.broadcast %cst_43 : f32 to vector<1x128xf32>
      %68 = arith.maximumf %66, %67 : vector<1x128xf32>
      %69 = arith.index_cast %58 : i32 to index
      %c0_44 = arith.constant 0 : index
      %70 = vector.load %arg13[%69, %c0_44] : memref<128x128xf32, #tpu.memory_space<vmem>>, vector<1x128xf32>
      %71 = arith.addf %70, %68 : vector<1x128xf32>
      %72 = arith.index_cast %58 : i32 to index
      %c0_45 = arith.constant 0 : index
      %73 = vector.load %arg13[%72, %c0_45] : memref<128x128xf32, #tpu.memory_space<vmem>>, vector<1x128xf32>
      tpu.vector_store %arg13[%72, %c0_45], %71 {strides = array<i32>} : memref<128x128xf32, #tpu.memory_space<vmem>>, vector<1x128xf32>,
    }
    %c256_i32_5 = arith.constant 256 : i32
    %c0_6 = arith.constant 0 : index
    %c0_7 = arith.constant 0 : index
    %6 = vector.load %arg13[%c0_6, %c0_7] : memref<128x128xf32, #tpu.memory_space<vmem>>, vector<128x128xf32>
    %c0_8 = arith.constant 0 : index
    %c0_9 = arith.constant 0 : index
    %7 = vector.load %arg12[%c0_8, %c0_9] : memref<128x128xf32, #tpu.memory_space<vmem>>, vector<128x128xf32>
    %c0_10 = arith.constant 0 : index
    %c0_11 = arith.constant 0 : index
    %c0_12 = arith.constant 0 : index
    %8 = vector.load %arg6[%c0_10, %c0_11, %c0_12] : memref<1x128x256xbf16, #tpu.memory_space<vmem>>, vector<1x128x256xbf16>
    %9 = vector.shape_cast %8 : vector<1x128x256xbf16> to vector<128x256xbf16>
    %c0_13 = arith.constant 0 : index
    %c0_14 = arith.constant 0 : index
    %c0_15 = arith.constant 0 : index
    %10 = vector.load %arg7[%c0_13, %c0_14, %c0_15] : memref<1x1x256xf32, #tpu.memory_space<vmem>>, vector<1x1x256xf32>
    %11 = vector.shape_cast %10 : vector<1x1x256xf32> to vector<1x256xf32>
    %c0_16 = arith.constant 0 : index
    %c0_17 = arith.constant 0 : index
    %c0_18 = arith.constant 0 : index
    %12 = vector.load %arg8[%c0_16, %c0_17, %c0_18] : memref<1x256x128xbf16, #tpu.memory_space<vmem>>, vector<1x256x128xbf16>
    %13 = vector.shape_cast %12 : vector<1x256x128xbf16> to vector<256x128xbf16>
    %c0_19 = arith.constant 0 : index
    %c0_20 = arith.constant 0 : index
    %c0_21 = arith.constant 0 : index
    %14 = vector.load %arg9[%c0_19, %c0_20, %c0_21] : memref<1x1x128xf32, #tpu.memory_space<vmem>>, vector<1x1x128xf32>
    %15 = vector.shape_cast %14 : vector<1x1x128xf32> to vector<1x128xf32>
    %c0_22 = arith.constant 0 : index
    %c0_23 = arith.constant 0 : index
    %c0_24 = arith.constant 0 : index
    %16 = vector.load %arg10[%c0_22, %c0_23, %c0_24] : memref<1x1x128xf32, #tpu.memory_space<vmem>>, vector<1x1x128xf32>
    %17 = vector.shape_cast %16 : vector<1x1x128xf32> to vector<1x128xf32>
    %c0_25 = arith.constant 0 : index
    %c0_26 = arith.constant 0 : index
    %c0_27 = arith.constant 0 : index
    %18 = vector.load %arg11[%c0_25, %c0_26, %c0_27] : memref<1x1x128xf32, #tpu.memory_space<vmem>>, vector<1x1x128xf32>
    %19 = vector.shape_cast %18 : vector<1x1x128xf32> to vector<1x128xf32>
    %20 = arith.truncf %6 : vector<128x128xf32> to vector<128x128xbf16>
    %cst = arith.constant dense<0.000000e+00> : vector<128x256xf32>
    %21 = tpu.matmul %20, %9, %cst {dimension_numbers = #tpu.dot_dimension_numbers<[1], [0], [0], [1], [0, 0, 1, 1], [], []>} : vector<128x128xbf16>, vector<128x256xbf16>, vector<128x256xf32> -> vector<128x256xf32>
    %22 = vector.broadcast %11 : vector<1x256xf32> to vector<128x256xf32>
    %23 = arith.addf %21, %22 : vector<128x256xf32>
    %cst_28 = arith.constant 0.000000e+00 : f32
    %24 = vector.broadcast %cst_28 : f32 to vector<128x256xf32>
    %25 = arith.maximumf %23, %24 : vector<128x256xf32>
    %26 = arith.truncf %25 : vector<128x256xf32> to vector<128x256xbf16>
    %cst_29 = arith.constant dense<0.000000e+00> : vector<128x128xf32>
    %27 = tpu.matmul %26, %13, %cst_29 {dimension_numbers = #tpu.dot_dimension_numbers<[1], [0], [0], [1], [0, 0, 1, 1], [], []>} : vector<128x256xbf16>, vector<256x128xbf16>, vector<128x128xf32> -> vector<128x128xf32>
    %28 = vector.broadcast %15 : vector<1x128xf32> to vector<128x128xf32>
    %29 = arith.addf %27, %28 : vector<128x128xf32>
    %cst_30 = arith.constant dense<0.000000e+00> : vector<128xf32>
    %30 = vector.multi_reduction <add>, %29, %cst_30 [0] : vector<128x128xf32> to vector<128xf32>
    %31 = vector.shape_cast %30 : vector<128xf32> to vector<1x128xf32>
    %cst_31 = arith.constant 7.812500e-03 : f32
    %32 = vector.broadcast %cst_31 : f32 to vector<1x128xf32>
    %33 = arith.mulf %31, %32 : vector<1x128xf32>
    %34 = vector.broadcast %33 : vector<1x128xf32> to vector<128x128xf32>
    %35 = arith.subf %29, %34 : vector<128x128xf32>
    %36 = arith.mulf %35, %35 : vector<128x128xf32>
    %cst_32 = arith.constant dense<0.000000e+00> : vector<128xf32>
    %37 = vector.multi_reduction <add>, %36, %cst_32 [0] : vector<128x128xf32> to vector<128xf32>
    %38 = vector.shape_cast %37 : vector<128xf32> to vector<1x128xf32>
    %cst_33 = arith.constant 7.812500e-03 : f32
    %39 = vector.broadcast %cst_33 : f32 to vector<1x128xf32>
    %40 = arith.mulf %38, %39 : vector<1x128xf32>
    %cst_34 = arith.constant 9.99999974E-6 : f32
    %41 = vector.broadcast %cst_34 : f32 to vector<1x128xf32>
    %42 = arith.addf %40, %41 : vector<1x128xf32>
    %43 = math.rsqrt %42 : vector<1x128xf32>
    %44 = arith.mulf %17, %43 : vector<1x128xf32>
    %45 = vector.broadcast %44 : vector<1x128xf32> to vector<128x128xf32>
    %46 = arith.mulf %35, %45 : vector<128x128xf32>
    %47 = vector.broadcast %19 : vector<1x128xf32> to vector<128x128xf32>
    %48 = arith.addf %46, %47 : vector<128x128xf32>
    %cst_35 = arith.constant 0.000000e+00 : f32
    %49 = vector.broadcast %cst_35 : f32 to vector<128x128xf32>
    %50 = arith.maximumf %48, %49 : vector<128x128xf32>
    %51 = arith.addf %50, %7 : vector<128x128xf32>
    %c0_36 = arith.constant 0 : index
    %c0_37 = arith.constant 0 : index
    %52 = vector.load %arg12[%c0_36, %c0_37] : memref<128x128xf32, #tpu.memory_space<vmem>>, vector<128x128xf32>
    tpu.vector_store %arg12[%c0_36, %c0_37], %51 {strides = array<i32>} : memref<128x128xf32, #tpu.memory_space<vmem>>, vector<128x128xf32>,
    return
  }
  func.func @transform_0(%arg0: i32, %arg1: memref<256xi32, #tpu.memory_space<smem>>, %arg2: memref<256xi32, #tpu.memory_space<smem>>, %arg3: memref<256xi32, #tpu.memory_space<smem>>) -> (i32, i32) {
    %c0_i32 = arith.constant 0 : i32
    %c0_i32_0 = arith.constant 0 : i32
    %c0_i32_1 = arith.constant 0 : i32
    return %c0_i32, %c0_i32_0 : i32, i32
  }
  func.func @transform_1(%arg0: i32, %arg1: memref<256xi32, #tpu.memory_space<smem>>, %arg2: memref<256xi32, #tpu.memory_space<smem>>, %arg3: memref<256xi32, #tpu.memory_space<smem>>) -> (i32, i32, i32) {
    %c0_i32 = arith.constant 0 : i32
    %c0_i32_0 = arith.constant 0 : i32
    %c0_i32_1 = arith.constant 0 : i32
    return %arg0, %c0_i32, %c0_i32_0 : i32, i32, i32
  }
  func.func @transform_2(%arg0: i32, %arg1: memref<256xi32, #tpu.memory_space<smem>>, %arg2: memref<256xi32, #tpu.memory_space<smem>>, %arg3: memref<256xi32, #tpu.memory_space<smem>>) -> (i32, i32, i32) {
    %c0_i32 = arith.constant 0 : i32
    %c0_i32_0 = arith.constant 0 : i32
    %c0_i32_1 = arith.constant 0 : i32
    return %arg0, %c0_i32, %c0_i32_0 : i32, i32, i32
  }
  func.func @transform_3(%arg0: i32, %arg1: memref<256xi32, #tpu.memory_space<smem>>, %arg2: memref<256xi32, #tpu.memory_space<smem>>, %arg3: memref<256xi32, #tpu.memory_space<smem>>) -> (i32, i32, i32) {
    %c0_i32 = arith.constant 0 : i32
    %c0_i32_0 = arith.constant 0 : i32
    %c0_i32_1 = arith.constant 0 : i32
    return %arg0, %c0_i32, %c0_i32_0 : i32, i32, i32
  }
  func.func @transform_4(%arg0: i32, %arg1: memref<256xi32, #tpu.memory_space<smem>>, %arg2: memref<256xi32, #tpu.memory_space<smem>>, %arg3: memref<256xi32, #tpu.memory_space<smem>>) -> (i32, i32, i32) {
    %c0_i32 = arith.constant 0 : i32
    %c0_i32_0 = arith.constant 0 : i32
    %c0_i32_1 = arith.constant 0 : i32
    return %arg0, %c0_i32, %c0_i32_0 : i32, i32, i32
  }
  func.func @transform_5(%arg0: i32, %arg1: memref<256xi32, #tpu.memory_space<smem>>, %arg2: memref<256xi32, #tpu.memory_space<smem>>, %arg3: memref<256xi32, #tpu.memory_space<smem>>) -> (i32, i32, i32) {
    %c0_i32 = arith.constant 0 : i32
    %c0_i32_0 = arith.constant 0 : i32
    %c0_i32_1 = arith.constant 0 : i32
    return %arg0, %c0_i32, %c0_i32_0 : i32, i32, i32
  }
  func.func @transform_6(%arg0: i32, %arg1: memref<256xi32, #tpu.memory_space<smem>>, %arg2: memref<256xi32, #tpu.memory_space<smem>>, %arg3: memref<256xi32, #tpu.memory_space<smem>>) -> (i32, i32, i32) {
    %c0_i32 = arith.constant 0 : i32
    %c0_i32_0 = arith.constant 0 : i32
    %c0_i32_1 = arith.constant 0 : i32
    return %arg0, %c0_i32, %c0_i32_0 : i32, i32, i32
  }
  func.func @transform_7(%arg0: i32, %arg1: memref<256xi32, #tpu.memory_space<smem>>, %arg2: memref<256xi32, #tpu.memory_space<smem>>, %arg3: memref<256xi32, #tpu.memory_space<smem>>) -> (i32, i32, i32) {
    %c0_i32 = arith.constant 0 : i32
    %c0_i32_0 = arith.constant 0 : i32
    %c0_i32_1 = arith.constant 0 : i32
    return %arg0, %c0_i32, %c0_i32_0 : i32, i32, i32
  }
  func.func @transform_8(%arg0: i32, %arg1: memref<256xi32, #tpu.memory_space<smem>>, %arg2: memref<256xi32, #tpu.memory_space<smem>>, %arg3: memref<256xi32, #tpu.memory_space<smem>>) -> (i32, i32) {
    %c0_i32 = arith.constant 0 : i32
    %c0_i32_0 = arith.constant 0 : i32
    %c0_i32_1 = arith.constant 0 : i32
    return %c0_i32, %c0_i32_0 : i32, i32
  }
}

module attributes {stable_mosaic.version = 11 : i64} {
  func.func @gine_layer_dense_kernel(%arg0: i32, %arg1: memref<128x128xf32, #tpu.memory_space<vmem>>, %arg2: memref<256x128xbf16, #tpu.memory_space<vmem>>, %arg3: memref<128x256xbf16, #tpu.memory_space<vmem>>, %arg4: memref<256x4xbf16, #tpu.memory_space<vmem>>, %arg5: memref<1x4x128xf32, #tpu.memory_space<vmem>>, %arg6: memref<1x128x256xbf16, #tpu.memory_space<vmem>>, %arg7: memref<1x1x256xf32, #tpu.memory_space<vmem>>, %arg8: memref<1x256x128xbf16, #tpu.memory_space<vmem>>, %arg9: memref<1x1x128xf32, #tpu.memory_space<vmem>>, %arg10: memref<1x1x128xf32, #tpu.memory_space<vmem>>, %arg11: memref<1x1x128xf32, #tpu.memory_space<vmem>>, %arg12: memref<128x128xf32, #tpu.memory_space<vmem>>) attributes {dimension_semantics = [#tpu.dimension_semantics<arbitrary>], iteration_bounds = array<i64: 3>, scalar_prefetch = 0 : i64, scratch_operands = 0 : i64, tpu.core_type = #tpu.core_type<tc>, window_params = [{pipeline_mode = #tpu.pipeline_mode<synchronous>, transform_indices = @transform_0, window_bounds = array<i64: 128, 128>}, {pipeline_mode = #tpu.pipeline_mode<synchronous>, transform_indices = @transform_1, window_bounds = array<i64: 256, 128>}, {pipeline_mode = #tpu.pipeline_mode<synchronous>, transform_indices = @transform_2, window_bounds = array<i64: 128, 256>}, {pipeline_mode = #tpu.pipeline_mode<synchronous>, transform_indices = @transform_3, window_bounds = array<i64: 256, 4>}, {transform_indices = @transform_4, window_bounds = array<i64: 1, 4, 128>}, {transform_indices = @transform_5, window_bounds = array<i64: 1, 128, 256>}, {transform_indices = @transform_6, window_bounds = array<i64: 1, 1, 256>}, {transform_indices = @transform_7, window_bounds = array<i64: 1, 256, 128>}, {transform_indices = @transform_8, window_bounds = array<i64: 1, 1, 128>}, {transform_indices = @transform_9, window_bounds = array<i64: 1, 1, 128>}, {transform_indices = @transform_10, window_bounds = array<i64: 1, 1, 128>}, {pipeline_mode = #tpu.pipeline_mode<synchronous>, transform_indices = @transform_11, window_bounds = array<i64: 128, 128>}]} {
    %c0_i32 = arith.constant 0 : i32
    %0 = arith.cmpi eq, %arg0, %c0_i32 : i32
    %1 = arith.extui %0 : i1 to i32
    %c0_i32_0 = arith.constant 0 : i32
    %2 = arith.cmpi ne, %1, %c0_i32_0 : i32
    scf.if %2 {
      %c0_45 = arith.constant 0 : index
      %c0_46 = arith.constant 0 : index
      %88 = vector.load %arg1[%c0_45, %c0_46] : memref<128x128xf32, #tpu.memory_space<vmem>>, vector<128x128xf32>
      %c0_47 = arith.constant 0 : index
      %c0_48 = arith.constant 0 : index
      %89 = vector.load %arg12[%c0_47, %c0_48] : memref<128x128xf32, #tpu.memory_space<vmem>>, vector<128x128xf32>
      tpu.vector_store %arg12[%c0_47, %c0_48], %88 {strides = array<i32>} : memref<128x128xf32, #tpu.memory_space<vmem>>, vector<128x128xf32>,
    } else {
    }
    %c0 = arith.constant 0 : index
    %c0_1 = arith.constant 0 : index
    %3 = vector.load %arg12[%c0, %c0_1] : memref<128x128xf32, #tpu.memory_space<vmem>>, vector<128x128xf32>
    %4 = arith.truncf %3 : vector<128x128xf32> to vector<128x128xbf16>
    %c0_2 = arith.constant 0 : index
    %c0_3 = arith.constant 0 : index
    %c0_4 = arith.constant 0 : index
    %5 = vector.load %arg5[%c0_2, %c0_3, %c0_4] : memref<1x4x128xf32, #tpu.memory_space<vmem>>, vector<1x4x128xf32>
    %6 = vector.shape_cast %5 : vector<1x4x128xf32> to vector<4x128xf32>
    %c0_5 = arith.constant 0 : index
    %c0_6 = arith.constant 0 : index
    %7 = vector.load %arg4[%c0_5, %c0_6] : memref<256x4xbf16, #tpu.memory_space<vmem>>, vector<256x1xbf16>
    %8 = arith.extf %7 : vector<256x1xbf16> to vector<256x1xf32>
    %9 = vector.extract_strided_slice %6 {offsets = [0, 0], sizes = [1, 128], strides = [1, 1]} : vector<4x128xf32> to vector<1x128xf32>
    %10 = vector.broadcast %8 : vector<256x1xf32> to vector<256x128xf32>
    %11 = vector.broadcast %9 : vector<1x128xf32> to vector<256x128xf32>
    %12 = arith.mulf %10, %11 : vector<256x128xf32>
    %c0_7 = arith.constant 0 : index
    %c1 = arith.constant 1 : index
    %13 = vector.load %arg4[%c0_7, %c1] : memref<256x4xbf16, #tpu.memory_space<vmem>>, vector<256x1xbf16>
    %14 = arith.extf %13 : vector<256x1xbf16> to vector<256x1xf32>
    %15 = vector.extract_strided_slice %6 {offsets = [1, 0], sizes = [1, 128], strides = [1, 1]} : vector<4x128xf32> to vector<1x128xf32>
    %16 = vector.broadcast %14 : vector<256x1xf32> to vector<256x128xf32>
    %17 = vector.broadcast %15 : vector<1x128xf32> to vector<256x128xf32>
    %18 = arith.mulf %16, %17 : vector<256x128xf32>
    %19 = arith.addf %12, %18 : vector<256x128xf32>
    %c0_8 = arith.constant 0 : index
    %c2 = arith.constant 2 : index
    %20 = vector.load %arg4[%c0_8, %c2] : memref<256x4xbf16, #tpu.memory_space<vmem>>, vector<256x1xbf16>
    %21 = arith.extf %20 : vector<256x1xbf16> to vector<256x1xf32>
    %22 = vector.extract_strided_slice %6 {offsets = [2, 0], sizes = [1, 128], strides = [1, 1]} : vector<4x128xf32> to vector<1x128xf32>
    %23 = vector.broadcast %21 : vector<256x1xf32> to vector<256x128xf32>
    %24 = vector.broadcast %22 : vector<1x128xf32> to vector<256x128xf32>
    %25 = arith.mulf %23, %24 : vector<256x128xf32>
    %26 = arith.addf %19, %25 : vector<256x128xf32>
    %c0_9 = arith.constant 0 : index
    %c3 = arith.constant 3 : index
    %27 = vector.load %arg4[%c0_9, %c3] : memref<256x4xbf16, #tpu.memory_space<vmem>>, vector<256x1xbf16>
    %28 = arith.extf %27 : vector<256x1xbf16> to vector<256x1xf32>
    %29 = vector.extract_strided_slice %6 {offsets = [3, 0], sizes = [1, 128], strides = [1, 1]} : vector<4x128xf32> to vector<1x128xf32>
    %30 = vector.broadcast %28 : vector<256x1xf32> to vector<256x128xf32>
    %31 = vector.broadcast %29 : vector<1x128xf32> to vector<256x128xf32>
    %32 = arith.mulf %30, %31 : vector<256x128xf32>
    %33 = arith.addf %26, %32 : vector<256x128xf32>
    %c0_10 = arith.constant 0 : index
    %c0_11 = arith.constant 0 : index
    %34 = vector.load %arg2[%c0_10, %c0_11] : memref<256x128xbf16, #tpu.memory_space<vmem>>, vector<256x128xbf16>
    %cst = arith.constant dense<0.000000e+00> : vector<256x128xf32>
    %35 = tpu.matmul %34, %4, %cst {dimension_numbers = #tpu.dot_dimension_numbers<[1], [0], [0], [1], [0, 0, 1, 1], [], []>} : vector<256x128xbf16>, vector<128x128xbf16>, vector<256x128xf32> -> vector<256x128xf32>
    %36 = arith.addf %35, %33 : vector<256x128xf32>
    %cst_12 = arith.constant 0.000000e+00 : f32
    %37 = vector.broadcast %cst_12 : f32 to vector<256x128xf32>
    %38 = arith.maximumf %36, %37 : vector<256x128xf32>
    %c0_13 = arith.constant 0 : index
    %c0_14 = arith.constant 0 : index
    %39 = vector.load %arg3[%c0_13, %c0_14] : memref<128x256xbf16, #tpu.memory_space<vmem>>, vector<128x256xbf16>
    %40 = arith.truncf %38 : vector<256x128xf32> to vector<256x128xbf16>
    %cst_15 = arith.constant dense<0.000000e+00> : vector<128x128xf32>
    %41 = tpu.matmul %39, %40, %cst_15 {dimension_numbers = #tpu.dot_dimension_numbers<[1], [0], [0], [1], [0, 0, 1, 1], [], []>} : vector<128x256xbf16>, vector<256x128xbf16>, vector<128x128xf32> -> vector<128x128xf32>
    %42 = arith.addf %3, %41 : vector<128x128xf32>
    %c0_16 = arith.constant 0 : index
    %c0_17 = arith.constant 0 : index
    %c0_18 = arith.constant 0 : index
    %43 = vector.load %arg6[%c0_16, %c0_17, %c0_18] : memref<1x128x256xbf16, #tpu.memory_space<vmem>>, vector<1x128x256xbf16>
    %44 = vector.shape_cast %43 : vector<1x128x256xbf16> to vector<128x256xbf16>
    %c0_19 = arith.constant 0 : index
    %c0_20 = arith.constant 0 : index
    %c0_21 = arith.constant 0 : index
    %45 = vector.load %arg7[%c0_19, %c0_20, %c0_21] : memref<1x1x256xf32, #tpu.memory_space<vmem>>, vector<1x1x256xf32>
    %46 = vector.shape_cast %45 : vector<1x1x256xf32> to vector<1x256xf32>
    %c0_22 = arith.constant 0 : index
    %c0_23 = arith.constant 0 : index
    %c0_24 = arith.constant 0 : index
    %47 = vector.load %arg8[%c0_22, %c0_23, %c0_24] : memref<1x256x128xbf16, #tpu.memory_space<vmem>>, vector<1x256x128xbf16>
    %48 = vector.shape_cast %47 : vector<1x256x128xbf16> to vector<256x128xbf16>
    %c0_25 = arith.constant 0 : index
    %c0_26 = arith.constant 0 : index
    %c0_27 = arith.constant 0 : index
    %49 = vector.load %arg9[%c0_25, %c0_26, %c0_27] : memref<1x1x128xf32, #tpu.memory_space<vmem>>, vector<1x1x128xf32>
    %50 = vector.shape_cast %49 : vector<1x1x128xf32> to vector<1x128xf32>
    %c0_28 = arith.constant 0 : index
    %c0_29 = arith.constant 0 : index
    %c0_30 = arith.constant 0 : index
    %51 = vector.load %arg10[%c0_28, %c0_29, %c0_30] : memref<1x1x128xf32, #tpu.memory_space<vmem>>, vector<1x1x128xf32>
    %52 = vector.shape_cast %51 : vector<1x1x128xf32> to vector<1x128xf32>
    %c0_31 = arith.constant 0 : index
    %c0_32 = arith.constant 0 : index
    %c0_33 = arith.constant 0 : index
    %53 = vector.load %arg11[%c0_31, %c0_32, %c0_33] : memref<1x1x128xf32, #tpu.memory_space<vmem>>, vector<1x1x128xf32>
    %54 = vector.shape_cast %53 : vector<1x1x128xf32> to vector<1x128xf32>
    %55 = arith.truncf %42 : vector<128x128xf32> to vector<128x128xbf16>
    %cst_34 = arith.constant dense<0.000000e+00> : vector<128x256xf32>
    %56 = tpu.matmul %55, %44, %cst_34 {dimension_numbers = #tpu.dot_dimension_numbers<[1], [0], [0], [1], [0, 0, 1, 1], [], []>} : vector<128x128xbf16>, vector<128x256xbf16>, vector<128x256xf32> -> vector<128x256xf32>
    %57 = vector.broadcast %46 : vector<1x256xf32> to vector<128x256xf32>
    %58 = arith.addf %56, %57 : vector<128x256xf32>
    %cst_35 = arith.constant 0.000000e+00 : f32
    %59 = vector.broadcast %cst_35 : f32 to vector<128x256xf32>
    %60 = arith.maximumf %58, %59 : vector<128x256xf32>
    %61 = arith.truncf %60 : vector<128x256xf32> to vector<128x256xbf16>
    %cst_36 = arith.constant dense<0.000000e+00> : vector<128x128xf32>
    %62 = tpu.matmul %61, %48, %cst_36 {dimension_numbers = #tpu.dot_dimension_numbers<[1], [0], [0], [1], [0, 0, 1, 1], [], []>} : vector<128x256xbf16>, vector<256x128xbf16>, vector<128x128xf32> -> vector<128x128xf32>
    %63 = vector.broadcast %50 : vector<1x128xf32> to vector<128x128xf32>
    %64 = arith.addf %62, %63 : vector<128x128xf32>
    %cst_37 = arith.constant dense<0.000000e+00> : vector<128xf32>
    %65 = vector.multi_reduction <add>, %64, %cst_37 [0] : vector<128x128xf32> to vector<128xf32>
    %66 = vector.shape_cast %65 : vector<128xf32> to vector<1x128xf32>
    %cst_38 = arith.constant 7.812500e-03 : f32
    %67 = vector.broadcast %cst_38 : f32 to vector<1x128xf32>
    %68 = arith.mulf %66, %67 : vector<1x128xf32>
    %69 = vector.broadcast %68 : vector<1x128xf32> to vector<128x128xf32>
    %70 = arith.subf %64, %69 : vector<128x128xf32>
    %71 = arith.mulf %70, %70 : vector<128x128xf32>
    %cst_39 = arith.constant dense<0.000000e+00> : vector<128xf32>
    %72 = vector.multi_reduction <add>, %71, %cst_39 [0] : vector<128x128xf32> to vector<128xf32>
    %73 = vector.shape_cast %72 : vector<128xf32> to vector<1x128xf32>
    %cst_40 = arith.constant 7.812500e-03 : f32
    %74 = vector.broadcast %cst_40 : f32 to vector<1x128xf32>
    %75 = arith.mulf %73, %74 : vector<1x128xf32>
    %cst_41 = arith.constant 9.99999974E-6 : f32
    %76 = vector.broadcast %cst_41 : f32 to vector<1x128xf32>
    %77 = arith.addf %75, %76 : vector<1x128xf32>
    %78 = math.rsqrt %77 : vector<1x128xf32>
    %79 = arith.mulf %52, %78 : vector<1x128xf32>
    %80 = vector.broadcast %79 : vector<1x128xf32> to vector<128x128xf32>
    %81 = arith.mulf %70, %80 : vector<128x128xf32>
    %82 = vector.broadcast %54 : vector<1x128xf32> to vector<128x128xf32>
    %83 = arith.addf %81, %82 : vector<128x128xf32>
    %cst_42 = arith.constant 0.000000e+00 : f32
    %84 = vector.broadcast %cst_42 : f32 to vector<128x128xf32>
    %85 = arith.maximumf %83, %84 : vector<128x128xf32>
    %86 = arith.addf %85, %3 : vector<128x128xf32>
    %c0_43 = arith.constant 0 : index
    %c0_44 = arith.constant 0 : index
    %87 = vector.load %arg12[%c0_43, %c0_44] : memref<128x128xf32, #tpu.memory_space<vmem>>, vector<128x128xf32>
    tpu.vector_store %arg12[%c0_43, %c0_44], %86 {strides = array<i32>} : memref<128x128xf32, #tpu.memory_space<vmem>>, vector<128x128xf32>,
    return
  }
  func.func @transform_0(%arg0: i32) -> (i32, i32) {
    %c0_i32 = arith.constant 0 : i32
    %c0_i32_0 = arith.constant 0 : i32
    %c0_i32_1 = arith.constant 0 : i32
    return %c0_i32, %c0_i32_0 : i32, i32
  }
  func.func @transform_1(%arg0: i32) -> (i32, i32) {
    %c0_i32 = arith.constant 0 : i32
    %c0_i32_0 = arith.constant 0 : i32
    %c0_i32_1 = arith.constant 0 : i32
    return %c0_i32, %c0_i32_0 : i32, i32
  }
  func.func @transform_2(%arg0: i32) -> (i32, i32) {
    %c0_i32 = arith.constant 0 : i32
    %c0_i32_0 = arith.constant 0 : i32
    %c0_i32_1 = arith.constant 0 : i32
    return %c0_i32, %c0_i32_0 : i32, i32
  }
  func.func @transform_3(%arg0: i32) -> (i32, i32) {
    %c0_i32 = arith.constant 0 : i32
    %c0_i32_0 = arith.constant 0 : i32
    %c0_i32_1 = arith.constant 0 : i32
    return %c0_i32, %c0_i32_0 : i32, i32
  }
  func.func @transform_4(%arg0: i32) -> (i32, i32, i32) {
    %c0_i32 = arith.constant 0 : i32
    %c0_i32_0 = arith.constant 0 : i32
    %c0_i32_1 = arith.constant 0 : i32
    return %arg0, %c0_i32, %c0_i32_0 : i32, i32, i32
  }
  func.func @transform_5(%arg0: i32) -> (i32, i32, i32) {
    %c0_i32 = arith.constant 0 : i32
    %c0_i32_0 = arith.constant 0 : i32
    %c0_i32_1 = arith.constant 0 : i32
    return %arg0, %c0_i32, %c0_i32_0 : i32, i32, i32
  }
  func.func @transform_6(%arg0: i32) -> (i32, i32, i32) {
    %c0_i32 = arith.constant 0 : i32
    %c0_i32_0 = arith.constant 0 : i32
    %c0_i32_1 = arith.constant 0 : i32
    return %arg0, %c0_i32, %c0_i32_0 : i32, i32, i32
  }
  func.func @transform_7(%arg0: i32) -> (i32, i32, i32) {
    %c0_i32 = arith.constant 0 : i32
    %c0_i32_0 = arith.constant 0 : i32
    %c0_i32_1 = arith.constant 0 : i32
    return %arg0, %c0_i32, %c0_i32_0 : i32, i32, i32
  }
  func.func @transform_8(%arg0: i32) -> (i32, i32, i32) {
    %c0_i32 = arith.constant 0 : i32
    %c0_i32_0 = arith.constant 0 : i32
    %c0_i32_1 = arith.constant 0 : i32
    return %arg0, %c0_i32, %c0_i32_0 : i32, i32, i32
  }
  func.func @transform_9(%arg0: i32) -> (i32, i32, i32) {
    %c0_i32 = arith.constant 0 : i32
    %c0_i32_0 = arith.constant 0 : i32
    %c0_i32_1 = arith.constant 0 : i32
    return %arg0, %c0_i32, %c0_i32_0 : i32, i32, i32
  }
  func.func @transform_10(%arg0: i32) -> (i32, i32, i32) {
    %c0_i32 = arith.constant 0 : i32
    %c0_i32_0 = arith.constant 0 : i32
    %c0_i32_1 = arith.constant 0 : i32
    return %arg0, %c0_i32, %c0_i32_0 : i32, i32, i32
  }
  func.func @transform_11(%arg0: i32) -> (i32, i32) {
    %c0_i32 = arith.constant 0 : i32
    %c0_i32_0 = arith.constant 0 : i32
    %c0_i32_1 = arith.constant 0 : i32
    return %c0_i32, %c0_i32_0 : i32, i32
  }
}

</mosaic_0001>

<llo_original>
// kernel: tpu_custom_call.1
$region0: #{tpu_custom_call.1}
  #allocation0 [shape = 'u32[]', space=smem, size = 0x4, offset = 0x4, fixed_abs, tag = 'smem constant byte address 0x4 - core index']
  #allocation1 [shape = 'u32[144,128]{1,0:T(1,128)}', space=vmem, size = 0x12000, scoped, tag = 'internal scratch']
  #allocation2 [shape = 'f32[128,128]{1,0:T(8,128)}', space=vmem, size = 0x10000, scoped, tag = 'scratch operand']
  #allocation3 [shape = 's32[1]{0}', space=sflag, size = 0x4, scoped, tag = 'scoped memory for tpu_custom_call.1']
  #allocation4 [shape = 'u8[1024]{0}', space=smem, size = 0x400, scoped, tag = 'prefetched SMEM operand 0']
  #allocation5 [shape = 'u8[1024]{0}', space=smem, size = 0x400, scoped, tag = 'prefetched SMEM operand 1']
  #allocation6 [shape = 'u8[1024]{0}', space=smem, size = 0x400, scoped, tag = 'prefetched SMEM operand 2']
  %s0 = inlined_call_operand.hbm [shape: s32[256], index: 0, kind: input, shape index: {}]
  %s1 = inlined_call_operand.hbm [shape: s32[256], index: 1, kind: input, shape index: {}]
  %s2 = inlined_call_operand.hbm [shape: s32[256], index: 2, kind: input, shape index: {}]
  %s3 = inlined_call_operand.hbm [shape: f32[128,128], index: 3, kind: input, shape index: {}]
  %s4 = inlined_call_operand.hbm [shape: f32[3,8,128], index: 4, kind: input, shape index: {}]
  %s5 = inlined_call_operand.hbm [shape: bf16[3,128,256], index: 5, kind: input, shape index: {}]
  %s6 = inlined_call_operand.vmem [shape: f32[3,1,256], index: 6, kind: input, shape index: {}]
  %s7 = inlined_call_operand.hbm [shape: bf16[3,256,128], index: 7, kind: input, shape index: {}]
  %s8 = inlined_call_operand.vmem [shape: f32[3,1,128], index: 8, kind: input, shape index: {}]
  %s9 = inlined_call_operand.vmem [shape: f32[3,1,128], index: 9, kind: input, shape index: {}]
  %s10 = inlined_call_operand.vmem [shape: f32[3,1,128], index: 10, kind: input, shape index: {}]
  %s11 = inlined_call_operand.hbm [shape: f32[128,128], index: 11, kind: output, shape index: {}]
  %s12 = sld [smem:[#allocation0]]
  $region92: #{tpu_custom_call.1} parent=0
    _
  %s14 = ssub.s32 1, %s12
  %s15 = scalar_select 0, %s14, %s12
  %17 = dma.hbm_to_smem %s0, 32, [#allocation4], [#allocation3]
  %19 = dma.hbm_to_smem %s1, 32, [#allocation5], [#allocation3]
  %21 = dma.hbm_to_smem %s2, 32, [#allocation6], [#allocation3]
  %22 = dma.done [#allocation3], 96
  %23 = sfence
  $region1: #{tpu_custom_call.1} parent=0
    #allocation7 [shape = 'u8[65536]{0}', space=vmem, size = 0x10000, scoped, tag = 'input window, operand 3, single buffered']
    #allocation8 [shape = 's32[2]{0}', space=sflag, size = 0x8, scoped, tag = 'scoped memory for tpu_custom_call.1']
    #allocation9 [shape = 's32[2]{0}', space=sflag, size = 0x8, scoped, tag = 'scoped memory for tpu_custom_call.1']
    #allocation10 [shape = 'u8[8192]{0}', space=vmem, size = 0x2000, scoped, tag = 'input window, operand 4']
    #allocation11 [shape = 's32[2]{0}', space=sflag, size = 0x8, scoped, tag = 'scoped memory for tpu_custom_call.1']
    #allocation12 [shape = 'u8[131072]{0}', space=vmem, size = 0x20000, scoped, tag = 'input window, operand 5']
    #allocation13 [shape = 'u8[131072]{0}', space=vmem, size = 0x20000, scoped, tag = 'input window, operand 7']
    #allocation14 [shape = 's32[2]{0}', space=sflag, size = 0x8, scoped, tag = 'scoped memory for tpu_custom_call.1']
    #allocation15 [shape = 'u8[65536]{0}', space=vmem, size = 0x10000, scoped, tag = 'output window, operand 0, single buffered']
    %24 = vsyncpa [#allocation8], 0
    %25 = vsyncpa [#allocation11], 0
    %s26 = scalar_lea.sflag [#allocation11], 1
    %27 = vsyncpa %s26, 0
    %28 = vsyncpa [#allocation14], 0
    %s29 = scalar_lea.sflag [#allocation14], 1
    %30 = vsyncpa %s29, 0
    %31 = vsyncpa [#allocation9], 0
    loop: start=0, step=1, limit=5
    $region2: #{tpu_custom_call.1} parent=1 // loop_pre_header
      _
    $region3: #{tpu_custom_call.1} parent=1 // loop_header
      %s33 = sphi 0, %s37
      %p34 = scmp.ge.s32.totalorder %s33, 5
      %s41 = sphi 0, %s41
      %s43 = sphi 0, %s41
      %s44 = sphi 0, %s43
      %s58 = sphi 0, %s44
      %s64 = sphi 0, %s66
      %s67 = sphi 0, %s64
      %s68 = sphi 0, %s67
      %s84 = sphi 0, %s68
      %s90 = sphi 0, %s92
      %s93 = sphi 0, %s90
      %s94 = sphi 0, %s93
      %s110 = sphi 0, %s94
      %s116 = sphi 0, %s118
      %s119 = sphi 0, %s116
      %s120 = sphi 0, %s119
      %s136 = sphi 0, %s120
      %s142 = sphi 0, %s144
      %s145 = sphi 0, %s142
      %s146 = sphi 0, %s145
      %s162 = sphi 0, %s146
      %s168 = sphi 0, %s170
      %s171 = sphi 0, %s168
      %s172 = sphi 0, %s171
      %s188 = sphi 0, %s172
      %s194 = sphi 0, %s196
      %s197 = sphi 0, %s194
      %s198 = sphi 0, %s197
      %s214 = sphi 0, %s198
      %s220 = sphi 0, %s222
      %s223 = sphi 0, %s220
      %s224 = sphi 0, %s223
      %s240 = sphi 0, %s224
      %s244 = sphi 0, %s244
      %s246 = sphi 0, %s244
      %s247 = sphi 0, %s246
      %s261 = sphi 0, %s247
    $region4: #{tpu_custom_call.1} parent=1 // loop_header_branch
      %36 = sbr.rel (%p34) target = $region8
    $region5: #{tpu_custom_call.1} parent=1 // loop_body
      %s38 = ssub.s32 %s33, 1
      %s39 = ssub.s32 %s33, 2
      %s40 = sadd.s32 %s33, 1
      %s42 = sadd.s32 %s41, 1
      %p45 = scmp.eq.s32.totalorder %s33, 2
      %p46 = scmp.ne.s32.totalorder %s41, %s43
      %p47 = scmp.eq.s32.totalorder %s33, 0
      %p48 = por %p46, %p47
      %p49 = scmp.ne.s32.totalorder %s41, %s43
      %p50 = scmp.eq.s32.totalorder %s38, 2
      %p51 = por %p49, %p50
      %p52 = scmp.ne.s32.totalorder %s43, %s44
      %p53 = scmp.eq.s32.totalorder %s38, 0
      %p54 = por %p52, %p53
      %p55 = scmp.ne.s32.totalorder %s43, %s44
      %p56 = scmp.eq.s32.totalorder %s39, 2
      %p57 = por %p55, %p56
      %p59 = scmp.ne.s32.totalorder %s44, %s58
      %p60 = scmp.eq.s32.totalorder %s39, 0
      %p61 = por %p59, %p60
      %s62 = ssub.s32 %s33, %s40
      %p63 = scmp.eq.s32.totalorder %s62, 0
      %s65 = sadd.s32 %s64, 1
      %s66 = scalar_select %p63, %s64, %s65
      %p69 = pneg %p63
      %p70 = scmp.eq.s32.totalorder %s33, 2
      %p71 = por %p69, %p70
      %p72 = scmp.ne.s32.totalorder %s64, %s67
      %p73 = scmp.eq.s32.totalorder %s33, 0
      %p74 = por %p72, %p73
      %p75 = scmp.ne.s32.totalorder %s64, %s67
      %p76 = scmp.eq.s32.totalorder %s38, 2
      %p77 = por %p75, %p76
      %p78 = scmp.ne.s32.totalorder %s67, %s68
      %p79 = scmp.eq.s32.totalorder %s38, 0
      %p80 = por %p78, %p79
      %p81 = scmp.ne.s32.totalorder %s67, %s68
      %p82 = scmp.eq.s32.totalorder %s39, 2
      %p83 = por %p81, %p82
      %p85 = scmp.ne.s32.totalorder %s68, %s84
      %p86 = scmp.eq.s32.totalorder %s39, 0
      %p87 = por %p85, %p86
      %s88 = ssub.s32 %s33, %s40
      %p89 = scmp.eq.s32.totalorder %s88, 0
      %s91 = sadd.s32 %s90, 1
      %s92 = scalar_select %p89, %s90, %s91
      %p95 = pneg %p89
      %p96 = scmp.eq.s32.totalorder %s33, 2
      %p97 = por %p95, %p96
      %p98 = scmp.ne.s32.totalorder %s90, %s93
      %p99 = scmp.eq.s32.totalorder %s33, 0
      %p100 = por %p98, %p99
      %p101 = scmp.ne.s32.totalorder %s90, %s93
      %p102 = scmp.eq.s32.totalorder %s38, 2
      %p103 = por %p101, %p102
      %p104 = scmp.ne.s32.totalorder %s93, %s94
      %p105 = scmp.eq.s32.totalorder %s38, 0
      %p106 = por %p104, %p105
      %p107 = scmp.ne.s32.totalorder %s93, %s94
      %p108 = scmp.eq.s32.totalorder %s39, 2
      %p109 = por %p107, %p108
      %p111 = scmp.ne.s32.totalorder %s94, %s110
      %p112 = scmp.eq.s32.totalorder %s39, 0
      %p113 = por %p111, %p112
      %s114 = ssub.s32 %s33, %s40
      %p115 = scmp.eq.s32.totalorder %s114, 0
      %s117 = sadd.s32 %s116, 1
      %s118 = scalar_select %p115, %s116, %s117
      %p121 = pneg %p115
      %p122 = scmp.eq.s32.totalorder %s33, 2
      %p123 = por %p121, %p122
      %p124 = scmp.ne.s32.totalorder %s116, %s119
      %p125 = scmp.eq.s32.totalorder %s33, 0
      %p126 = por %p124, %p125
      %p127 = scmp.ne.s32.totalorder %s116, %s119
      %p128 = scmp.eq.s32.totalorder %s38, 2
      %p129 = por %p127, %p128
      %p130 = scmp.ne.s32.totalorder %s119, %s120
      %p131 = scmp.eq.s32.totalorder %s38, 0
      %p132 = por %p130, %p131
      %p133 = scmp.ne.s32.totalorder %s119, %s120
      %p134 = scmp.eq.s32.totalorder %s39, 2
      %p135 = por %p133, %p134
      %p137 = scmp.ne.s32.totalorder %s120, %s136
      %p138 = scmp.eq.s32.totalorder %s39, 0
      %p139 = por %p137, %p138
      %s140 = ssub.s32 %s33, %s40
      %p141 = scmp.eq.s32.totalorder %s140, 0
      %s143 = sadd.s32 %s142, 1
      %s144 = scalar_select %p141, %s142, %s143
      %p147 = pneg %p141
      %p148 = scmp.eq.s32.totalorder %s33, 2
      %p149 = por %p147, %p148
      %p150 = scmp.ne.s32.totalorder %s142, %s145
      %p151 = scmp.eq.s32.totalorder %s33, 0
      %p152 = por %p150, %p151
      %p153 = scmp.ne.s32.totalorder %s142, %s145
      %p154 = scmp.eq.s32.totalorder %s38, 2
      %p155 = por %p153, %p154
      %p156 = scmp.ne.s32.totalorder %s145, %s146
      %p157 = scmp.eq.s32.totalorder %s38, 0
      %p158 = por %p156, %p157
      %p159 = scmp.ne.s32.totalorder %s145, %s146
      %p160 = scmp.eq.s32.totalorder %s39, 2
      %p161 = por %p159, %p160
      %p163 = scmp.ne.s32.totalorder %s146, %s162
      %p164 = scmp.eq.s32.totalorder %s39, 0
      %p165 = por %p163, %p164
      %s166 = ssub.s32 %s33, %s40
      %p167 = scmp.eq.s32.totalorder %s166, 0
      %s169 = sadd.s32 %s168, 1
      %s170 = scalar_select %p167, %s168, %s169
      %p173 = pneg %p167
      %p174 = scmp.eq.s32.totalorder %s33, 2
      %p175 = por %p173, %p174
      %p176 = scmp.ne.s32.totalorder %s168, %s171
      %p177 = scmp.eq.s32.totalorder %s33, 0
      %p178 = por %p176, %p177
      %p179 = scmp.ne.s32.totalorder %s168, %s171
      %p180 = scmp.eq.s32.totalorder %s38, 2
      %p181 = por %p179, %p180
      %p182 = scmp.ne.s32.totalorder %s171, %s172
      %p183 = scmp.eq.s32.totalorder %s38, 0
      %p184 = por %p182, %p183
      %p185 = scmp.ne.s32.totalorder %s171, %s172
      %p186 = scmp.eq.s32.totalorder %s39, 2
      %p187 = por %p185, %p186
      %p189 = scmp.ne.s32.totalorder %s172, %s188
      %p190 = scmp.eq.s32.totalorder %s39, 0
      %p191 = por %p189, %p190
      %s192 = ssub.s32 %s33, %s40
      %p193 = scmp.eq.s32.totalorder %s192, 0
      %s195 = sadd.s32 %s194, 1
      %s196 = scalar_select %p193, %s194, %s195
      %p199 = pneg %p193
      %p200 = scmp.eq.s32.totalorder %s33, 2
      %p201 = por %p199, %p200
      %p202 = scmp.ne.s32.totalorder %s194, %s197
      %p203 = scmp.eq.s32.totalorder %s33, 0
      %p204 = por %p202, %p203
      %p205 = scmp.ne.s32.totalorder %s194, %s197
      %p206 = scmp.eq.s32.totalorder %s38, 2
      %p207 = por %p205, %p206
      %p208 = scmp.ne.s32.totalorder %s197, %s198
      %p209 = scmp.eq.s32.totalorder %s38, 0
      %p210 = por %p208, %p209
      %p211 = scmp.ne.s32.totalorder %s197, %s198
      %p212 = scmp.eq.s32.totalorder %s39, 2
      %p213 = por %p211, %p212
      %p215 = scmp.ne.s32.totalorder %s198, %s214
      %p216 = scmp.eq.s32.totalorder %s39, 0
      %p217 = por %p215, %p216
      %s218 = ssub.s32 %s33, %s40
      %p219 = scmp.eq.s32.totalorder %s218, 0
      %s221 = sadd.s32 %s220, 1
      %s222 = scalar_select %p219, %s220, %s221
      %p225 = pneg %p219
      %p226 = scmp.eq.s32.totalorder %s33, 2
      %p227 = por %p225, %p226
      %p228 = scmp.ne.s32.totalorder %s220, %s223
      %p229 = scmp.eq.s32.totalorder %s33, 0
      %p230 = por %p228, %p229
      %p231 = scmp.ne.s32.totalorder %s220, %s223
      %p232 = scmp.eq.s32.totalorder %s38, 2
      %p233 = por %p231, %p232
      %p234 = scmp.ne.s32.totalorder %s223, %s224
      %p235 = scmp.eq.s32.totalorder %s38, 0
      %p236 = por %p234, %p235
      %p237 = scmp.ne.s32.totalorder %s223, %s224
      %p238 = scmp.eq.s32.totalorder %s39, 2
      %p239 = por %p237, %p238
      %p241 = scmp.ne.s32.totalorder %s224, %s240
      %p242 = scmp.eq.s32.totalorder %s39, 0
      %p243 = por %p241, %p242
      %s245 = sadd.s32 %s244, 1
      %p248 = scmp.eq.s32.totalorder %s33, 2
      %p249 = scmp.ne.s32.totalorder %s244, %s246
      %p250 = scmp.eq.s32.totalorder %s33, 0
      %p251 = por %p249, %p250
      %p252 = scmp.ne.s32.totalorder %s244, %s246
      %p253 = scmp.eq.s32.totalorder %s38, 2
      %p254 = por %p252, %p253
      %p255 = scmp.ne.s32.totalorder %s246, %s247
      %p256 = scmp.eq.s32.totalorder %s38, 0
      %p257 = por %p255, %p256
      %p258 = scmp.ne.s32.totalorder %s246, %s247
      %p259 = scmp.eq.s32.totalorder %s39, 2
      %p260 = por %p258, %p259
      %p262 = scmp.ne.s32.totalorder %s247, %s261
      %p263 = scmp.eq.s32.totalorder %s39, 0
      %p264 = por %p262, %p263
      %p265 = scmp.le.s32.totalorder 1, %s33
      %p266 = scmp.lt.s32.totalorder %s33, 4
      %p267 = pnand %p265, %p266
      %p268 = pneg %p267
      // Predicated region
      $region9: #{tpu_custom_call.1} parent=5 // pred_check
        _
      $region10: #{tpu_custom_call.1} parent=5 // pred_check_branch
        %270 = sbr.rel (%p267) target = $region12
      $region11: #{tpu_custom_call.1} parent=5 // pred_region
        %s271 = ssub.s32 %s33, 1
        // Predicated region
        $region13: #{tpu_custom_call.1} parent=11 // pred_check
          %p272 = pneg %p54
        $region14: #{tpu_custom_call.1} parent=11 // pred_check_branch
          %274 = sbr.rel (%p272) target = $region16
        $region15: #{tpu_custom_call.1} parent=11 // pred_region
          %s276 = ssub.s32 2048, 2048
          %277 = vsyncadd [#allocation8], %s276
          %s278 = sshll.u32 [#allocation7], 4
          %s279 = int_to_ptr.vmem [resolvable:$true] %s278
          %284 = dma.hbm_to_vmem [thread:$0]  %s3, 2048, %s279, [#allocation8], 128, 128, 8
        $region16: #{tpu_custom_call.1} parent=11 // pred_fallthru
          _
      $region12: #{tpu_custom_call.1} parent=5 // pred_fallthru
        _
      %p285 = scmp.lt.s32.totalorder %s33, 3
      // Predicated region
      $region17: #{tpu_custom_call.1} parent=5 // pred_check
        %p286 = pneg %p285
      $region18: #{tpu_custom_call.1} parent=5 // pred_check_branch
        %288 = sbr.rel (%p286) target = $region20
      $region19: #{tpu_custom_call.1} parent=5 // pred_region
        // Predicated region
        $region21: #{tpu_custom_call.1} parent=19 // pred_check
          %p289 = pneg %p74
        $region22: #{tpu_custom_call.1} parent=19 // pred_check_branch
          %291 = sbr.rel (%p289) target = $region24
        $region23: #{tpu_custom_call.1} parent=19 // pred_region
          %s292 = sand.u32 %s33, 1
          %s293 = scalar_lea.sflag [#allocation11], %s292
          %s294 = sand.u32 %s64, 1
          %s295 = smul.addr %s294, 8
          %s296 = scalar_lea.vmem [#allocation10], %s295
          %s298 = ssub.s32 128, 128
          %299 = vsyncadd %s293, %s298
          %s300 = smul.addr %s33, 128
          %s301 = scalar_lea.hbm %s4, %s300
          %s303 = sshll.u32 %s296, 4
          %s304 = int_to_ptr.vmem [resolvable:$true] %s303
          %306 = dma.hbm_to_vmem [thread:$0]  %s301, 128, %s304, %s293
        $region24: #{tpu_custom_call.1} parent=19 // pred_fallthru
          _
        // Predicated region
        $region25: #{tpu_custom_call.1} parent=19 // pred_check
          %p307 = pneg %p100
        $region26: #{tpu_custom_call.1} parent=19 // pred_check_branch
          %309 = sbr.rel (%p307) target = $region28
        $region27: #{tpu_custom_call.1} parent=19 // pred_region
          %s310 = sand.u32 %s33, 1
          %s311 = scalar_lea.sflag [#allocation11], %s310
          %s312 = sand.u32 %s90, 1
          %s313 = smul.addr %s312, 128
          %s314 = scalar_lea.vmem [#allocation12], %s313
          %s316 = ssub.s32 2048, 2048
          %317 = vsyncadd %s311, %s316
          %s318 = smul.addr %s33, 32
          %s319 = smul.addr %s318, 64
          %s320 = scalar_lea.hbm %s5, %s319
          %s321 = sshll.u32 %s314, 4
          %s322 = int_to_ptr.vmem [resolvable:$true] %s321
          %327 = dma.hbm_to_vmem [thread:$0]  %s320, 2048, %s322, %s311, 128, 128, 8
        $region28: #{tpu_custom_call.1} parent=19 // pred_fallthru
          _
        // Predicated region
        $region29: #{tpu_custom_call.1} parent=19 // pred_check
          %p328 = pneg %p126
        $region30: #{tpu_custom_call.1} parent=19 // pred_check_branch
          %330 = sbr.rel (%p328) target = $region32
        $region31: #{tpu_custom_call.1} parent=19 // pred_region
          %p331 = scmp.lt.s32.totalorder %s33, 2
          %s332 = scalar_select %p331, %s33, 2
          %s333 = smul.addr %s332, 2
          %s334 = scalar_lea.vmem %s6, %s333
        $region32: #{tpu_custom_call.1} parent=19 // pred_fallthru
          _
        // Predicated region
        $region33: #{tpu_custom_call.1} parent=19 // pred_check
          %p335 = pneg %p152
        $region34: #{tpu_custom_call.1} parent=19 // pred_check_branch
          %337 = sbr.rel (%p335) target = $region36
        $region35: #{tpu_custom_call.1} parent=19 // pred_region
          %s338 = sand.u32 %s142, 1
          %s339 = scalar_lea.sflag [#allocation14], %s338
          %s340 = sand.u32 %s142, 1
          %s341 = smul.addr %s340, 128
          %s342 = scalar_lea.vmem [#allocation13], %s341
          %s344 = ssub.s32 2048, 2048
          %345 = vsyncadd %s339, %s344
          %s346 = smul.addr %s33, 32
          %s347 = smul.addr %s346, 64
          %s348 = scalar_lea.hbm %s7, %s347
          %s349 = sshll.u32 %s342, 4
          %s350 = int_to_ptr.vmem [resolvable:$true] %s349
          %355 = dma.hbm_to_vmem [thread:$0]  %s348, 2048, %s350, %s339, 64, 64, 4
        $region36: #{tpu_custom_call.1} parent=19 // pred_fallthru
          _
        // Predicated region
        $region37: #{tpu_custom_call.1} parent=19 // pred_check
          %p356 = pneg %p178
        $region38: #{tpu_custom_call.1} parent=19 // pred_check_branch
          %358 = sbr.rel (%p356) target = $region40
        $region39: #{tpu_custom_call.1} parent=19 // pred_region
          %p359 = scmp.lt.s32.totalorder %s33, 2
          %s360 = scalar_select %p359, %s33, 2
          %s361 = scalar_lea.vmem %s8, %s360
        $region40: #{tpu_custom_call.1} parent=19 // pred_fallthru
          _
        // Predicated region
        $region41: #{tpu_custom_call.1} parent=19 // pred_check
          %p362 = pneg %p204
        $region42: #{tpu_custom_call.1} parent=19 // pred_check_branch
          %364 = sbr.rel (%p362) target = $region44
        $region43: #{tpu_custom_call.1} parent=19 // pred_region
          %p365 = scmp.lt.s32.totalorder %s33, 2
          %s366 = scalar_select %p365, %s33, 2
          %s367 = scalar_lea.vmem %s9, %s366
        $region44: #{tpu_custom_call.1} parent=19 // pred_fallthru
          _
        // Predicated region
        $region45: #{tpu_custom_call.1} parent=19 // pred_check
          %p368 = pneg %p230
        $region46: #{tpu_custom_call.1} parent=19 // pred_check_branch
          %370 = sbr.rel (%p368) target = $region48
        $region47: #{tpu_custom_call.1} parent=19 // pred_region
          %p371 = scmp.lt.s32.totalorder %s33, 2
          %s372 = scalar_select %p371, %s33, 2
          %s373 = scalar_lea.vmem %s10, %s372
        $region48: #{tpu_custom_call.1} parent=19 // pred_fallthru
          _
      $region20: #{tpu_custom_call.1} parent=5 // pred_fallthru
        _
      %p374 = scmp.le.s32.totalorder 1, %s33
      %p375 = scmp.lt.s32.totalorder %s33, 4
      %p376 = pnand %p374, %p375
      %p377 = pneg %p376
      // Predicated region
      $region49: #{tpu_custom_call.1} parent=5 // pred_check
        _
      $region50: #{tpu_custom_call.1} parent=5 // pred_check_branch
        %379 = sbr.rel (%p376) target = $region52
      $region51: #{tpu_custom_call.1} parent=5 // pred_region
        %s380 = ssub.s32 %s33, 1
        // Predicated region
        $region53: #{tpu_custom_call.1} parent=51 // pred_check
          %p381 = pneg %p54
        $region54: #{tpu_custom_call.1} parent=51 // pred_check_branch
          %383 = sbr.rel (%p381) target = $region56
        $region55: #{tpu_custom_call.1} parent=51 // pred_region
          %384 = dma.done [#allocation8], 2048
        $region56: #{tpu_custom_call.1} parent=51 // pred_fallthru
          _
        %s385 = sand.u32 %s38, 1
        %s386 = scalar_lea.sflag [#allocation11], %s385
        %s387 = sand.u32 %s67, 1
        %s388 = smul.addr %s387, 8
        %s389 = scalar_lea.vmem [#allocation10], %s388
        // Predicated region
        $region57: #{tpu_custom_call.1} parent=51 // pred_check
          %p390 = pneg %p80
        $region58: #{tpu_custom_call.1} parent=51 // pred_check_branch
          %392 = sbr.rel (%p390) target = $region60
        $region59: #{tpu_custom_call.1} parent=51 // pred_region
          %393 = dma.done %s386, 128
        $region60: #{tpu_custom_call.1} parent=51 // pred_fallthru
          _
        %s394 = sand.u32 %s38, 1
        %s395 = scalar_lea.sflag [#allocation11], %s394
        %s396 = sand.u32 %s93, 1
        %s397 = smul.addr %s396, 128
        %s398 = scalar_lea.vmem [#allocation12], %s397
        // Predicated region
        $region61: #{tpu_custom_call.1} parent=51 // pred_check
          %p399 = pneg %p106
        $region62: #{tpu_custom_call.1} parent=51 // pred_check_branch
          %401 = sbr.rel (%p399) target = $region64
        $region63: #{tpu_custom_call.1} parent=51 // pred_region
          %402 = dma.done %s395, 2048
        $region64: #{tpu_custom_call.1} parent=51 // pred_fallthru
          _
        %s403 = sand.u32 %s145, 1
        %s404 = scalar_lea.sflag [#allocation14], %s403
        %s405 = sand.u32 %s145, 1
        %s406 = smul.addr %s405, 128
        %s407 = scalar_lea.vmem [#allocation13], %s406
        // Predicated region
        $region65: #{tpu_custom_call.1} parent=51 // pred_check
          %p408 = pneg %p158
        $region66: #{tpu_custom_call.1} parent=51 // pred_check_branch
          %410 = sbr.rel (%p408) target = $region68
        $region67: #{tpu_custom_call.1} parent=51 // pred_region
          %411 = dma.done %s404, 2048
        $region68: #{tpu_custom_call.1} parent=51 // pred_fallthru
          _
        %p412 = pneg %p54
        %p413 = pneg %p51
        %s414 = sand.u32 %s38, 1
        %s415 = scalar_lea.sflag [#allocation11], %s414
        %s416 = sand.u32 %s67, 1
        %s417 = smul.addr %s416, 8
        %s418 = scalar_lea.vmem [#allocation10], %s417
        %p419 = pneg %p80
        %p420 = pneg %p77
        %s421 = sand.u32 %s38, 1
        %s422 = scalar_lea.sflag [#allocation11], %s421
        %s423 = sand.u32 %s93, 1
        %s424 = smul.addr %s423, 128
        %s425 = scalar_lea.vmem [#allocation12], %s424
        %p426 = pneg %p106
        %p427 = pneg %p103
        %p428 = scmp.lt.s32.totalorder %s38, 2
        %s429 = scalar_select %p428, %s38, 2
        %s430 = smul.addr %s429, 2
        %s431 = scalar_lea.vmem %s6, %s430
        %p432 = pneg %p132
        %p433 = pneg %p129
        %s434 = sand.u32 %s145, 1
        %s435 = scalar_lea.sflag [#allocation14], %s434
        %s436 = sand.u32 %s145, 1
        %s437 = smul.addr %s436, 128
        %s438 = scalar_lea.vmem [#allocation13], %s437
        %p439 = pneg %p158
        %p440 = pneg %p155
        %p441 = scmp.lt.s32.totalorder %s38, 2
        %s442 = scalar_select %p441, %s38, 2
        %s443 = scalar_lea.vmem %s8, %s442
        %p444 = pneg %p184
        %p445 = pneg %p181
        %p446 = scmp.lt.s32.totalorder %s38, 2
        %s447 = scalar_select %p446, %s38, 2
        %s448 = scalar_lea.vmem %s9, %s447
        %p449 = pneg %p210
        %p450 = pneg %p207
        %p451 = scmp.lt.s32.totalorder %s38, 2
        %s452 = scalar_select %p451, %s38, 2
        %s453 = scalar_lea.vmem %s10, %s452
        %p454 = pneg %p236
        %p455 = pneg %p233
        %p456 = pneg %p257
        %p457 = pneg %p254
        %p458 = scmp.lt.s32.totalorder %s38, 2
        %s459 = scalar_select %p458, %s38, 2
        %s460 = smul.addr %s459, 2
        %s461 = scalar_lea.vmem %s6, %s460
        %p462 = scmp.lt.s32.totalorder %s38, 2
        %s463 = scalar_select %p462, %s38, 2
        %s464 = scalar_lea.vmem %s8, %s463
        %p465 = scmp.lt.s32.totalorder %s38, 2
        %s466 = scalar_select %p465, %s38, 2
        %s467 = scalar_lea.vmem %s9, %s466
        %p468 = scmp.lt.s32.totalorder %s38, 2
        %s469 = scalar_select %p468, %s38, 2
        %s470 = scalar_lea.vmem %s10, %s469
        %p472 = scmp.eq.s32.totalorder %s38, 0
        // Predicated region
        $region69: #{tpu_custom_call.1} parent=51 // pred_check
          %p473 = pneg %p472
        $region70: #{tpu_custom_call.1} parent=51 // pred_check_branch
          %475 = sbr.rel (%p473) target = $region72
        $region71: #{tpu_custom_call.1} parent=51 // pred_region
          %v476 = vld [vmem:[#allocation7] sm:$0xff]
          %v477 = vld [vmem:[#allocation7 + $0x8] sm:$0xff]
          %v478 = vld [vmem:[#allocation7 + $0x10] sm:$0xff]
          %v479 = vld [vmem:[#allocation7 + $0x18] sm:$0xff]
          %v480 = vld [vmem:[#allocation7 + $0x20] sm:$0xff]
          %v481 = vld [vmem:[#allocation7 + $0x28] sm:$0xff]
          %v482 = vld [vmem:[#allocation7 + $0x30] sm:$0xff]
          %v483 = vld [vmem:[#allocation7 + $0x38] sm:$0xff]
          %v484 = vld [vmem:[#allocation7 + $0x40] sm:$0xff]
          %v485 = vld [vmem:[#allocation7 + $0x48] sm:$0xff]
          %v486 = vld [vmem:[#allocation7 + $0x50] sm:$0xff]
          %v487 = vld [vmem:[#allocation7 + $0x58] sm:$0xff]
          %v488 = vld [vmem:[#allocation7 + $0x60] sm:$0xff]
          %v489 = vld [vmem:[#allocation7 + $0x68] sm:$0xff]
          %v490 = vld [vmem:[#allocation7 + $0x70] sm:$0xff]
          %v491 = vld [vmem:[#allocation7 + $0x78] sm:$0xff]
          %492 = vst [vmem:[#allocation15] sm:$0xff] %v476
          %493 = vst [vmem:[#allocation15 + $0x8] sm:$0xff] %v477
          %494 = vst [vmem:[#allocation15 + $0x10] sm:$0xff] %v478
          %495 = vst [vmem:[#allocation15 + $0x18] sm:$0xff] %v479
          %496 = vst [vmem:[#allocation15 + $0x20] sm:$0xff] %v480
          %497 = vst [vmem:[#allocation15 + $0x28] sm:$0xff] %v481
          %498 = vst [vmem:[#allocation15 + $0x30] sm:$0xff] %v482
          %499 = vst [vmem:[#allocation15 + $0x38] sm:$0xff] %v483
          %500 = vst [vmem:[#allocation15 + $0x40] sm:$0xff] %v484
          %501 = vst [vmem:[#allocation15 + $0x48] sm:$0xff] %v485
          %502 = vst [vmem:[#allocation15 + $0x50] sm:$0xff] %v486
          %503 = vst [vmem:[#allocation15 + $0x58] sm:$0xff] %v487
          %504 = vst [vmem:[#allocation15 + $0x60] sm:$0xff] %v488
          %505 = vst [vmem:[#allocation15 + $0x68] sm:$0xff] %v489
          %506 = vst [vmem:[#allocation15 + $0x70] sm:$0xff] %v490
          %507 = vst [vmem:[#allocation15 + $0x78] sm:$0xff] %v491
        $region72: #{tpu_custom_call.1} parent=51 // pred_fallthru
          _
        %v508 = vld [vmem:[#allocation15] sm:$0xff]
        %v509 = vld [vmem:[#allocation15 + $0x8] sm:$0xff]
        %v510 = vld [vmem:[#allocation15 + $0x10] sm:$0xff]
        %v511 = vld [vmem:[#allocation15 + $0x18] sm:$0xff]
        %v512 = vld [vmem:[#allocation15 + $0x20] sm:$0xff]
        %v513 = vld [vmem:[#allocation15 + $0x28] sm:$0xff]
        %v514 = vld [vmem:[#allocation15 + $0x30] sm:$0xff]
        %v515 = vld [vmem:[#allocation15 + $0x38] sm:$0xff]
        %v516 = vld [vmem:[#allocation15 + $0x40] sm:$0xff]
        %v517 = vld [vmem:[#allocation15 + $0x48] sm:$0xff]
        %v518 = vld [vmem:[#allocation15 + $0x50] sm:$0xff]
        %v519 = vld [vmem:[#allocation15 + $0x58] sm:$0xff]
        %v520 = vld [vmem:[#allocation15 + $0x60] sm:$0xff]
        %v521 = vld [vmem:[#allocation15 + $0x68] sm:$0xff]
        %v522 = vld [vmem:[#allocation15 + $0x70] sm:$0xff]
        %v523 = vld [vmem:[#allocation15 + $0x78] sm:$0xff]
        %524 = vst [vmem:[#allocation2] sm:$0xff] %v508
        %525 = vst [vmem:[#allocation2 + $0x8] sm:$0xff] %v509
        %526 = vst [vmem:[#allocation2 + $0x10] sm:$0xff] %v510
        %527 = vst [vmem:[#allocation2 + $0x18] sm:$0xff] %v511
        %528 = vst [vmem:[#allocation2 + $0x20] sm:$0xff] %v512
        %529 = vst [vmem:[#allocation2 + $0x28] sm:$0xff] %v513
        %530 = vst [vmem:[#allocation2 + $0x30] sm:$0xff] %v514
        %531 = vst [vmem:[#allocation2 + $0x38] sm:$0xff] %v515
        %532 = vst [vmem:[#allocation2 + $0x40] sm:$0xff] %v516
        %533 = vst [vmem:[#allocation2 + $0x48] sm:$0xff] %v517
        %534 = vst [vmem:[#allocation2 + $0x50] sm:$0xff] %v518
        %535 = vst [vmem:[#allocation2 + $0x58] sm:$0xff] %v519
        %536 = vst [vmem:[#allocation2 + $0x60] sm:$0xff] %v520
        %537 = vst [vmem:[#allocation2 + $0x68] sm:$0xff] %v521
        %538 = vst [vmem:[#allocation2 + $0x70] sm:$0xff] %v522
        %539 = vst [vmem:[#allocation2 + $0x78] sm:$0xff] %v523
        loop: start=0, step=1, limit=256
        $region73: #{tpu_custom_call.1} parent=51 // loop_pre_header
          _
        $region74: #{tpu_custom_call.1} parent=51 // loop_header
          %s541 = sphi 0, %s545
          %p542 = scmp.ge.s32.totalorder %s541, 256
        $region75: #{tpu_custom_call.1} parent=51 // loop_header_branch
          %544 = sbr.rel (%p542) target = $region79
        $region76: #{tpu_custom_call.1} parent=51 // loop_body
          %s546 = sld [smem:[#allocation4 + %s541]]
          %s547 = sld [smem:[#allocation5 + %s541]]
          %s548 = sld [smem:[#allocation6 + %s541]]
          %s549 = scalar_lea.vmem [#allocation15], %s546
          %v550 = vld [vmem:[%s549] sm:$0x1]
          %s551 = scalar_lea.vmem %s389, %s548 [#allocation10]
          %v552 = vld [vmem:[%s551] sm:$0x1]
          %v553 = vadd.f32 %v550, %v552
          %v554 = vmax.f32 %v553, 0.0
          %s555 = scalar_lea.vmem [#allocation2], %s547
          %v556 = vld [vmem:[%s555] sm:$0x1]
          %v557 = vadd.f32 %v556, %v554
          %558 = vst [vmem:[%s555] sm:$0x1] %v557
        $region77: #{tpu_custom_call.1} parent=51 // loop_footer
          %s545 = sadd.s32 1, %s541
        $region78: #{tpu_custom_call.1} parent=51 // loop_footer_branch
          %540 = sbr.rel target = $region74
        $region79: #{tpu_custom_call.1} parent=51 // loop_exit
          _
        %v559 = vld [vmem:[#allocation2] sm:$0xff]
        %v560 = vld [vmem:[#allocation2 + $0x8] sm:$0xff]
        %v561 = vld [vmem:[#allocation2 + $0x10] sm:$0xff]
        %v562 = vld [vmem:[#allocation2 + $0x18] sm:$0xff]
        %v563 = vld [vmem:[#allocation2 + $0x20] sm:$0xff]
        %v564 = vld [vmem:[#allocation2 + $0x28] sm:$0xff]
        %v565 = vld [vmem:[#allocation2 + $0x30] sm:$0xff]
        %v566 = vld [vmem:[#allocation2 + $0x38] sm:$0xff]
        %v567 = vld [vmem:[#allocation2 + $0x40] sm:$0xff]
        %v568 = vld [vmem:[#allocation2 + $0x48] sm:$0xff]
        %v569 = vld [vmem:[#allocation2 + $0x50] sm:$0xff]
        %v570 = vld [vmem:[#allocation2 + $0x58] sm:$0xff]
        %v571 = vld [vmem:[#allocation2 + $0x60] sm:$0xff]
        %v572 = vld [vmem:[#allocation2 + $0x68] sm:$0xff]
        %v573 = vld [vmem:[#allocation2 + $0x70] sm:$0xff]
        %v574 = vld [vmem:[#allocation2 + $0x78] sm:$0xff]
        %v575 = vld [vmem:[#allocation15] sm:$0xff]
        %v576 = vld [vmem:[#allocation15 + $0x8] sm:$0xff]
        %v577 = vld [vmem:[#allocation15 + $0x10] sm:$0xff]
        %v578 = vld [vmem:[#allocation15 + $0x18] sm:$0xff]
        %v579 = vld [vmem:[#allocation15 + $0x20] sm:$0xff]
        %v580 = vld [vmem:[#allocation15 + $0x28] sm:$0xff]
        %v581 = vld [vmem:[#allocation15 + $0x30] sm:$0xff]
        %v582 = vld [vmem:[#allocation15 + $0x38] sm:$0xff]
        %v583 = vld [vmem:[#allocation15 + $0x40] sm:$0xff]
        %v584 = vld [vmem:[#allocation15 + $0x48] sm:$0xff]
        %v585 = vld [vmem:[#allocation15 + $0x50] sm:$0xff]
        %v586 = vld [vmem:[#allocation15 + $0x58] sm:$0xff]
        %v587 = vld [vmem:[#allocation15 + $0x60] sm:$0xff]
        %v588 = vld [vmem:[#allocation15 + $0x68] sm:$0xff]
        %v589 = vld [vmem:[#allocation15 + $0x70] sm:$0xff]
        %v590 = vld [vmem:[#allocation15 + $0x78] sm:$0xff]
        %v591 = vld [vmem:[%s398] sm:$0xff]
        %v592 = vld [vmem:[%s398 + $0x8] sm:$0xff]
        %v593 = vld [vmem:[%s398 + $0x10] sm:$0xff]
        %v594 = vld [vmem:[%s398 + $0x18] sm:$0xff]
        %v595 = vld [vmem:[%s398 + $0x20] sm:$0xff]
        %v596 = vld [vmem:[%s398 + $0x28] sm:$0xff]
        %v597 = vld [vmem:[%s398 + $0x30] sm:$0xff]
        %v598 = vld [vmem:[%s398 + $0x38] sm:$0xff]
        %v599 = vld [vmem:[%s398 + $0x40] sm:$0xff]
        %v600 = vld [vmem:[%s398 + $0x48] sm:$0xff]
        %v601 = vld [vmem:[%s398 + $0x50] sm:$0xff]
        %v602 = vld [vmem:[%s398 + $0x58] sm:$0xff]
        %v603 = vld [vmem:[%s398 + $0x60] sm:$0xff]
        %v604 = vld [vmem:[%s398 + $0x68] sm:$0xff]
        %v605 = vld [vmem:[%s398 + $0x70] sm:$0xff]
        %v606 = vld [vmem:[%s398 + $0x78] sm:$0xff]
        %v607 = vld [vmem:[%s461] sm:$0x3]
        %v608 = vld [vmem:[%s407] sm:$0xf]
        %v609 = vld [vmem:[%s407 + $0x4] sm:$0xf]
        %v610 = vld [vmem:[%s407 + $0x8] sm:$0xf]
        %v611 = vld [vmem:[%s407 + $0xc] sm:$0xf]
        %v612 = vld [vmem:[%s407 + $0x10] sm:$0xf]
        %v613 = vld [vmem:[%s407 + $0x14] sm:$0xf]
        %v614 = vld [vmem:[%s407 + $0x18] sm:$0xf]
        %v615 = vld [vmem:[%s407 + $0x1c] sm:$0xf]
        %v616 = vld [vmem:[%s407 + $0x20] sm:$0xf]
        %v617 = vld [vmem:[%s407 + $0x24] sm:$0xf]
        %v618 = vld [vmem:[%s407 + $0x28] sm:$0xf]
        %v619 = vld [vmem:[%s407 + $0x2c] sm:$0xf]
        %v620 = vld [vmem:[%s407 + $0x30] sm:$0xf]
        %v621 = vld [vmem:[%s407 + $0x34] sm:$0xf]
        %v622 = vld [vmem:[%s407 + $0x38] sm:$0xf]
        %v623 = vld [vmem:[%s407 + $0x3c] sm:$0xf]
        %v624 = vld [vmem:[%s407 + $0x40] sm:$0xf]
        %v625 = vld [vmem:[%s407 + $0x44] sm:$0xf]
        %v626 = vld [vmem:[%s407 + $0x48] sm:$0xf]
        %v627 = vld [vmem:[%s407 + $0x4c] sm:$0xf]
        %v628 = vld [vmem:[%s407 + $0x50] sm:$0xf]
        %v629 = vld [vmem:[%s407 + $0x54] sm:$0xf]
        %v630 = vld [vmem:[%s407 + $0x58] sm:$0xf]
        %v631 = vld [vmem:[%s407 + $0x5c] sm:$0xf]
        %v632 = vld [vmem:[%s407 + $0x60] sm:$0xf]
        %v633 = vld [vmem:[%s407 + $0x64] sm:$0xf]
        %v634 = vld [vmem:[%s407 + $0x68] sm:$0xf]
        %v635 = vld [vmem:[%s407 + $0x6c] sm:$0xf]
        %v636 = vld [vmem:[%s407 + $0x70] sm:$0xf]
        %v637 = vld [vmem:[%s407 + $0x74] sm:$0xf]
        %v638 = vld [vmem:[%s407 + $0x78] sm:$0xf]
        %v639 = vld [vmem:[%s407 + $0x7c] sm:$0xf]
        %v640 = vld [vmem:[%s464] sm:$0x1]
        %v641 = vld [vmem:[%s467] sm:$0x1]
        %v642 = vld [vmem:[%s470] sm:$0x1]
        %v643 = vpack.c.bf16 %v560, %v559
        %v644 = vpack.c.bf16 %v562, %v561
        %v645 = vpack.c.bf16 %v564, %v563
        %v646 = vpack.c.bf16 %v566, %v565
        %v647 = vpack.c.bf16 %v568, %v567
        %v648 = vpack.c.bf16 %v570, %v569
        %v649 = vpack.c.bf16 %v572, %v571
        %v650 = vpack.c.bf16 %v574, %v573
        %v652 = vlaneseq
        %v653 = vshrl.u32 %v652, 7
        %v654 = vsub.s32 0, %v653
        %v655 = vrot.slane %v607, %v654
        %v656 = vlaneseq
        %v657 = vshrl.u32 %v656, 7
        %v658 = vsub.s32 1, %v657
        %v659 = vrot.slane %v607, %v658
        %v678 = vunpack.c.l.b16 %v591
        %v679 = vunpack.c.h.b16 %v591
        %v680 = vunpack.c.l.b16 %v592
        %v681 = vunpack.c.h.b16 %v592
        %v682 = vunpack.c.l.b16 %v593
        %v683 = vunpack.c.h.b16 %v593
        %v684 = vunpack.c.l.b16 %v594
        %v685 = vunpack.c.h.b16 %v594
        %v686 = vunpack.c.l.b16 %v595
        %v687 = vunpack.c.h.b16 %v595
        %v688 = vunpack.c.l.b16 %v596
        %v689 = vunpack.c.h.b16 %v596
        %v690 = vunpack.c.l.b16 %v597
        %v691 = vunpack.c.h.b16 %v597
        %v692 = vunpack.c.l.b16 %v598
        %v693 = vunpack.c.h.b16 %v598
        %v694 = vunpack.c.l.b16 %v599
        %v695 = vunpack.c.h.b16 %v599
        %v696 = vunpack.c.l.b16 %v600
        %v697 = vunpack.c.h.b16 %v600
        %v698 = vunpack.c.l.b16 %v601
        %v699 = vunpack.c.h.b16 %v601
        %v700 = vunpack.c.l.b16 %v602
        %v701 = vunpack.c.h.b16 %v602
        %v702 = vunpack.c.l.b16 %v603
        %v703 = vunpack.c.h.b16 %v603
        %v704 = vunpack.c.l.b16 %v604
        %v705 = vunpack.c.h.b16 %v604
        %v706 = vunpack.c.l.b16 %v605
        %v707 = vunpack.c.h.b16 %v605
        %v708 = vunpack.c.l.b16 %v606
        %v709 = vunpack.c.h.b16 %v606
        %v710 = vpack.c.b16 %v680, %v678
        %v711 = vpack.c.b16 %v681, %v679
        %v712 = vpack.c.b16 %v684, %v682
        %v713 = vpack.c.b16 %v685, %v683
        %v714 = vpack.c.b16 %v688, %v686
        %v715 = vpack.c.b16 %v689, %v687
        %v716 = vpack.c.b16 %v692, %v690
        %v717 = vpack.c.b16 %v693, %v691
        %v718 = vpack.c.b16 %v696, %v694
        %v719 = vpack.c.b16 %v697, %v695
        %v720 = vpack.c.b16 %v700, %v698
        %v721 = vpack.c.b16 %v701, %v699
        %v722 = vpack.c.b16 %v704, %v702
        %v723 = vpack.c.b16 %v705, %v703
        %v724 = vpack.c.b16 %v708, %v706
        %v725 = vpack.c.b16 %v709, %v707
        %742 = vmatprep.subr.bf16.mxu0 %v725
        %743 = vmatpush1.bf16.msra.mxu0 %v724
        %744 = vmatprep.subr.bf16.mxu0 %v723
        %745 = vmatpush1.bf16.msra.mxu0 %v722
        %746 = vmatprep.subr.bf16.mxu0 %v721
        %747 = vmatpush1.bf16.msra.mxu0 %v720
        %748 = vmatprep.subr.bf16.mxu0 %v719
        %749 = vmatpush1.bf16.msra.mxu0 %v718
        %750 = vmatprep.subr.bf16.mxu0 %v717
        %751 = vmatpush1.bf16.msra.mxu0 %v716
        %752 = vmatprep.subr.bf16.mxu0 %v715
        %753 = vmatpush1.bf16.msra.mxu0 %v714
        %754 = vmatprep.subr.bf16.mxu0 %v713
        %755 = vmatpush1.bf16.msra.mxu0 %v712
        %756 = vmatprep.subr.bf16.mxu0 %v711
        %757 = vmatpush1.bf16.msra.mxu0 %v710
        %758 = vmatprep.subr.bf16.mxu0 0
        %759 = vmatpush2.bf16.msra.mxu0 0
        %760 = vmatprep.subr.bf16.mxu0 0
        %761 = vmatpush2.bf16.msra.mxu0 0
        %762 = vmatprep.subr.bf16.mxu0 0
        %763 = vmatpush2.bf16.msra.mxu0 0
        %764 = vmatprep.subr.bf16.mxu0 0
        %765 = vmatpush2.bf16.msra.mxu0 0
        %766 = vmatprep.subr.bf16.mxu0 0
        %767 = vmatpush2.bf16.msra.mxu0 0
        %768 = vmatprep.subr.bf16.mxu0 0
        %769 = vmatpush2.bf16.msra.mxu0 0
        %770 = vmatprep.subr.bf16.mxu0 0
        %771 = vmatpush2.bf16.msra.mxu0 0
        %772 = vmatprep.subr.bf16.mxu0 0
        %773 = vmatpush2.bf16.msra.mxu0 0
        %774 = vmatprep.mubr.bf16.mxu0 0
        %775 = vmatmul.mubr.bf16.gmra.mxu0 %v643
        %v776 = vpop.f32.mrf.mxu0
        %v777 = vadd.f32 %v655, %v776
        %v778 = vpop.f32.mrf.mxu0
        %v779 = vadd.f32 %v659, %v778
        %v780 = vpop.f32.mrf.mxu0
        %v781 = vadd.f32 %v655, %v780
        %v782 = vpop.f32.mrf.mxu0
        %v783 = vadd.f32 %v659, %v782
        %784 = vmatprep.mubr.bf16.mxu0 0
        %785 = vmatmul.mubr.bf16.gmra.mxu0 %v644
        %v786 = vpop.f32.mrf.mxu0
        %v787 = vadd.f32 %v655, %v786
        %v788 = vpop.f32.mrf.mxu0
        %v789 = vadd.f32 %v659, %v788
        %v790 = vpop.f32.mrf.mxu0
        %v791 = vadd.f32 %v655, %v790
        %v792 = vpop.f32.mrf.mxu0
        %v793 = vadd.f32 %v659, %v792
        %794 = vmatprep.mubr.bf16.mxu0 0
        %795 = vmatmul.mubr.bf16.gmra.mxu0 %v645
        %v796 = vpop.f32.mrf.mxu0
        %v797 = vadd.f32 %v655, %v796
        %v798 = vpop.f32.mrf.mxu0
        %v799 = vadd.f32 %v659, %v798
        %v800 = vpop.f32.mrf.mxu0
        %v801 = vadd.f32 %v655, %v800
        %v802 = vpop.f32.mrf.mxu0
        %v803 = vadd.f32 %v659, %v802
        %804 = vmatprep.mubr.bf16.mxu0 0
        %805 = vmatmul.mubr.bf16.gmra.mxu0 %v646
        %v806 = vpop.f32.mrf.mxu0
        %v807 = vadd.f32 %v655, %v806
        %v808 = vpop.f32.mrf.mxu0
        %v809 = vadd.f32 %v659, %v808
        %v810 = vpop.f32.mrf.mxu0
        %v811 = vadd.f32 %v655, %v810
        %v812 = vpop.f32.mrf.mxu0
        %v813 = vadd.f32 %v659, %v812
        %814 = vmatprep.mubr.bf16.mxu0 0
        %815 = vmatmul.mubr.bf16.gmra.mxu0 %v647
        %v816 = vpop.f32.mrf.mxu0
        %v817 = vadd.f32 %v655, %v816
        %v818 = vpop.f32.mrf.mxu0
        %v819 = vadd.f32 %v659, %v818
        %v820 = vpop.f32.mrf.mxu0
        %v821 = vadd.f32 %v655, %v820
        %v822 = vpop.f32.mrf.mxu0
        %v823 = vadd.f32 %v659, %v822
        %824 = vmatprep.mubr.bf16.mxu0 0
        %825 = vmatmul.mubr.bf16.gmra.mxu0 %v648
        %v826 = vpop.f32.mrf.mxu0
        %v827 = vadd.f32 %v655, %v826
        %v828 = vpop.f32.mrf.mxu0
        %v829 = vadd.f32 %v659, %v828
        %v830 = vpop.f32.mrf.mxu0
        %v831 = vadd.f32 %v655, %v830
        %v832 = vpop.f32.mrf.mxu0
        %v833 = vadd.f32 %v659, %v832
        %834 = vmatprep.mubr.bf16.mxu0 0
        %835 = vmatmul.mubr.bf16.gmra.mxu0 %v649
        %v836 = vpop.f32.mrf.mxu0
        %v837 = vadd.f32 %v655, %v836
        %v838 = vpop.f32.mrf.mxu0
        %v839 = vadd.f32 %v659, %v838
        %v840 = vpop.f32.mrf.mxu0
        %v841 = vadd.f32 %v655, %v840
        %v842 = vpop.f32.mrf.mxu0
        %v843 = vadd.f32 %v659, %v842
        %844 = vmatprep.mubr.bf16.mxu0 0
        %845 = vmatmul.mubr.bf16.gmra.mxu0 %v650
        %v846 = vpop.f32.mrf.mxu0
        %v847 = vadd.f32 %v655, %v846
        %v848 = vpop.f32.mrf.mxu0
        %v849 = vadd.f32 %v659, %v848
        %v850 = vpop.f32.mrf.mxu0
        %v851 = vadd.f32 %v655, %v850
        %v852 = vpop.f32.mrf.mxu0
        %v853 = vadd.f32 %v659, %v852
        %854 = vdwg.mxu0
        %v855 = vmax.f32 %v777, 0.0
        %v856 = vmax.f32 %v779, 0.0
        %v857 = vmax.f32 %v781, 0.0
        %v858 = vmax.f32 %v783, 0.0
        %v859 = vmax.f32 %v787, 0.0
        %v860 = vmax.f32 %v789, 0.0
        %v861 = vmax.f32 %v791, 0.0
        %v862 = vmax.f32 %v793, 0.0
        %v863 = vmax.f32 %v797, 0.0
        %v864 = vmax.f32 %v799, 0.0
        %v865 = vmax.f32 %v801, 0.0
        %v866 = vmax.f32 %v803, 0.0
        %v867 = vmax.f32 %v807, 0.0
        %v868 = vmax.f32 %v809, 0.0
        %v869 = vmax.f32 %v811, 0.0
        %v870 = vmax.f32 %v813, 0.0
        %v871 = vmax.f32 %v817, 0.0
        %v872 = vmax.f32 %v819, 0.0
        %v873 = vmax.f32 %v821, 0.0
        %v874 = vmax.f32 %v823, 0.0
        %v875 = vmax.f32 %v827, 0.0
        %v876 = vmax.f32 %v829, 0.0
        %v877 = vmax.f32 %v831, 0.0
        %v878 = vmax.f32 %v833, 0.0
        %v879 = vmax.f32 %v837, 0.0
        %v880 = vmax.f32 %v839, 0.0
        %v881 = vmax.f32 %v841, 0.0
        %v882 = vmax.f32 %v843, 0.0
        %v883 = vmax.f32 %v847, 0.0
        %v884 = vmax.f32 %v849, 0.0
        %v885 = vmax.f32 %v851, 0.0
        %v886 = vmax.f32 %v853, 0.0
        %v887 = vpack.c.bf16 %v857, %v855
        %v888 = vpack.c.bf16 %v858, %v856
        %v889 = vpack.c.bf16 %v861, %v859
        %v890 = vpack.c.bf16 %v862, %v860
        %v891 = vpack.c.bf16 %v865, %v863
        %v892 = vpack.c.bf16 %v866, %v864
        %v893 = vpack.c.bf16 %v869, %v867
        %v894 = vpack.c.bf16 %v870, %v868
        %v895 = vpack.c.bf16 %v873, %v871
        %v896 = vpack.c.bf16 %v874, %v872
        %v897 = vpack.c.bf16 %v877, %v875
        %v898 = vpack.c.bf16 %v878, %v876
        %v899 = vpack.c.bf16 %v881, %v879
        %v900 = vpack.c.bf16 %v882, %v880
        %v901 = vpack.c.bf16 %v885, %v883
        %v902 = vpack.c.bf16 %v886, %v884
        %v904 = vlaneseq
        %v905 = vshrl.u32 %v904, 7
        %v906 = vsub.s32 0, %v905
        %v907 = vrot.slane %v640, %v906
        %v941 = vunpack.c.l.b16 %v608
        %v942 = vunpack.c.l.b16 %v609
        %v943 = vunpack.c.l.b16 %v610
        %v944 = vunpack.c.l.b16 %v611
        %v945 = vunpack.c.l.b16 %v612
        %v946 = vunpack.c.l.b16 %v613
        %v947 = vunpack.c.l.b16 %v614
        %v948 = vunpack.c.l.b16 %v615
        %v949 = vunpack.c.l.b16 %v616
        %v950 = vunpack.c.l.b16 %v617
        %v951 = vunpack.c.l.b16 %v618
        %v952 = vunpack.c.l.b16 %v619
        %v953 = vunpack.c.l.b16 %v620
        %v954 = vunpack.c.l.b16 %v621
        %v955 = vunpack.c.l.b16 %v622
        %v956 = vunpack.c.l.b16 %v623
        %v957 = vunpack.c.l.b16 %v624
        %v958 = vunpack.c.l.b16 %v625
        %v959 = vunpack.c.l.b16 %v626
        %v960 = vunpack.c.l.b16 %v627
        %v961 = vunpack.c.l.b16 %v628
        %v962 = vunpack.c.l.b16 %v629
        %v963 = vunpack.c.l.b16 %v630
        %v964 = vunpack.c.l.b16 %v631
        %v965 = vunpack.c.l.b16 %v632
        %v966 = vunpack.c.l.b16 %v633
        %v967 = vunpack.c.l.b16 %v634
        %v968 = vunpack.c.l.b16 %v635
        %v969 = vunpack.c.l.b16 %v636
        %v970 = vunpack.c.l.b16 %v637
        %v971 = vunpack.c.l.b16 %v638
        %v972 = vunpack.c.l.b16 %v639
        %v973 = vpack.c.b16 %v942, %v941
        %v974 = vpack.c.b16 %v944, %v943
        %v975 = vpack.c.b16 %v946, %v945
        %v976 = vpack.c.b16 %v948, %v947
        %v977 = vpack.c.b16 %v950, %v949
        %v978 = vpack.c.b16 %v952, %v951
        %v979 = vpack.c.b16 %v954, %v953
        %v980 = vpack.c.b16 %v956, %v955
        %v981 = vpack.c.b16 %v958, %v957
        %v982 = vpack.c.b16 %v960, %v959
        %v983 = vpack.c.b16 %v962, %v961
        %v984 = vpack.c.b16 %v964, %v963
        %v985 = vpack.c.b16 %v966, %v965
        %v986 = vpack.c.b16 %v968, %v967
        %v987 = vpack.c.b16 %v970, %v969
        %v988 = vpack.c.b16 %v972, %v971
        %1005 = vmatprep.subr.bf16.mxu0 0
        %1006 = vmatpush1.bf16.msra.mxu0 %v980
        %1007 = vmatprep.subr.bf16.mxu0 0
        %1008 = vmatpush1.bf16.msra.mxu0 %v979
        %1009 = vmatprep.subr.bf16.mxu0 0
        %1010 = vmatpush1.bf16.msra.mxu0 %v978
        %1011 = vmatprep.subr.bf16.mxu0 0
        %1012 = vmatpush1.bf16.msra.mxu0 %v977
        %1013 = vmatprep.subr.bf16.mxu0 0
        %1014 = vmatpush1.bf16.msra.mxu0 %v976
        %1015 = vmatprep.subr.bf16.mxu0 0
        %1016 = vmatpush1.bf16.msra.mxu0 %v975
        %1017 = vmatprep.subr.bf16.mxu0 0
        %1018 = vmatpush1.bf16.msra.mxu0 %v974
        %1019 = vmatprep.subr.bf16.mxu0 0
        %1020 = vmatpush1.bf16.msra.mxu0 %v973
        %1021 = vmatprep.subr.bf16.mxu0 0
        %1022 = vmatpush2.bf16.msra.mxu0 %v988
        %1023 = vmatprep.subr.bf16.mxu0 0
        %1024 = vmatpush2.bf16.msra.mxu0 %v987
        %1025 = vmatprep.subr.bf16.mxu0 0
        %1026 = vmatpush2.bf16.msra.mxu0 %v986
        %1027 = vmatprep.subr.bf16.mxu0 0
        %1028 = vmatpush2.bf16.msra.mxu0 %v985
        %1029 = vmatprep.subr.bf16.mxu0 0
        %1030 = vmatpush2.bf16.msra.mxu0 %v984
        %1031 = vmatprep.subr.bf16.mxu0 0
        %1032 = vmatpush2.bf16.msra.mxu0 %v983
        %1033 = vmatprep.subr.bf16.mxu0 0
        %1034 = vmatpush2.bf16.msra.mxu0 %v982
        %1035 = vmatprep.subr.bf16.mxu0 0
        %1036 = vmatpush2.bf16.msra.mxu0 %v981
        %1037 = vmatprep.mubr.bf16.mxu0 %v888
        %1038 = vmatmul.mubr.bf16.gmra.mxu0 %v887
        %v1039 = vpop.f32.mrf.mxu0
        %v1040 = vadd.f32 %v907, %v1039
        %v1041 = vpop.f32.mrf.mxu0
        %v1042 = vpop.f32.mrf.mxu0
        %v1043 = vadd.f32 %v907, %v1042
        %v1044 = vpop.f32.mrf.mxu0
        %1045 = vmatprep.mubr.bf16.mxu0 %v890
        %1046 = vmatmul.mubr.bf16.gmra.mxu0 %v889
        %v1047 = vpop.f32.mrf.mxu0
        %v1048 = vadd.f32 %v907, %v1047
        %v1049 = vpop.f32.mrf.mxu0
        %v1050 = vpop.f32.mrf.mxu0
        %v1051 = vadd.f32 %v907, %v1050
        %v1052 = vpop.f32.mrf.mxu0
        %1053 = vmatprep.mubr.bf16.mxu0 %v892
        %1054 = vmatmul.mubr.bf16.gmra.mxu0 %v891
        %v1055 = vpop.f32.mrf.mxu0
        %v1056 = vadd.f32 %v907, %v1055
        %v1057 = vpop.f32.mrf.mxu0
        %v1058 = vpop.f32.mrf.mxu0
        %v1059 = vadd.f32 %v907, %v1058
        %v1060 = vpop.f32.mrf.mxu0
        %1061 = vmatprep.mubr.bf16.mxu0 %v894
        %1062 = vmatmul.mubr.bf16.gmra.mxu0 %v893
        %v1063 = vpop.f32.mrf.mxu0
        %v1064 = vadd.f32 %v907, %v1063
        %v1065 = vpop.f32.mrf.mxu0
        %v1066 = vpop.f32.mrf.mxu0
        %v1067 = vadd.f32 %v907, %v1066
        %v1068 = vpop.f32.mrf.mxu0
        %1069 = vmatprep.mubr.bf16.mxu0 %v896
        %1070 = vmatmul.mubr.bf16.gmra.mxu0 %v895
        %v1071 = vpop.f32.mrf.mxu0
        %v1072 = vadd.f32 %v907, %v1071
        %v1073 = vpop.f32.mrf.mxu0
        %v1074 = vpop.f32.mrf.mxu0
        %v1075 = vadd.f32 %v907, %v1074
        %v1076 = vpop.f32.mrf.mxu0
        %1077 = vmatprep.mubr.bf16.mxu0 %v898
        %1078 = vmatmul.mubr.bf16.gmra.mxu0 %v897
        %v1079 = vpop.f32.mrf.mxu0
        %v1080 = vadd.f32 %v907, %v1079
        %v1081 = vpop.f32.mrf.mxu0
        %v1082 = vpop.f32.mrf.mxu0
        %v1083 = vadd.f32 %v907, %v1082
        %v1084 = vpop.f32.mrf.mxu0
        %1085 = vmatprep.mubr.bf16.mxu0 %v900
        %1086 = vmatmul.mubr.bf16.gmra.mxu0 %v899
        %v1087 = vpop.f32.mrf.mxu0
        %v1088 = vadd.f32 %v907, %v1087
        %v1089 = vpop.f32.mrf.mxu0
        %v1090 = vpop.f32.mrf.mxu0
        %v1091 = vadd.f32 %v907, %v1090
        %v1092 = vpop.f32.mrf.mxu0
        %1093 = vmatprep.mubr.bf16.mxu0 %v902
        %1094 = vmatmul.mubr.bf16.gmra.mxu0 %v901
        %v1095 = vpop.f32.mrf.mxu0
        %v1096 = vadd.f32 %v907, %v1095
        %v1097 = vpop.f32.mrf.mxu0
        %v1098 = vpop.f32.mrf.mxu0
        %v1099 = vadd.f32 %v907, %v1098
        %v1100 = vpop.f32.mrf.mxu0
        %1101 = vdwg.mxu0
        %v1102 = vadd.f32 %v1040, %v1043
        %v1103 = vadd.f32 %v1102, %v1048
        %v1104 = vadd.f32 %v1103, %v1051
        %v1105 = vadd.f32 %v1104, %v1056
        %v1106 = vadd.f32 %v1105, %v1059
        %v1107 = vadd.f32 %v1106, %v1064
        %v1108 = vadd.f32 %v1107, %v1067
        %v1109 = vadd.f32 %v1108, %v1072
        %v1110 = vadd.f32 %v1109, %v1075
        %v1111 = vadd.f32 %v1110, %v1080
        %v1112 = vadd.f32 %v1111, %v1083
        %v1113 = vadd.f32 %v1112, %v1088
        %v1114 = vadd.f32 %v1113, %v1091
        %v1115 = vadd.f32 %v1114, %v1096
        %v1116 = vadd.f32 %v1115, %v1099
        %v1117 = vrot.slane %v1116, 4
        %v1118 = vadd.f32 %v1116, %v1117
        %v1119 = vrot.slane %v1118, 2
        %v1120 = vadd.f32 %v1118, %v1119
        %v1121 = vrot.slane %v1120, 1
        %v1122 = vadd.f32 %v1120, %v1121
        %v1123 = vmul.f32 %v1122, 0.0078125
        %v1124 = vsub.f32 %v1040, %v1123
        %v1125 = vsub.f32 %v1043, %v1123
        %v1126 = vsub.f32 %v1048, %v1123
        %v1127 = vsub.f32 %v1051, %v1123
        %v1128 = vsub.f32 %v1056, %v1123
        %v1129 = vsub.f32 %v1059, %v1123
        %v1130 = vsub.f32 %v1064, %v1123
        %v1131 = vsub.f32 %v1067, %v1123
        %v1132 = vsub.f32 %v1072, %v1123
        %v1133 = vsub.f32 %v1075, %v1123
        %v1134 = vsub.f32 %v1080, %v1123
        %v1135 = vsub.f32 %v1083, %v1123
        %v1136 = vsub.f32 %v1088, %v1123
        %v1137 = vsub.f32 %v1091, %v1123
        %v1138 = vsub.f32 %v1096, %v1123
        %v1139 = vsub.f32 %v1099, %v1123
        %v1140 = vmul.f32 %v1124, %v1124
        %v1141 = vmul.f32 %v1125, %v1125
        %v1142 = vmul.f32 %v1126, %v1126
        %v1143 = vmul.f32 %v1127, %v1127
        %v1144 = vmul.f32 %v1128, %v1128
        %v1145 = vmul.f32 %v1129, %v1129
        %v1146 = vmul.f32 %v1130, %v1130
        %v1147 = vmul.f32 %v1131, %v1131
        %v1148 = vmul.f32 %v1132, %v1132
        %v1149 = vmul.f32 %v1133, %v1133
        %v1150 = vmul.f32 %v1134, %v1134
        %v1151 = vmul.f32 %v1135, %v1135
        %v1152 = vmul.f32 %v1136, %v1136
        %v1153 = vmul.f32 %v1137, %v1137
        %v1154 = vmul.f32 %v1138, %v1138
        %v1155 = vmul.f32 %v1139, %v1139
        %v1156 = vadd.f32 %v1140, %v1141
        %v1157 = vadd.f32 %v1156, %v1142
        %v1158 = vadd.f32 %v1157, %v1143
        %v1159 = vadd.f32 %v1158, %v1144
        %v1160 = vadd.f32 %v1159, %v1145
        %v1161 = vadd.f32 %v1160, %v1146
        %v1162 = vadd.f32 %v1161, %v1147
        %v1163 = vadd.f32 %v1162, %v1148
        %v1164 = vadd.f32 %v1163, %v1149
        %v1165 = vadd.f32 %v1164, %v1150
        %v1166 = vadd.f32 %v1165, %v1151
        %v1167 = vadd.f32 %v1166, %v1152
        %v1168 = vadd.f32 %v1167, %v1153
        %v1169 = vadd.f32 %v1168, %v1154
        %v1170 = vadd.f32 %v1169, %v1155
        %v1171 = vrot.slane %v1170, 4
        %v1172 = vadd.f32 %v1170, %v1171
        %v1173 = vrot.slane %v1172, 2
        %v1174 = vadd.f32 %v1172, %v1173
        %v1175 = vrot.slane %v1174, 1
        %v1176 = vadd.f32 %v1174, %v1175
        %v1177 = vmul.f32 %v1176, 0.0078125
        %v1178 = vadd.f32 %v1177, 1e-05
        %v1179 = vrsqrt.pop %v1178
        %v1180 = vmul.f32 %v641, %v1179
        %v1182 = vlaneseq
        %v1183 = vshrl.u32 %v1182, 7
        %v1184 = vsub.s32 0, %v1183
        %v1185 = vrot.slane %v1180, %v1184
        %v1187 = vmul.f32 %v1124, %v1185
        %v1188 = vmul.f32 %v1125, %v1185
        %v1189 = vmul.f32 %v1126, %v1185
        %v1190 = vmul.f32 %v1127, %v1185
        %v1191 = vmul.f32 %v1128, %v1185
        %v1192 = vmul.f32 %v1129, %v1185
        %v1193 = vmul.f32 %v1130, %v1185
        %v1194 = vmul.f32 %v1131, %v1185
        %v1195 = vmul.f32 %v1132, %v1185
        %v1196 = vmul.f32 %v1133, %v1185
        %v1197 = vmul.f32 %v1134, %v1185
        %v1198 = vmul.f32 %v1135, %v1185
        %v1199 = vmul.f32 %v1136, %v1185
        %v1200 = vmul.f32 %v1137, %v1185
        %v1201 = vmul.f32 %v1138, %v1185
        %v1202 = vmul.f32 %v1139, %v1185
        %v1204 = vlaneseq
        %v1205 = vshrl.u32 %v1204, 7
        %v1206 = vsub.s32 0, %v1205
        %v1207 = vrot.slane %v642, %v1206
        %v1209 = vadd.f32 %v1187, %v1207
        %v1210 = vadd.f32 %v1188, %v1207
        %v1211 = vadd.f32 %v1189, %v1207
        %v1212 = vadd.f32 %v1190, %v1207
        %v1213 = vadd.f32 %v1191, %v1207
        %v1214 = vadd.f32 %v1192, %v1207
        %v1215 = vadd.f32 %v1193, %v1207
        %v1216 = vadd.f32 %v1194, %v1207
        %v1217 = vadd.f32 %v1195, %v1207
        %v1218 = vadd.f32 %v1196, %v1207
        %v1219 = vadd.f32 %v1197, %v1207
        %v1220 = vadd.f32 %v1198, %v1207
        %v1221 = vadd.f32 %v1199, %v1207
        %v1222 = vadd.f32 %v1200, %v1207
        %v1223 = vadd.f32 %v1201, %v1207
        %v1224 = vadd.f32 %v1202, %v1207
        %v1225 = vmax.f32 %v1209, 0.0
        %v1226 = vmax.f32 %v1210, 0.0
        %v1227 = vmax.f32 %v1211, 0.0
        %v1228 = vmax.f32 %v1212, 0.0
        %v1229 = vmax.f32 %v1213, 0.0
        %v1230 = vmax.f32 %v1214, 0.0
        %v1231 = vmax.f32 %v1215, 0.0
        %v1232 = vmax.f32 %v1216, 0.0
        %v1233 = vmax.f32 %v1217, 0.0
        %v1234 = vmax.f32 %v1218, 0.0
        %v1235 = vmax.f32 %v1219, 0.0
        %v1236 = vmax.f32 %v1220, 0.0
        %v1237 = vmax.f32 %v1221, 0.0
        %v1238 = vmax.f32 %v1222, 0.0
        %v1239 = vmax.f32 %v1223, 0.0
        %v1240 = vmax.f32 %v1224, 0.0
        %v1241 = vadd.f32 %v1225, %v575
        %v1242 = vadd.f32 %v1226, %v576
        %v1243 = vadd.f32 %v1227, %v577
        %v1244 = vadd.f32 %v1228, %v578
        %v1245 = vadd.f32 %v1229, %v579
        %v1246 = vadd.f32 %v1230, %v580
        %v1247 = vadd.f32 %v1231, %v581
        %v1248 = vadd.f32 %v1232, %v582
        %v1249 = vadd.f32 %v1233, %v583
        %v1250 = vadd.f32 %v1234, %v584
        %v1251 = vadd.f32 %v1235, %v585
        %v1252 = vadd.f32 %v1236, %v586
        %v1253 = vadd.f32 %v1237, %v587
        %v1254 = vadd.f32 %v1238, %v588
        %v1255 = vadd.f32 %v1239, %v589
        %v1256 = vadd.f32 %v1240, %v590
        %1257 = vst [vmem:[#allocation15] sm:$0xff] %v1241
        %1258 = vst [vmem:[#allocation15 + $0x8] sm:$0xff] %v1242
        %1259 = vst [vmem:[#allocation15 + $0x10] sm:$0xff] %v1243
        %1260 = vst [vmem:[#allocation15 + $0x18] sm:$0xff] %v1244
        %1261 = vst [vmem:[#allocation15 + $0x20] sm:$0xff] %v1245
        %1262 = vst [vmem:[#allocation15 + $0x28] sm:$0xff] %v1246
        %1263 = vst [vmem:[#allocation15 + $0x30] sm:$0xff] %v1247
        %1264 = vst [vmem:[#allocation15 + $0x38] sm:$0xff] %v1248
        %1265 = vst [vmem:[#allocation15 + $0x40] sm:$0xff] %v1249
        %1266 = vst [vmem:[#allocation15 + $0x48] sm:$0xff] %v1250
        %1267 = vst [vmem:[#allocation15 + $0x50] sm:$0xff] %v1251
        %1268 = vst [vmem:[#allocation15 + $0x58] sm:$0xff] %v1252
        %1269 = vst [vmem:[#allocation15 + $0x60] sm:$0xff] %v1253
        %1270 = vst [vmem:[#allocation15 + $0x68] sm:$0xff] %v1254
        %1271 = vst [vmem:[#allocation15 + $0x70] sm:$0xff] %v1255
        %1272 = vst [vmem:[#allocation15 + $0x78] sm:$0xff] %v1256
        // Predicated region
        $region80: #{tpu_custom_call.1} parent=51 // pred_check
          %p1273 = pneg %p254
        $region81: #{tpu_custom_call.1} parent=51 // pred_check_branch
          %1275 = sbr.rel (%p1273) target = $region83
        $region82: #{tpu_custom_call.1} parent=51 // pred_region
          %s1277 = ssub.s32 2048, 2048
          %1278 = vsyncadd [#allocation9], %s1277
          %s1279 = sshll.u32 [#allocation15], 4
          %s1280 = int_to_ptr.vmem [resolvable:$true] %s1279
          %1285 = dma.vmem_to_hbm [thread:$0]  %s1280, 2048, %s11, [#allocation9], 128, 128, 8
        $region83: #{tpu_custom_call.1} parent=51 // pred_fallthru
          _
        // Predicated region
        $region84: #{tpu_custom_call.1} parent=51 // pred_check
          %p1286 = pneg %p254
        $region85: #{tpu_custom_call.1} parent=51 // pred_check_branch
          %1288 = sbr.rel (%p1286) target = $region87
        $region86: #{tpu_custom_call.1} parent=51 // pred_region
          %1289 = dma.done [#allocation9], 2048
        $region87: #{tpu_custom_call.1} parent=51 // pred_fallthru
          _
      $region52: #{tpu_custom_call.1} parent=5 // pred_fallthru
        _
      %p1290 = scmp.le.s32.totalorder 2, %s33
      // Predicated region
      $region88: #{tpu_custom_call.1} parent=5 // pred_check
        %p1291 = pneg %p1290
      $region89: #{tpu_custom_call.1} parent=5 // pred_check_branch
        %1293 = sbr.rel (%p1291) target = $region91
      $region90: #{tpu_custom_call.1} parent=5 // pred_region
        %s1294 = ssub.s32 %s33, 2
      $region91: #{tpu_custom_call.1} parent=5 // pred_fallthru
        _
    $region6: #{tpu_custom_call.1} parent=1 // loop_footer
      %s37 = sadd.s32 1, %s33
    $region7: #{tpu_custom_call.1} parent=1 // loop_footer_branch
      %32 = sbr.rel target = $region3
    $region8: #{tpu_custom_call.1} parent=1 // loop_exit
      _
    %1295 = vsyncpa [#allocation8], 1
    %s1296 = scalar_lea.sflag [#allocation8], 1
    %1297 = vsyncpa %s1296, 1
    %1298 = vsyncpa [#allocation11], 1
    %s1299 = scalar_lea.sflag [#allocation11], 1
    %1300 = vsyncpa %s1299, 1
    %1301 = vsyncpa [#allocation14], 1
    %s1302 = scalar_lea.sflag [#allocation14], 1
    %1303 = vsyncpa %s1302, 1
    %1304 = vsyncpa [#allocation9], 1
    %s1305 = scalar_lea.sflag [#allocation9], 1
    %1306 = vsyncpa %s1305, 1

// kernel: tpu_custom_call.1
$region0: #{tpu_custom_call.1}
  #allocation0 [shape = 'u32[]', space=smem, size = 0x4, offset = 0x4, fixed_abs, tag = 'smem constant byte address 0x4 - core index']
  #allocation1 [shape = 'u32[144,128]{1,0:T(1,128)}', space=vmem, size = 0x12000, scoped, tag = 'internal scratch']
  #allocation2 [shape = 'f32[128,128]{1,0:T(8,128)}', space=vmem, size = 0x10000, scoped, tag = 'scratch operand']
  #allocation3 [shape = 's32[1]{0}', space=sflag, size = 0x4, scoped, tag = 'scoped memory for tpu_custom_call.1']
  #allocation4 [shape = 'u8[1024]{0}', space=smem, size = 0x400, scoped, tag = 'prefetched SMEM operand 0']
  #allocation5 [shape = 'u8[1024]{0}', space=smem, size = 0x400, scoped, tag = 'prefetched SMEM operand 1']
  #allocation6 [shape = 'u8[1024]{0}', space=smem, size = 0x400, scoped, tag = 'prefetched SMEM operand 2']
  %s0 = inlined_call_operand.hbm [shape: s32[256], index: 0, kind: input, shape index: {}]
  %s1 = inlined_call_operand.hbm [shape: s32[256], index: 1, kind: input, shape index: {}]
  %s2 = inlined_call_operand.hbm [shape: s32[256], index: 2, kind: input, shape index: {}]
  %s3 = inlined_call_operand.hbm [shape: f32[128,128], index: 3, kind: input, shape index: {}]
  %s4 = inlined_call_operand.hbm [shape: f32[3,8,128], index: 4, kind: input, shape index: {}]
  %s5 = inlined_call_operand.hbm [shape: bf16[3,128,256], index: 5, kind: input, shape index: {}]
  %s6 = inlined_call_operand.vmem [shape: f32[3,1,256], index: 6, kind: input, shape index: {}]
  %s7 = inlined_call_operand.hbm [shape: bf16[3,256,128], index: 7, kind: input, shape index: {}]
  %s8 = inlined_call_operand.vmem [shape: f32[3,1,128], index: 8, kind: input, shape index: {}]
  %s9 = inlined_call_operand.vmem [shape: f32[3,1,128], index: 9, kind: input, shape index: {}]
  %s10 = inlined_call_operand.vmem [shape: f32[3,1,128], index: 10, kind: input, shape index: {}]
  %s11 = inlined_call_operand.hbm [shape: f32[128,128], index: 11, kind: output, shape index: {}]
  %s12 = sld [smem:[#allocation0]]
  $region92: #{tpu_custom_call.1} parent=0
    _
  %s14 = ssub.s32 1, %s12
  %s15 = scalar_select 0, %s14, %s12
  %17 = dma.hbm_to_smem %s0, 32, [#allocation4], [#allocation3]
  %19 = dma.hbm_to_smem %s1, 32, [#allocation5], [#allocation3]
  %21 = dma.hbm_to_smem %s2, 32, [#allocation6], [#allocation3]
  %22 = dma.done [#allocation3], 96
  %23 = sfence
  $region1: #{tpu_custom_call.1} parent=0
    #allocation7 [shape = 'u8[65536]{0}', space=vmem, size = 0x10000, scoped, tag = 'input window, operand 3, single buffered']
    #allocation8 [shape = 's32[2]{0}', space=sflag, size = 0x8, scoped, tag = 'scoped memory for tpu_custom_call.1']
    #allocation9 [shape = 's32[2]{0}', space=sflag, size = 0x8, scoped, tag = 'scoped memory for tpu_custom_call.1']
    #allocation10 [shape = 'u8[8192]{0}', space=vmem, size = 0x2000, scoped, tag = 'input window, operand 4']
    #allocation11 [shape = 's32[2]{0}', space=sflag, size = 0x8, scoped, tag = 'scoped memory for tpu_custom_call.1']
    #allocation12 [shape = 'u8[131072]{0}', space=vmem, size = 0x20000, scoped, tag = 'input window, operand 5']
    #allocation13 [shape = 'u8[131072]{0}', space=vmem, size = 0x20000, scoped, tag = 'input window, operand 7']
    #allocation14 [shape = 's32[2]{0}', space=sflag, size = 0x8, scoped, tag = 'scoped memory for tpu_custom_call.1']
    #allocation15 [shape = 'u8[65536]{0}', space=vmem, size = 0x10000, scoped, tag = 'output window, operand 0, single buffered']
    %24 = vsyncpa [#allocation8], 0
    %25 = vsyncpa [#allocation11], 0
    %s26 = scalar_lea.sflag [#allocation11], 1
    %27 = vsyncpa %s26, 0
    %28 = vsyncpa [#allocation14], 0
    %s29 = scalar_lea.sflag [#allocation14], 1
    %30 = vsyncpa %s29, 0
    %31 = vsyncpa [#allocation9], 0
    loop: start=0, step=1, limit=5
    $region2: #{tpu_custom_call.1} parent=1 // loop_pre_header
      _
    $region3: #{tpu_custom_call.1} parent=1 // loop_header
      %s33 = sphi 0, %s37
      %p34 = scmp.ge.s32.totalorder %s33, 5
      %s41 = sphi 0, %s41
      %s43 = sphi 0, %s41
      %s44 = sphi 0, %s43
      %s58 = sphi 0, %s44
      %s64 = sphi 0, %s66
      %s67 = sphi 0, %s64
      %s68 = sphi 0, %s67
      %s84 = sphi 0, %s68
      %s90 = sphi 0, %s92
      %s93 = sphi 0, %s90
      %s94 = sphi 0, %s93
      %s110 = sphi 0, %s94
      %s116 = sphi 0, %s118
      %s119 = sphi 0, %s116
      %s120 = sphi 0, %s119
      %s136 = sphi 0, %s120
      %s142 = sphi 0, %s144
      %s145 = sphi 0, %s142
      %s146 = sphi 0, %s145
      %s162 = sphi 0, %s146
      %s168 = sphi 0, %s170
      %s171 = sphi 0, %s168
      %s172 = sphi 0, %s171
      %s188 = sphi 0, %s172
      %s194 = sphi 0, %s196
      %s197 = sphi 0, %s194
      %s198 = sphi 0, %s197
      %s214 = sphi 0, %s198
      %s220 = sphi 0, %s222
      %s223 = sphi 0, %s220
      %s224 = sphi 0, %s223
      %s240 = sphi 0, %s224
      %s244 = sphi 0, %s244
      %s246 = sphi 0, %s244
      %s247 = sphi 0, %s246
      %s261 = sphi 0, %s247
    $region4: #{tpu_custom_call.1} parent=1 // loop_header_branch
      %36 = sbr.rel (%p34) target = $region8
    $region5: #{tpu_custom_call.1} parent=1 // loop_body
      %s38 = ssub.s32 %s33, 1
      %s39 = ssub.s32 %s33, 2
      %s40 = sadd.s32 %s33, 1
      %s42 = sadd.s32 %s41, 1
      %p45 = scmp.eq.s32.totalorder %s33, 2
      %p46 = scmp.ne.s32.totalorder %s41, %s43
      %p47 = scmp.eq.s32.totalorder %s33, 0
      %p48 = por %p46, %p47
      %p49 = scmp.ne.s32.totalorder %s41, %s43
      %p50 = scmp.eq.s32.totalorder %s38, 2
      %p51 = por %p49, %p50
      %p52 = scmp.ne.s32.totalorder %s43, %s44
      %p53 = scmp.eq.s32.totalorder %s38, 0
      %p54 = por %p52, %p53
      %p55 = scmp.ne.s32.totalorder %s43, %s44
      %p56 = scmp.eq.s32.totalorder %s39, 2
      %p57 = por %p55, %p56
      %p59 = scmp.ne.s32.totalorder %s44, %s58
      %p60 = scmp.eq.s32.totalorder %s39, 0
      %p61 = por %p59, %p60
      %s62 = ssub.s32 %s33, %s40
      %p63 = scmp.eq.s32.totalorder %s62, 0
      %s65 = sadd.s32 %s64, 1
      %s66 = scalar_select %p63, %s64, %s65
      %p69 = pneg %p63
      %p70 = scmp.eq.s32.totalorder %s33, 2
      %p71 = por %p69, %p70
      %p72 = scmp.ne.s32.totalorder %s64, %s67
      %p73 = scmp.eq.s32.totalorder %s33, 0
      %p74 = por %p72, %p73
      %p75 = scmp.ne.s32.totalorder %s64, %s67
      %p76 = scmp.eq.s32.totalorder %s38, 2
      %p77 = por %p75, %p76
      %p78 = scmp.ne.s32.totalorder %s67, %s68
      %p79 = scmp.eq.s32.totalorder %s38, 0
      %p80 = por %p78, %p79
      %p81 = scmp.ne.s32.totalorder %s67, %s68
      %p82 = scmp.eq.s32.totalorder %s39, 2
      %p83 = por %p81, %p82
      %p85 = scmp.ne.s32.totalorder %s68, %s84
      %p86 = scmp.eq.s32.totalorder %s39, 0
      %p87 = por %p85, %p86
      %s88 = ssub.s32 %s33, %s40
      %p89 = scmp.eq.s32.totalorder %s88, 0
      %s91 = sadd.s32 %s90, 1
      %s92 = scalar_select %p89, %s90, %s91
      %p95 = pneg %p89
      %p96 = scmp.eq.s32.totalorder %s33, 2
      %p97 = por %p95, %p96
      %p98 = scmp.ne.s32.totalorder %s90, %s93
      %p99 = scmp.eq.s32.totalorder %s33, 0
      %p100 = por %p98, %p99
      %p101 = scmp.ne.s32.totalorder %s90, %s93
      %p102 = scmp.eq.s32.totalorder %s38, 2
      %p103 = por %p101, %p102
      %p104 = scmp.ne.s32.totalorder %s93, %s94
      %p105 = scmp.eq.s32.totalorder %s38, 0
      %p106 = por %p104, %p105
      %p107 = scmp.ne.s32.totalorder %s93, %s94
      %p108 = scmp.eq.s32.totalorder %s39, 2
      %p109 = por %p107, %p108
      %p111 = scmp.ne.s32.totalorder %s94, %s110
      %p112 = scmp.eq.s32.totalorder %s39, 0
      %p113 = por %p111, %p112
      %s114 = ssub.s32 %s33, %s40
      %p115 = scmp.eq.s32.totalorder %s114, 0
      %s117 = sadd.s32 %s116, 1
      %s118 = scalar_select %p115, %s116, %s117
      %p121 = pneg %p115
      %p122 = scmp.eq.s32.totalorder %s33, 2
      %p123 = por %p121, %p122
      %p124 = scmp.ne.s32.totalorder %s116, %s119
      %p125 = scmp.eq.s32.totalorder %s33, 0
      %p126 = por %p124, %p125
      %p127 = scmp.ne.s32.totalorder %s116, %s119
      %p128 = scmp.eq.s32.totalorder %s38, 2
      %p129 = por %p127, %p128
      %p130 = scmp.ne.s32.totalorder %s119, %s120
      %p131 = scmp.eq.s32.totalorder %s38, 0
      %p132 = por %p130, %p131
      %p133 = scmp.ne.s32.totalorder %s119, %s120
      %p134 = scmp.eq.s32.totalorder %s39, 2
      %p135 = por %p133, %p134
      %p137 = scmp.ne.s32.totalorder %s120, %s136
      %p138 = scmp.eq.s32.totalorder %s39, 0
      %p139 = por %p137, %p138
      %s140 = ssub.s32 %s33, %s40
      %p141 = scmp.eq.s32.totalorder %s140, 0
      %s143 = sadd.s32 %s142, 1
      %s144 = scalar_select %p141, %s142, %s143
      %p147 = pneg %p141
      %p148 = scmp.eq.s32.totalorder %s33, 2
      %p149 = por %p147, %p148
      %p150 = scmp.ne.s32.totalorder %s142, %s145
      %p151 = scmp.eq.s32.totalorder %s33, 0
      %p152 = por %p150, %p151
      %p153 = scmp.ne.s32.totalorder %s142, %s145
      %p154 = scmp.eq.s32.totalorder %s38, 2
      %p155 = por %p153, %p154
      %p156 = scmp.ne.s32.totalorder %s145, %s146
      %p157 = scmp.eq.s32.totalorder %s38, 0
      %p158 = por %p156, %p157
      %p159 = scmp.ne.s32.totalorder %s145, %s146
      %p160 = scmp.eq.s32.totalorder %s39, 2
      %p161 = por %p159, %p160
      %p163 = scmp.ne.s32.totalorder %s146, %s162
      %p164 = scmp.eq.s32.totalorder %s39, 0
      %p165 = por %p163, %p164
      %s166 = ssub.s32 %s33, %s40
      %p167 = scmp.eq.s32.totalorder %s166, 0
      %s169 = sadd.s32 %s168, 1
      %s170 = scalar_select %p167, %s168, %s169
      %p173 = pneg %p167
      %p174 = scmp.eq.s32.totalorder %s33, 2
      %p175 = por %p173, %p174
      %p176 = scmp.ne.s32.totalorder %s168, %s171
      %p177 = scmp.eq.s32.totalorder %s33, 0
      %p178 = por %p176, %p177
      %p179 = scmp.ne.s32.totalorder %s168, %s171
      %p180 = scmp.eq.s32.totalorder %s38, 2
      %p181 = por %p179, %p180
      %p182 = scmp.ne.s32.totalorder %s171, %s172
      %p183 = scmp.eq.s32.totalorder %s38, 0
      %p184 = por %p182, %p183
      %p185 = scmp.ne.s32.totalorder %s171, %s172
      %p186 = scmp.eq.s32.totalorder %s39, 2
      %p187 = por %p185, %p186
      %p189 = scmp.ne.s32.totalorder %s172, %s188
      %p190 = scmp.eq.s32.totalorder %s39, 0
      %p191 = por %p189, %p190
      %s192 = ssub.s32 %s33, %s40
      %p193 = scmp.eq.s32.totalorder %s192, 0
      %s195 = sadd.s32 %s194, 1
      %s196 = scalar_select %p193, %s194, %s195
      %p199 = pneg %p193
      %p200 = scmp.eq.s32.totalorder %s33, 2
      %p201 = por %p199, %p200
      %p202 = scmp.ne.s32.totalorder %s194, %s197
      %p203 = scmp.eq.s32.totalorder %s33, 0
      %p204 = por %p202, %p203
      %p205 = scmp.ne.s32.totalorder %s194, %s197
      %p206 = scmp.eq.s32.totalorder %s38, 2
      %p207 = por %p205, %p206
      %p208 = scmp.ne.s32.totalorder %s197, %s198
      %p209 = scmp.eq.s32.totalorder %s38, 0
      %p210 = por %p208, %p209
      %p211 = scmp.ne.s32.totalorder %s197, %s198
      %p212 = scmp.eq.s32.totalorder %s39, 2
      %p213 = por %p211, %p212
      %p215 = scmp.ne.s32.totalorder %s198, %s214
      %p216 = scmp.eq.s32.totalorder %s39, 0
      %p217 = por %p215, %p216
      %s218 = ssub.s32 %s33, %s40
      %p219 = scmp.eq.s32.totalorder %s218, 0
      %s221 = sadd.s32 %s220, 1
      %s222 = scalar_select %p219, %s220, %s221
      %p225 = pneg %p219
      %p226 = scmp.eq.s32.totalorder %s33, 2
      %p227 = por %p225, %p226
      %p228 = scmp.ne.s32.totalorder %s220, %s223
      %p229 = scmp.eq.s32.totalorder %s33, 0
      %p230 = por %p228, %p229
      %p231 = scmp.ne.s32.totalorder %s220, %s223
      %p232 = scmp.eq.s32.totalorder %s38, 2
      %p233 = por %p231, %p232
      %p234 = scmp.ne.s32.totalorder %s223, %s224
      %p235 = scmp.eq.s32.totalorder %s38, 0
      %p236 = por %p234, %p235
      %p237 = scmp.ne.s32.totalorder %s223, %s224
      %p238 = scmp.eq.s32.totalorder %s39, 2
      %p239 = por %p237, %p238
      %p241 = scmp.ne.s32.totalorder %s224, %s240
      %p242 = scmp.eq.s32.totalorder %s39, 0
      %p243 = por %p241, %p242
      %s245 = sadd.s32 %s244, 1
      %p248 = scmp.eq.s32.totalorder %s33, 2
      %p249 = scmp.ne.s32.totalorder %s244, %s246
      %p250 = scmp.eq.s32.totalorder %s33, 0
      %p251 = por %p249, %p250
      %p252 = scmp.ne.s32.totalorder %s244, %s246
      %p253 = scmp.eq.s32.totalorder %s38, 2
      %p254 = por %p252, %p253
      %p255 = scmp.ne.s32.totalorder %s246, %s247
      %p256 = scmp.eq.s32.totalorder %s38, 0
      %p257 = por %p255, %p256
      %p258 = scmp.ne.s32.totalorder %s246, %s247
      %p259 = scmp.eq.s32.totalorder %s39, 2
      %p260 = por %p258, %p259
      %p262 = scmp.ne.s32.totalorder %s247, %s261
      %p263 = scmp.eq.s32.totalorder %s39, 0
      %p264 = por %p262, %p263
      %p265 = scmp.le.s32.totalorder 1, %s33
      %p266 = scmp.lt.s32.totalorder %s33, 4
      %p267 = pnand %p265, %p266
      %p268 = pneg %p267
      // Predicated region
      $region9: #{tpu_custom_call.1} parent=5 // pred_check
        _
      $region10: #{tpu_custom_call.1} parent=5 // pred_check_branch
        %270 = sbr.rel (%p267) target = $region12
      $region11: #{tpu_custom_call.1} parent=5 // pred_region
        %s271 = ssub.s32 %s33, 1
        // Predicated region
        $region13: #{tpu_custom_call.1} parent=11 // pred_check
          %p272 = pneg %p54
        $region14: #{tpu_custom_call.1} parent=11 // pred_check_branch
          %274 = sbr.rel (%p272) target = $region16
        $region15: #{tpu_custom_call.1} parent=11 // pred_region
          %s276 = ssub.s32 2048, 2048
          %277 = vsyncadd [#allocation8], %s276
          %s278 = sshll.u32 [#allocation7], 4
          %s279 = int_to_ptr.vmem [resolvable:$true] %s278
          %284 = dma.hbm_to_vmem [thread:$0]  %s3, 2048, %s279, [#allocation8], 128, 128, 8
        $region16: #{tpu_custom_call.1} parent=11 // pred_fallthru
          _
      $region12: #{tpu_custom_call.1} parent=5 // pred_fallthru
        _
      %p285 = scmp.lt.s32.totalorder %s33, 3
      // Predicated region
      $region17: #{tpu_custom_call.1} parent=5 // pred_check
        %p286 = pneg %p285
      $region18: #{tpu_custom_call.1} parent=5 // pred_check_branch
        %288 = sbr.rel (%p286) target = $region20
      $region19: #{tpu_custom_call.1} parent=5 // pred_region
        // Predicated region
        $region21: #{tpu_custom_call.1} parent=19 // pred_check
          %p289 = pneg %p74
        $region22: #{tpu_custom_call.1} parent=19 // pred_check_branch
          %291 = sbr.rel (%p289) target = $region24
        $region23: #{tpu_custom_call.1} parent=19 // pred_region
          %s292 = sand.u32 %s33, 1
          %s293 = scalar_lea.sflag [#allocation11], %s292
          %s294 = sand.u32 %s64, 1
          %s295 = smul.addr %s294, 8
          %s296 = scalar_lea.vmem [#allocation10], %s295
          %s298 = ssub.s32 128, 128
          %299 = vsyncadd %s293, %s298
          %s300 = smul.addr %s33, 128
          %s301 = scalar_lea.hbm %s4, %s300
          %s303 = sshll.u32 %s296, 4
          %s304 = int_to_ptr.vmem [resolvable:$true] %s303
          %306 = dma.hbm_to_vmem [thread:$0]  %s301, 128, %s304, %s293
        $region24: #{tpu_custom_call.1} parent=19 // pred_fallthru
          _
        // Predicated region
        $region25: #{tpu_custom_call.1} parent=19 // pred_check
          %p307 = pneg %p100
        $region26: #{tpu_custom_call.1} parent=19 // pred_check_branch
          %309 = sbr.rel (%p307) target = $region28
        $region27: #{tpu_custom_call.1} parent=19 // pred_region
          %s310 = sand.u32 %s33, 1
          %s311 = scalar_lea.sflag [#allocation11], %s310
          %s312 = sand.u32 %s90, 1
          %s313 = smul.addr %s312, 128
          %s314 = scalar_lea.vmem [#allocation12], %s313
          %s316 = ssub.s32 2048, 2048
          %317 = vsyncadd %s311, %s316
          %s318 = smul.addr %s33, 32
          %s319 = smul.addr %s318, 64
          %s320 = scalar_lea.hbm %s5, %s319
          %s321 = sshll.u32 %s314, 4
          %s322 = int_to_ptr.vmem [resolvable:$true] %s321
          %327 = dma.hbm_to_vmem [thread:$0]  %s320, 2048, %s322, %s311, 128, 128, 8
        $region28: #{tpu_custom_call.1} parent=19 // pred_fallthru
          _
        // Predicated region
        $region29: #{tpu_custom_call.1} parent=19 // pred_check
          %p328 = pneg %p126
        $region30: #{tpu_custom_call.1} parent=19 // pred_check_branch
          %330 = sbr.rel (%p328) target = $region32
        $region31: #{tpu_custom_call.1} parent=19 // pred_region
          %p331 = scmp.lt.s32.totalorder %s33, 2
          %s332 = scalar_select %p331, %s33, 2
          %s333 = smul.addr %s332, 2
          %s334 = scalar_lea.vmem %s6, %s333
        $region32: #{tpu_custom_call.1} parent=19 // pred_fallthru
          _
        // Predicated region
        $region33: #{tpu_custom_call.1} parent=19 // pred_check
          %p335 = pneg %p152
        $region34: #{tpu_custom_call.1} parent=19 // pred_check_branch
          %337 = sbr.rel (%p335) target = $region36
        $region35: #{tpu_custom_call.1} parent=19 // pred_region
          %s338 = sand.u32 %s142, 1
          %s339 = scalar_lea.sflag [#allocation14], %s338
          %s340 = sand.u32 %s142, 1
          %s341 = smul.addr %s340, 128
          %s342 = scalar_lea.vmem [#allocation13], %s341
          %s344 = ssub.s32 2048, 2048
          %345 = vsyncadd %s339, %s344
          %s346 = smul.addr %s33, 32
          %s347 = smul.addr %s346, 64
          %s348 = scalar_lea.hbm %s7, %s347
          %s349 = sshll.u32 %s342, 4
          %s350 = int_to_ptr.vmem [resolvable:$true] %s349
          %355 = dma.hbm_to_vmem [thread:$0]  %s348, 2048, %s350, %s339, 64, 64, 4
        $region36: #{tpu_custom_call.1} parent=19 // pred_fallthru
          _
        // Predicated region
        $region37: #{tpu_custom_call.1} parent=19 // pred_check
          %p356 = pneg %p178
        $region38: #{tpu_custom_call.1} parent=19 // pred_check_branch
          %358 = sbr.rel (%p356) target = $region40
        $region39: #{tpu_custom_call.1} parent=19 // pred_region
          %p359 = scmp.lt.s32.totalorder %s33, 2
          %s360 = scalar_select %p359, %s33, 2
          %s361 = scalar_lea.vmem %s8, %s360
        $region40: #{tpu_custom_call.1} parent=19 // pred_fallthru
          _
        // Predicated region
        $region41: #{tpu_custom_call.1} parent=19 // pred_check
          %p362 = pneg %p204
        $region42: #{tpu_custom_call.1} parent=19 // pred_check_branch
          %364 = sbr.rel (%p362) target = $region44
        $region43: #{tpu_custom_call.1} parent=19 // pred_region
          %p365 = scmp.lt.s32.totalorder %s33, 2
          %s366 = scalar_select %p365, %s33, 2
          %s367 = scalar_lea.vmem %s9, %s366
        $region44: #{tpu_custom_call.1} parent=19 // pred_fallthru
          _
        // Predicated region
        $region45: #{tpu_custom_call.1} parent=19 // pred_check
          %p368 = pneg %p230
        $region46: #{tpu_custom_call.1} parent=19 // pred_check_branch
          %370 = sbr.rel (%p368) target = $region48
        $region47: #{tpu_custom_call.1} parent=19 // pred_region
          %p371 = scmp.lt.s32.totalorder %s33, 2
          %s372 = scalar_select %p371, %s33, 2
          %s373 = scalar_lea.vmem %s10, %s372
        $region48: #{tpu_custom_call.1} parent=19 // pred_fallthru
          _
      $region20: #{tpu_custom_call.1} parent=5 // pred_fallthru
        _
      %p374 = scmp.le.s32.totalorder 1, %s33
      %p375 = scmp.lt.s32.totalorder %s33, 4
      %p376 = pnand %p374, %p375
      %p377 = pneg %p376
      // Predicated region
      $region49: #{tpu_custom_call.1} parent=5 // pred_check
        _
      $region50: #{tpu_custom_call.1} parent=5 // pred_check_branch
        %379 = sbr.rel (%p376) target = $region52
      $region51: #{tpu_custom_call.1} parent=5 // pred_region
        %s380 = ssub.s32 %s33, 1
        // Predicated region
        $region53: #{tpu_custom_call.1} parent=51 // pred_check
          %p381 = pneg %p54
        $region54: #{tpu_custom_call.1} parent=51 // pred_check_branch
          %383 = sbr.rel (%p381) target = $region56
        $region55: #{tpu_custom_call.1} parent=51 // pred_region
          %384 = dma.done [#allocation8], 2048
        $region56: #{tpu_custom_call.1} parent=51 // pred_fallthru
          _
        %s385 = sand.u32 %s38, 1
        %s386 = scalar_lea.sflag [#allocation11], %s385
        %s387 = sand.u32 %s67, 1
        %s388 = smul.addr %s387, 8
        %s389 = scalar_lea.vmem [#allocation10], %s388
        // Predicated region
        $region57: #{tpu_custom_call.1} parent=51 // pred_check
          %p390 = pneg %p80
        $region58: #{tpu_custom_call.1} parent=51 // pred_check_branch
          %392 = sbr.rel (%p390) target = $region60
        $region59: #{tpu_custom_call.1} parent=51 // pred_region
          %393 = dma.done %s386, 128
        $region60: #{tpu_custom_call.1} parent=51 // pred_fallthru
          _
        %s394 = sand.u32 %s38, 1
        %s395 = scalar_lea.sflag [#allocation11], %s394
        %s396 = sand.u32 %s93, 1
        %s397 = smul.addr %s396, 128
        %s398 = scalar_lea.vmem [#allocation12], %s397
        // Predicated region
        $region61: #{tpu_custom_call.1} parent=51 // pred_check
          %p399 = pneg %p106
        $region62: #{tpu_custom_call.1} parent=51 // pred_check_branch
          %401 = sbr.rel (%p399) target = $region64
        $region63: #{tpu_custom_call.1} parent=51 // pred_region
          %402 = dma.done %s395, 2048
        $region64: #{tpu_custom_call.1} parent=51 // pred_fallthru
          _
        %s403 = sand.u32 %s145, 1
        %s404 = scalar_lea.sflag [#allocation14], %s403
        %s405 = sand.u32 %s145, 1
        %s406 = smul.addr %s405, 128
        %s407 = scalar_lea.vmem [#allocation13], %s406
        // Predicated region
        $region65: #{tpu_custom_call.1} parent=51 // pred_check
          %p408 = pneg %p158
        $region66: #{tpu_custom_call.1} parent=51 // pred_check_branch
          %410 = sbr.rel (%p408) target = $region68
        $region67: #{tpu_custom_call.1} parent=51 // pred_region
          %411 = dma.done %s404, 2048
        $region68: #{tpu_custom_call.1} parent=51 // pred_fallthru
          _
        %p412 = pneg %p54
        %p413 = pneg %p51
        %s414 = sand.u32 %s38, 1
        %s415 = scalar_lea.sflag [#allocation11], %s414
        %s416 = sand.u32 %s67, 1
        %s417 = smul.addr %s416, 8
        %s418 = scalar_lea.vmem [#allocation10], %s417
        %p419 = pneg %p80
        %p420 = pneg %p77
        %s421 = sand.u32 %s38, 1
        %s422 = scalar_lea.sflag [#allocation11], %s421
        %s423 = sand.u32 %s93, 1
        %s424 = smul.addr %s423, 128
        %s425 = scalar_lea.vmem [#allocation12], %s424
        %p426 = pneg %p106
        %p427 = pneg %p103
        %p428 = scmp.lt.s32.totalorder %s38, 2
        %s429 = scalar_select %p428, %s38, 2
        %s430 = smul.addr %s429, 2
        %s431 = scalar_lea.vmem %s6, %s430
        %p432 = pneg %p132
        %p433 = pneg %p129
        %s434 = sand.u32 %s145, 1
        %s435 = scalar_lea.sflag [#allocation14], %s434
        %s436 = sand.u32 %s145, 1
        %s437 = smul.addr %s436, 128
        %s438 = scalar_lea.vmem [#allocation13], %s437
        %p439 = pneg %p158
        %p440 = pneg %p155
        %p441 = scmp.lt.s32.totalorder %s38, 2
        %s442 = scalar_select %p441, %s38, 2
        %s443 = scalar_lea.vmem %s8, %s442
        %p444 = pneg %p184
        %p445 = pneg %p181
        %p446 = scmp.lt.s32.totalorder %s38, 2
        %s447 = scalar_select %p446, %s38, 2
        %s448 = scalar_lea.vmem %s9, %s447
        %p449 = pneg %p210
        %p450 = pneg %p207
        %p451 = scmp.lt.s32.totalorder %s38, 2
        %s452 = scalar_select %p451, %s38, 2
        %s453 = scalar_lea.vmem %s10, %s452
        %p454 = pneg %p236
        %p455 = pneg %p233
        %p456 = pneg %p257
        %p457 = pneg %p254
        %p458 = scmp.lt.s32.totalorder %s38, 2
        %s459 = scalar_select %p458, %s38, 2
        %s460 = smul.addr %s459, 2
        %s461 = scalar_lea.vmem %s6, %s460
        %p462 = scmp.lt.s32.totalorder %s38, 2
        %s463 = scalar_select %p462, %s38, 2
        %s464 = scalar_lea.vmem %s8, %s463
        %p465 = scmp.lt.s32.totalorder %s38, 2
        %s466 = scalar_select %p465, %s38, 2
        %s467 = scalar_lea.vmem %s9, %s466
        %p468 = scmp.lt.s32.totalorder %s38, 2
        %s469 = scalar_select %p468, %s38, 2
        %s470 = scalar_lea.vmem %s10, %s469
        %p472 = scmp.eq.s32.totalorder %s38, 0
        // Predicated region
        $region69: #{tpu_custom_call.1} parent=51 // pred_check
          %p473 = pneg %p472
        $region70: #{tpu_custom_call.1} parent=51 // pred_check_branch
          %475 = sbr.rel (%p473) target = $region72
        $region71: #{tpu_custom_call.1} parent=51 // pred_region
          %v476 = vld [vmem:[#allocation7] sm:$0xff]
          %v477 = vld [vmem:[#allocation7 + $0x8] sm:$0xff]
          %v478 = vld [vmem:[#allocation7 + $0x10] sm:$0xff]
          %v479 = vld [vmem:[#allocation7 + $0x18] sm:$0xff]
          %v480 = vld [vmem:[#allocation7 + $0x20] sm:$0xff]
          %v481 = vld [vmem:[#allocation7 + $0x28] sm:$0xff]
          %v482 = vld [vmem:[#allocation7 + $0x30] sm:$0xff]
          %v483 = vld [vmem:[#allocation7 + $0x38] sm:$0xff]
          %v484 = vld [vmem:[#allocation7 + $0x40] sm:$0xff]
          %v485 = vld [vmem:[#allocation7 + $0x48] sm:$0xff]
          %v486 = vld [vmem:[#allocation7 + $0x50] sm:$0xff]
          %v487 = vld [vmem:[#allocation7 + $0x58] sm:$0xff]
          %v488 = vld [vmem:[#allocation7 + $0x60] sm:$0xff]
          %v489 = vld [vmem:[#allocation7 + $0x68] sm:$0xff]
          %v490 = vld [vmem:[#allocation7 + $0x70] sm:$0xff]
          %v491 = vld [vmem:[#allocation7 + $0x78] sm:$0xff]
          %492 = vst [vmem:[#allocation15] sm:$0xff] %v476
          %493 = vst [vmem:[#allocation15 + $0x8] sm:$0xff] %v477
          %494 = vst [vmem:[#allocation15 + $0x10] sm:$0xff] %v478
          %495 = vst [vmem:[#allocation15 + $0x18] sm:$0xff] %v479
          %496 = vst [vmem:[#allocation15 + $0x20] sm:$0xff] %v480
          %497 = vst [vmem:[#allocation15 + $0x28] sm:$0xff] %v481
          %498 = vst [vmem:[#allocation15 + $0x30] sm:$0xff] %v482
          %499 = vst [vmem:[#allocation15 + $0x38] sm:$0xff] %v483
          %500 = vst [vmem:[#allocation15 + $0x40] sm:$0xff] %v484
          %501 = vst [vmem:[#allocation15 + $0x48] sm:$0xff] %v485
          %502 = vst [vmem:[#allocation15 + $0x50] sm:$0xff] %v486
          %503 = vst [vmem:[#allocation15 + $0x58] sm:$0xff] %v487
          %504 = vst [vmem:[#allocation15 + $0x60] sm:$0xff] %v488
          %505 = vst [vmem:[#allocation15 + $0x68] sm:$0xff] %v489
          %506 = vst [vmem:[#allocation15 + $0x70] sm:$0xff] %v490
          %507 = vst [vmem:[#allocation15 + $0x78] sm:$0xff] %v491
        $region72: #{tpu_custom_call.1} parent=51 // pred_fallthru
          _
        %v508 = vld [vmem:[#allocation15] sm:$0xff]
        %v509 = vld [vmem:[#allocation15 + $0x8] sm:$0xff]
        %v510 = vld [vmem:[#allocation15 + $0x10] sm:$0xff]
        %v511 = vld [vmem:[#allocation15 + $0x18] sm:$0xff]
        %v512 = vld [vmem:[#allocation15 + $0x20] sm:$0xff]
        %v513 = vld [vmem:[#allocation15 + $0x28] sm:$0xff]
        %v514 = vld [vmem:[#allocation15 + $0x30] sm:$0xff]
        %v515 = vld [vmem:[#allocation15 + $0x38] sm:$0xff]
        %v516 = vld [vmem:[#allocation15 + $0x40] sm:$0xff]
        %v517 = vld [vmem:[#allocation15 + $0x48] sm:$0xff]
        %v518 = vld [vmem:[#allocation15 + $0x50] sm:$0xff]
        %v519 = vld [vmem:[#allocation15 + $0x58] sm:$0xff]
        %v520 = vld [vmem:[#allocation15 + $0x60] sm:$0xff]
        %v521 = vld [vmem:[#allocation15 + $0x68] sm:$0xff]
        %v522 = vld [vmem:[#allocation15 + $0x70] sm:$0xff]
        %v523 = vld [vmem:[#allocation15 + $0x78] sm:$0xff]
        %524 = vst [vmem:[#allocation2] sm:$0xff] %v508
        %525 = vst [vmem:[#allocation2 + $0x8] sm:$0xff] %v509
        %526 = vst [vmem:[#allocation2 + $0x10] sm:$0xff] %v510
        %527 = vst [vmem:[#allocation2 + $0x18] sm:$0xff] %v511
        %528 = vst [vmem:[#allocation2 + $0x20] sm:$0xff] %v512
        %529 = vst [vmem:[#allocation2 + $0x28] sm:$0xff] %v513
        %530 = vst [vmem:[#allocation2 + $0x30] sm:$0xff] %v514
        %531 = vst [vmem:[#allocation2 + $0x38] sm:$0xff] %v515
        %532 = vst [vmem:[#allocation2 + $0x40] sm:$0xff] %v516
        %533 = vst [vmem:[#allocation2 + $0x48] sm:$0xff] %v517
        %534 = vst [vmem:[#allocation2 + $0x50] sm:$0xff] %v518
        %535 = vst [vmem:[#allocation2 + $0x58] sm:$0xff] %v519
        %536 = vst [vmem:[#allocation2 + $0x60] sm:$0xff] %v520
        %537 = vst [vmem:[#allocation2 + $0x68] sm:$0xff] %v521
        %538 = vst [vmem:[#allocation2 + $0x70] sm:$0xff] %v522
        %539 = vst [vmem:[#allocation2 + $0x78] sm:$0xff] %v523
        loop: start=0, step=1, limit=256
        $region73: #{tpu_custom_call.1} parent=51 // loop_pre_header
          _
        $region74: #{tpu_custom_call.1} parent=51 // loop_header
          %s541 = sphi 0, %s545
          %p542 = scmp.ge.s32.totalorder %s541, 256
        $region75: #{tpu_custom_call.1} parent=51 // loop_header_branch
          %544 = sbr.rel (%p542) target = $region79
        $region76: #{tpu_custom_call.1} parent=51 // loop_body
          %s546 = sld [smem:[#allocation4 + %s541]]
          %s547 = sld [smem:[#allocation5 + %s541]]
          %s548 = sld [smem:[#allocation6 + %s541]]
          %s549 = scalar_lea.vmem [#allocation15], %s546
          %v550 = vld [vmem:[%s549] sm:$0x1]
          %s551 = scalar_lea.vmem %s389, %s548 [#allocation10]
          %v552 = vld [vmem:[%s551] sm:$0x1]
          %v553 = vadd.f32 %v550, %v552
          %v554 = vmax.f32 %v553, 0.0
          %s555 = scalar_lea.vmem [#allocation2], %s547
          %v556 = vld [vmem:[%s555] sm:$0x1]
          %v557 = vadd.f32 %v556, %v554
          %558 = vst [vmem:[%s555] sm:$0x1] %v557
        $region77: #{tpu_custom_call.1} parent=51 // loop_footer
          %s545 = sadd.s32 1, %s541
        $region78: #{tpu_custom_call.1} parent=51 // loop_footer_branch
          %540 = sbr.rel target = $region74
        $region79: #{tpu_custom_call.1} parent=51 // loop_exit
          _
        %v559 = vld [vmem:[#allocation2] sm:$0xff]
        %v560 = vld [vmem:[#allocation2 + $0x8] sm:$0xff]
        %v561 = vld [vmem:[#allocation2 + $0x10] sm:$0xff]
        %v562 = vld [vmem:[#allocation2 + $0x18] sm:$0xff]
        %v563 = vld [vmem:[#allocation2 + $0x20] sm:$0xff]
        %v564 = vld [vmem:[#allocation2 + $0x28] sm:$0xff]
        %v565 = vld [vmem:[#allocation2 + $0x30] sm:$0xff]
        %v566 = vld [vmem:[#allocation2 + $0x38] sm:$0xff]
        %v567 = vld [vmem:[#allocation2 + $0x40] sm:$0xff]
        %v568 = vld [vmem:[#allocation2 + $0x48] sm:$0xff]
        %v569 = vld [vmem:[#allocation2 + $0x50] sm:$0xff]
        %v570 = vld [vmem:[#allocation2 + $0x58] sm:$0xff]
        %v571 = vld [vmem:[#allocation2 + $0x60] sm:$0xff]
        %v572 = vld [vmem:[#allocation2 + $0x68] sm:$0xff]
        %v573 = vld [vmem:[#allocation2 + $0x70] sm:$0xff]
        %v574 = vld [vmem:[#allocation2 + $0x78] sm:$0xff]
        %v575 = vld [vmem:[#allocation15] sm:$0xff]
        %v576 = vld [vmem:[#allocation15 + $0x8] sm:$0xff]
        %v577 = vld [vmem:[#allocation15 + $0x10] sm:$0xff]
        %v578 = vld [vmem:[#allocation15 + $0x18] sm:$0xff]
        %v579 = vld [vmem:[#allocation15 + $0x20] sm:$0xff]
        %v580 = vld [vmem:[#allocation15 + $0x28] sm:$0xff]
        %v581 = vld [vmem:[#allocation15 + $0x30] sm:$0xff]
        %v582 = vld [vmem:[#allocation15 + $0x38] sm:$0xff]
        %v583 = vld [vmem:[#allocation15 + $0x40] sm:$0xff]
        %v584 = vld [vmem:[#allocation15 + $0x48] sm:$0xff]
        %v585 = vld [vmem:[#allocation15 + $0x50] sm:$0xff]
        %v586 = vld [vmem:[#allocation15 + $0x58] sm:$0xff]
        %v587 = vld [vmem:[#allocation15 + $0x60] sm:$0xff]
        %v588 = vld [vmem:[#allocation15 + $0x68] sm:$0xff]
        %v589 = vld [vmem:[#allocation15 + $0x70] sm:$0xff]
        %v590 = vld [vmem:[#allocation15 + $0x78] sm:$0xff]
        %v591 = vld [vmem:[%s398] sm:$0xff]
        %v592 = vld [vmem:[%s398 + $0x8] sm:$0xff]
        %v593 = vld [vmem:[%s398 + $0x10] sm:$0xff]
        %v594 = vld [vmem:[%s398 + $0x18] sm:$0xff]
        %v595 = vld [vmem:[%s398 + $0x20] sm:$0xff]
        %v596 = vld [vmem:[%s398 + $0x28] sm:$0xff]
        %v597 = vld [vmem:[%s398 + $0x30] sm:$0xff]
        %v598 = vld [vmem:[%s398 + $0x38] sm:$0xff]
        %v599 = vld [vmem:[%s398 + $0x40] sm:$0xff]
        %v600 = vld [vmem:[%s398 + $0x48] sm:$0xff]
        %v601 = vld [vmem:[%s398 + $0x50] sm:$0xff]
        %v602 = vld [vmem:[%s398 + $0x58] sm:$0xff]
        %v603 = vld [vmem:[%s398 + $0x60] sm:$0xff]
        %v604 = vld [vmem:[%s398 + $0x68] sm:$0xff]
        %v605 = vld [vmem:[%s398 + $0x70] sm:$0xff]
        %v606 = vld [vmem:[%s398 + $0x78] sm:$0xff]
        %v607 = vld [vmem:[%s461] sm:$0x3]
        %v608 = vld [vmem:[%s407] sm:$0xf]
        %v609 = vld [vmem:[%s407 + $0x4] sm:$0xf]
        %v610 = vld [vmem:[%s407 + $0x8] sm:$0xf]
        %v611 = vld [vmem:[%s407 + $0xc] sm:$0xf]
        %v612 = vld [vmem:[%s407 + $0x10] sm:$0xf]
        %v613 = vld [vmem:[%s407 + $0x14] sm:$0xf]
        %v614 = vld [vmem:[%s407 + $0x18] sm:$0xf]
        %v615 = vld [vmem:[%s407 + $0x1c] sm:$0xf]
        %v616 = vld [vmem:[%s407 + $0x20] sm:$0xf]
        %v617 = vld [vmem:[%s407 + $0x24] sm:$0xf]
        %v618 = vld [vmem:[%s407 + $0x28] sm:$0xf]
        %v619 = vld [vmem:[%s407 + $0x2c] sm:$0xf]
        %v620 = vld [vmem:[%s407 + $0x30] sm:$0xf]
        %v621 = vld [vmem:[%s407 + $0x34] sm:$0xf]
        %v622 = vld [vmem:[%s407 + $0x38] sm:$0xf]
        %v623 = vld [vmem:[%s407 + $0x3c] sm:$0xf]
        %v624 = vld [vmem:[%s407 + $0x40] sm:$0xf]
        %v625 = vld [vmem:[%s407 + $0x44] sm:$0xf]
        %v626 = vld [vmem:[%s407 + $0x48] sm:$0xf]
        %v627 = vld [vmem:[%s407 + $0x4c] sm:$0xf]
        %v628 = vld [vmem:[%s407 + $0x50] sm:$0xf]
        %v629 = vld [vmem:[%s407 + $0x54] sm:$0xf]
        %v630 = vld [vmem:[%s407 + $0x58] sm:$0xf]
        %v631 = vld [vmem:[%s407 + $0x5c] sm:$0xf]
        %v632 = vld [vmem:[%s407 + $0x60] sm:$0xf]
        %v633 = vld [vmem:[%s407 + $0x64] sm:$0xf]
        %v634 = vld [vmem:[%s407 + $0x68] sm:$0xf]
        %v635 = vld [vmem:[%s407 + $0x6c] sm:$0xf]
        %v636 = vld [vmem:[%s407 + $0x70] sm:$0xf]
        %v637 = vld [vmem:[%s407 + $0x74] sm:$0xf]
        %v638 = vld [vmem:[%s407 + $0x78] sm:$0xf]
        %v639 = vld [vmem:[%s407 + $0x7c] sm:$0xf]
        %v640 = vld [vmem:[%s464] sm:$0x1]
        %v641 = vld [vmem:[%s467] sm:$0x1]
        %v642 = vld [vmem:[%s470] sm:$0x1]
        %v643 = vpack.c.bf16 %v560, %v559
        %v644 = vpack.c.bf16 %v562, %v561
        %v645 = vpack.c.bf16 %v564, %v563
        %v646 = vpack.c.bf16 %v566, %v565
        %v647 = vpack.c.bf16 %v568, %v567
        %v648 = vpack.c.bf16 %v570, %v569
        %v649 = vpack.c.bf16 %v572, %v571
        %v650 = vpack.c.bf16 %v574, %v573
        %v652 = vlaneseq
        %v653 = vshrl.u32 %v652, 7
        %v654 = vsub.s32 0, %v653
        %v655 = vrot.slane %v607, %v654
        %v656 = vlaneseq
        %v657 = vshrl.u32 %v656, 7
        %v658 = vsub.s32 1, %v657
        %v659 = vrot.slane %v607, %v658
        %v678 = vunpack.c.l.b16 %v591
        %v679 = vunpack.c.h.b16 %v591
        %v680 = vunpack.c.l.b16 %v592
        %v681 = vunpack.c.h.b16 %v592
        %v682 = vunpack.c.l.b16 %v593
        %v683 = vunpack.c.h.b16 %v593
        %v684 = vunpack.c.l.b16 %v594
        %v685 = vunpack.c.h.b16 %v594
        %v686 = vunpack.c.l.b16 %v595
        %v687 = vunpack.c.h.b16 %v595
        %v688 = vunpack.c.l.b16 %v596
        %v689 = vunpack.c.h.b16 %v596
        %v690 = vunpack.c.l.b16 %v597
        %v691 = vunpack.c.h.b16 %v597
        %v692 = vunpack.c.l.b16 %v598
        %v693 = vunpack.c.h.b16 %v598
        %v694 = vunpack.c.l.b16 %v599
        %v695 = vunpack.c.h.b16 %v599
        %v696 = vunpack.c.l.b16 %v600
        %v697 = vunpack.c.h.b16 %v600
        %v698 = vunpack.c.l.b16 %v601
        %v699 = vunpack.c.h.b16 %v601
        %v700 = vunpack.c.l.b16 %v602
        %v701 = vunpack.c.h.b16 %v602
        %v702 = vunpack.c.l.b16 %v603
        %v703 = vunpack.c.h.b16 %v603
        %v704 = vunpack.c.l.b16 %v604
        %v705 = vunpack.c.h.b16 %v604
        %v706 = vunpack.c.l.b16 %v605
        %v707 = vunpack.c.h.b16 %v605
        %v708 = vunpack.c.l.b16 %v606
        %v709 = vunpack.c.h.b16 %v606
        %v710 = vpack.c.b16 %v680, %v678
        %v711 = vpack.c.b16 %v681, %v679
        %v712 = vpack.c.b16 %v684, %v682
        %v713 = vpack.c.b16 %v685, %v683
        %v714 = vpack.c.b16 %v688, %v686
        %v715 = vpack.c.b16 %v689, %v687
        %v716 = vpack.c.b16 %v692, %v690
        %v717 = vpack.c.b16 %v693, %v691
        %v718 = vpack.c.b16 %v696, %v694
        %v719 = vpack.c.b16 %v697, %v695
        %v720 = vpack.c.b16 %v700, %v698
        %v721 = vpack.c.b16 %v701, %v699
        %v722 = vpack.c.b16 %v704, %v702
        %v723 = vpack.c.b16 %v705, %v703
        %v724 = vpack.c.b16 %v708, %v706
        %v725 = vpack.c.b16 %v709, %v707
        %742 = vmatprep.subr.bf16.mxu0 %v725
        %743 = vmatpush1.bf16.msra.mxu0 %v724
        %744 = vmatprep.subr.bf16.mxu0 %v723
        %745 = vmatpush1.bf16.msra.mxu0 %v722
        %746 = vmatprep.subr.bf16.mxu0 %v721
        %747 = vmatpush1.bf16.msra.mxu0 %v720
        %748 = vmatprep.subr.bf16.mxu0 %v719
        %749 = vmatpush1.bf16.msra.mxu0 %v718
        %750 = vmatprep.subr.bf16.mxu0 %v717
        %751 = vmatpush1.bf16.msra.mxu0 %v716
        %752 = vmatprep.subr.bf16.mxu0 %v715
        %753 = vmatpush1.bf16.msra.mxu0 %v714
        %754 = vmatprep.subr.bf16.mxu0 %v713
        %755 = vmatpush1.bf16.msra.mxu0 %v712
        %756 = vmatprep.subr.bf16.mxu0 %v711
        %757 = vmatpush1.bf16.msra.mxu0 %v710
        %758 = vmatprep.subr.bf16.mxu0 0
        %759 = vmatpush2.bf16.msra.mxu0 0
        %760 = vmatprep.subr.bf16.mxu0 0
        %761 = vmatpush2.bf16.msra.mxu0 0
        %762 = vmatprep.subr.bf16.mxu0 0
        %763 = vmatpush2.bf16.msra.mxu0 0
        %764 = vmatprep.subr.bf16.mxu0 0
        %765 = vmatpush2.bf16.msra.mxu0 0
        %766 = vmatprep.subr.bf16.mxu0 0
        %767 = vmatpush2.bf16.msra.mxu0 0
        %768 = vmatprep.subr.bf16.mxu0 0
        %769 = vmatpush2.bf16.msra.mxu0 0
        %770 = vmatprep.subr.bf16.mxu0 0
        %771 = vmatpush2.bf16.msra.mxu0 0
        %772 = vmatprep.subr.bf16.mxu0 0
        %773 = vmatpush2.bf16.msra.mxu0 0
        %774 = vmatprep.mubr.bf16.mxu0 0
        %775 = vmatmul.mubr.bf16.gmra.mxu0 %v643
        %v776 = vpop.f32.mrf.mxu0
        %v777 = vadd.f32 %v655, %v776
        %v778 = vpop.f32.mrf.mxu0
        %v779 = vadd.f32 %v659, %v778
        %v780 = vpop.f32.mrf.mxu0
        %v781 = vadd.f32 %v655, %v780
        %v782 = vpop.f32.mrf.mxu0
        %v783 = vadd.f32 %v659, %v782
        %784 = vmatprep.mubr.bf16.mxu0 0
        %785 = vmatmul.mubr.bf16.gmra.mxu0 %v644
        %v786 = vpop.f32.mrf.mxu0
        %v787 = vadd.f32 %v655, %v786
        %v788 = vpop.f32.mrf.mxu0
        %v789 = vadd.f32 %v659, %v788
        %v790 = vpop.f32.mrf.mxu0
        %v791 = vadd.f32 %v655, %v790
        %v792 = vpop.f32.mrf.mxu0
        %v793 = vadd.f32 %v659, %v792
        %794 = vmatprep.mubr.bf16.mxu0 0
        %795 = vmatmul.mubr.bf16.gmra.mxu0 %v645
        %v796 = vpop.f32.mrf.mxu0
        %v797 = vadd.f32 %v655, %v796
        %v798 = vpop.f32.mrf.mxu0
        %v799 = vadd.f32 %v659, %v798
        %v800 = vpop.f32.mrf.mxu0
        %v801 = vadd.f32 %v655, %v800
        %v802 = vpop.f32.mrf.mxu0
        %v803 = vadd.f32 %v659, %v802
        %804 = vmatprep.mubr.bf16.mxu0 0
        %805 = vmatmul.mubr.bf16.gmra.mxu0 %v646
        %v806 = vpop.f32.mrf.mxu0
        %v807 = vadd.f32 %v655, %v806
        %v808 = vpop.f32.mrf.mxu0
        %v809 = vadd.f32 %v659, %v808
        %v810 = vpop.f32.mrf.mxu0
        %v811 = vadd.f32 %v655, %v810
        %v812 = vpop.f32.mrf.mxu0
        %v813 = vadd.f32 %v659, %v812
        %814 = vmatprep.mubr.bf16.mxu0 0
        %815 = vmatmul.mubr.bf16.gmra.mxu0 %v647
        %v816 = vpop.f32.mrf.mxu0
        %v817 = vadd.f32 %v655, %v816
        %v818 = vpop.f32.mrf.mxu0
        %v819 = vadd.f32 %v659, %v818
        %v820 = vpop.f32.mrf.mxu0
        %v821 = vadd.f32 %v655, %v820
        %v822 = vpop.f32.mrf.mxu0
        %v823 = vadd.f32 %v659, %v822
        %824 = vmatprep.mubr.bf16.mxu0 0
        %825 = vmatmul.mubr.bf16.gmra.mxu0 %v648
        %v826 = vpop.f32.mrf.mxu0
        %v827 = vadd.f32 %v655, %v826
        %v828 = vpop.f32.mrf.mxu0
        %v829 = vadd.f32 %v659, %v828
        %v830 = vpop.f32.mrf.mxu0
        %v831 = vadd.f32 %v655, %v830
        %v832 = vpop.f32.mrf.mxu0
        %v833 = vadd.f32 %v659, %v832
        %834 = vmatprep.mubr.bf16.mxu0 0
        %835 = vmatmul.mubr.bf16.gmra.mxu0 %v649
        %v836 = vpop.f32.mrf.mxu0
        %v837 = vadd.f32 %v655, %v836
        %v838 = vpop.f32.mrf.mxu0
        %v839 = vadd.f32 %v659, %v838
        %v840 = vpop.f32.mrf.mxu0
        %v841 = vadd.f32 %v655, %v840
        %v842 = vpop.f32.mrf.mxu0
        %v843 = vadd.f32 %v659, %v842
        %844 = vmatprep.mubr.bf16.mxu0 0
        %845 = vmatmul.mubr.bf16.gmra.mxu0 %v650
        %v846 = vpop.f32.mrf.mxu0
        %v847 = vadd.f32 %v655, %v846
        %v848 = vpop.f32.mrf.mxu0
        %v849 = vadd.f32 %v659, %v848
        %v850 = vpop.f32.mrf.mxu0
        %v851 = vadd.f32 %v655, %v850
        %v852 = vpop.f32.mrf.mxu0
        %v853 = vadd.f32 %v659, %v852
        %854 = vdwg.mxu0
        %v855 = vmax.f32 %v777, 0.0
        %v856 = vmax.f32 %v779, 0.0
        %v857 = vmax.f32 %v781, 0.0
        %v858 = vmax.f32 %v783, 0.0
        %v859 = vmax.f32 %v787, 0.0
        %v860 = vmax.f32 %v789, 0.0
        %v861 = vmax.f32 %v791, 0.0
        %v862 = vmax.f32 %v793, 0.0
        %v863 = vmax.f32 %v797, 0.0
        %v864 = vmax.f32 %v799, 0.0
        %v865 = vmax.f32 %v801, 0.0
        %v866 = vmax.f32 %v803, 0.0
        %v867 = vmax.f32 %v807, 0.0
        %v868 = vmax.f32 %v809, 0.0
        %v869 = vmax.f32 %v811, 0.0
        %v870 = vmax.f32 %v813, 0.0
        %v871 = vmax.f32 %v817, 0.0
        %v872 = vmax.f32 %v819, 0.0
        %v873 = vmax.f32 %v821, 0.0
        %v874 = vmax.f32 %v823, 0.0
        %v875 = vmax.f32 %v827, 0.0
        %v876 = vmax.f32 %v829, 0.0
        %v877 = vmax.f32 %v831, 0.0
        %v878 = vmax.f32 %v833, 0.0
        %v879 = vmax.f32 %v837, 0.0
        %v880 = vmax.f32 %v839, 0.0
        %v881 = vmax.f32 %v841, 0.0
        %v882 = vmax.f32 %v843, 0.0
        %v883 = vmax.f32 %v847, 0.0
        %v884 = vmax.f32 %v849, 0.0
        %v885 = vmax.f32 %v851, 0.0
        %v886 = vmax.f32 %v853, 0.0
        %v887 = vpack.c.bf16 %v857, %v855
        %v888 = vpack.c.bf16 %v858, %v856
        %v889 = vpack.c.bf16 %v861, %v859
        %v890 = vpack.c.bf16 %v862, %v860
        %v891 = vpack.c.bf16 %v865, %v863
        %v892 = vpack.c.bf16 %v866, %v864
        %v893 = vpack.c.bf16 %v869, %v867
        %v894 = vpack.c.bf16 %v870, %v868
        %v895 = vpack.c.bf16 %v873, %v871
        %v896 = vpack.c.bf16 %v874, %v872
        %v897 = vpack.c.bf16 %v877, %v875
        %v898 = vpack.c.bf16 %v878, %v876
        %v899 = vpack.c.bf16 %v881, %v879
        %v900 = vpack.c.bf16 %v882, %v880
        %v901 = vpack.c.bf16 %v885, %v883
        %v902 = vpack.c.bf16 %v886, %v884
        %v904 = vlaneseq
        %v905 = vshrl.u32 %v904, 7
        %v906 = vsub.s32 0, %v905
        %v907 = vrot.slane %v640, %v906
        %v941 = vunpack.c.l.b16 %v608
        %v942 = vunpack.c.l.b16 %v609
        %v943 = vunpack.c.l.b16 %v610
        %v944 = vunpack.c.l.b16 %v611
        %v945 = vunpack.c.l.b16 %v612
        %v946 = vunpack.c.l.b16 %v613
        %v947 = vunpack.c.l.b16 %v614
        %v948 = vunpack.c.l.b16 %v615
        %v949 = vunpack.c.l.b16 %v616
        %v950 = vunpack.c.l.b16 %v617
        %v951 = vunpack.c.l.b16 %v618
        %v952 = vunpack.c.l.b16 %v619
        %v953 = vunpack.c.l.b16 %v620
        %v954 = vunpack.c.l.b16 %v621
        %v955 = vunpack.c.l.b16 %v622
        %v956 = vunpack.c.l.b16 %v623
        %v957 = vunpack.c.l.b16 %v624
        %v958 = vunpack.c.l.b16 %v625
        %v959 = vunpack.c.l.b16 %v626
        %v960 = vunpack.c.l.b16 %v627
        %v961 = vunpack.c.l.b16 %v628
        %v962 = vunpack.c.l.b16 %v629
        %v963 = vunpack.c.l.b16 %v630
        %v964 = vunpack.c.l.b16 %v631
        %v965 = vunpack.c.l.b16 %v632
        %v966 = vunpack.c.l.b16 %v633
        %v967 = vunpack.c.l.b16 %v634
        %v968 = vunpack.c.l.b16 %v635
        %v969 = vunpack.c.l.b16 %v636
        %v970 = vunpack.c.l.b16 %v637
        %v971 = vunpack.c.l.b16 %v638
        %v972 = vunpack.c.l.b16 %v639
        %v973 = vpack.c.b16 %v942, %v941
        %v974 = vpack.c.b16 %v944, %v943
        %v975 = vpack.c.b16 %v946, %v945
        %v976 = vpack.c.b16 %v948, %v947
        %v977 = vpack.c.b16 %v950, %v949
        %v978 = vpack.c.b16 %v952, %v951
        %v979 = vpack.c.b16 %v954, %v953
        %v980 = vpack.c.b16 %v956, %v955
        %v981 = vpack.c.b16 %v958, %v957
        %v982 = vpack.c.b16 %v960, %v959
        %v983 = vpack.c.b16 %v962, %v961
        %v984 = vpack.c.b16 %v964, %v963
        %v985 = vpack.c.b16 %v966, %v965
        %v986 = vpack.c.b16 %v968, %v967
        %v987 = vpack.c.b16 %v970, %v969
        %v988 = vpack.c.b16 %v972, %v971
        %1005 = vmatprep.subr.bf16.mxu0 0
        %1006 = vmatpush1.bf16.msra.mxu0 %v980
        %1007 = vmatprep.subr.bf16.mxu0 0
        %1008 = vmatpush1.bf16.msra.mxu0 %v979
        %1009 = vmatprep.subr.bf16.mxu0 0
        %1010 = vmatpush1.bf16.msra.mxu0 %v978
        %1011 = vmatprep.subr.bf16.mxu0 0
        %1012 = vmatpush1.bf16.msra.mxu0 %v977
        %1013 = vmatprep.subr.bf16.mxu0 0
        %1014 = vmatpush1.bf16.msra.mxu0 %v976
        %1015 = vmatprep.subr.bf16.mxu0 0
        %1016 = vmatpush1.bf16.msra.mxu0 %v975
        %1017 = vmatprep.subr.bf16.mxu0 0
        %1018 = vmatpush1.bf16.msra.mxu0 %v974
        %1019 = vmatprep.subr.bf16.mxu0 0
        %1020 = vmatpush1.bf16.msra.mxu0 %v973
        %1021 = vmatprep.subr.bf16.mxu0 0
        %1022 = vmatpush2.bf16.msra.mxu0 %v988
        %1023 = vmatprep.subr.bf16.mxu0 0
        %1024 = vmatpush2.bf16.msra.mxu0 %v987
        %1025 = vmatprep.subr.bf16.mxu0 0
        %1026 = vmatpush2.bf16.msra.mxu0 %v986
        %1027 = vmatprep.subr.bf16.mxu0 0
        %1028 = vmatpush2.bf16.msra.mxu0 %v985
        %1029 = vmatprep.subr.bf16.mxu0 0
        %1030 = vmatpush2.bf16.msra.mxu0 %v984
        %1031 = vmatprep.subr.bf16.mxu0 0
        %1032 = vmatpush2.bf16.msra.mxu0 %v983
        %1033 = vmatprep.subr.bf16.mxu0 0
        %1034 = vmatpush2.bf16.msra.mxu0 %v982
        %1035 = vmatprep.subr.bf16.mxu0 0
        %1036 = vmatpush2.bf16.msra.mxu0 %v981
        %1037 = vmatprep.mubr.bf16.mxu0 %v888
        %1038 = vmatmul.mubr.bf16.gmra.mxu0 %v887
        %v1039 = vpop.f32.mrf.mxu0
        %v1040 = vadd.f32 %v907, %v1039
        %v1041 = vpop.f32.mrf.mxu0
        %v1042 = vpop.f32.mrf.mxu0
        %v1043 = vadd.f32 %v907, %v1042
        %v1044 = vpop.f32.mrf.mxu0
        %1045 = vmatprep.mubr.bf16.mxu0 %v890
        %1046 = vmatmul.mubr.bf16.gmra.mxu0 %v889
        %v1047 = vpop.f32.mrf.mxu0
        %v1048 = vadd.f32 %v907, %v1047
        %v1049 = vpop.f32.mrf.mxu0
        %v1050 = vpop.f32.mrf.mxu0
        %v1051 = vadd.f32 %v907, %v1050
        %v1052 = vpop.f32.mrf.mxu0
        %1053 = vmatprep.mubr.bf16.mxu0 %v892
        %1054 = vmatmul.mubr.bf16.gmra.mxu0 %v891
        %v1055 = vpop.f32.mrf.mxu0
        %v1056 = vadd.f32 %v907, %v1055
        %v1057 = vpop.f32.mrf.mxu0
        %v1058 = vpop.f32.mrf.mxu0
        %v1059 = vadd.f32 %v907, %v1058
        %v1060 = vpop.f32.mrf.mxu0
        %1061 = vmatprep.mubr.bf16.mxu0 %v894
        %1062 = vmatmul.mubr.bf16.gmra.mxu0 %v893
        %v1063 = vpop.f32.mrf.mxu0
        %v1064 = vadd.f32 %v907, %v1063
        %v1065 = vpop.f32.mrf.mxu0
        %v1066 = vpop.f32.mrf.mxu0
        %v1067 = vadd.f32 %v907, %v1066
        %v1068 = vpop.f32.mrf.mxu0
        %1069 = vmatprep.mubr.bf16.mxu0 %v896
        %1070 = vmatmul.mubr.bf16.gmra.mxu0 %v895
        %v1071 = vpop.f32.mrf.mxu0
        %v1072 = vadd.f32 %v907, %v1071
        %v1073 = vpop.f32.mrf.mxu0
        %v1074 = vpop.f32.mrf.mxu0
        %v1075 = vadd.f32 %v907, %v1074
        %v1076 = vpop.f32.mrf.mxu0
        %1077 = vmatprep.mubr.bf16.mxu0 %v898
        %1078 = vmatmul.mubr.bf16.gmra.mxu0 %v897
        %v1079 = vpop.f32.mrf.mxu0
        %v1080 = vadd.f32 %v907, %v1079
        %v1081 = vpop.f32.mrf.mxu0
        %v1082 = vpop.f32.mrf.mxu0
        %v1083 = vadd.f32 %v907, %v1082
        %v1084 = vpop.f32.mrf.mxu0
        %1085 = vmatprep.mubr.bf16.mxu0 %v900
        %1086 = vmatmul.mubr.bf16.gmra.mxu0 %v899
        %v1087 = vpop.f32.mrf.mxu0
        %v1088 = vadd.f32 %v907, %v1087
        %v1089 = vpop.f32.mrf.mxu0
        %v1090 = vpop.f32.mrf.mxu0
        %v1091 = vadd.f32 %v907, %v1090
        %v1092 = vpop.f32.mrf.mxu0
        %1093 = vmatprep.mubr.bf16.mxu0 %v902
        %1094 = vmatmul.mubr.bf16.gmra.mxu0 %v901
        %v1095 = vpop.f32.mrf.mxu0
        %v1096 = vadd.f32 %v907, %v1095
        %v1097 = vpop.f32.mrf.mxu0
        %v1098 = vpop.f32.mrf.mxu0
        %v1099 = vadd.f32 %v907, %v1098
        %v1100 = vpop.f32.mrf.mxu0
        %1101 = vdwg.mxu0
        %v1102 = vadd.f32 %v1040, %v1043
        %v1103 = vadd.f32 %v1102, %v1048
        %v1104 = vadd.f32 %v1103, %v1051
        %v1105 = vadd.f32 %v1104, %v1056
        %v1106 = vadd.f32 %v1105, %v1059
        %v1107 = vadd.f32 %v1106, %v1064
        %v1108 = vadd.f32 %v1107, %v1067
        %v1109 = vadd.f32 %v1108, %v1072
        %v1110 = vadd.f32 %v1109, %v1075
        %v1111 = vadd.f32 %v1110, %v1080
        %v1112 = vadd.f32 %v1111, %v1083
        %v1113 = vadd.f32 %v1112, %v1088
        %v1114 = vadd.f32 %v1113, %v1091
        %v1115 = vadd.f32 %v1114, %v1096
        %v1116 = vadd.f32 %v1115, %v1099
        %v1117 = vrot.slane %v1116, 4
        %v1118 = vadd.f32 %v1116, %v1117
        %v1119 = vrot.slane %v1118, 2
        %v1120 = vadd.f32 %v1118, %v1119
        %v1121 = vrot.slane %v1120, 1
        %v1122 = vadd.f32 %v1120, %v1121
        %v1123 = vmul.f32 %v1122, 0.0078125
        %v1124 = vsub.f32 %v1040, %v1123
        %v1125 = vsub.f32 %v1043, %v1123
        %v1126 = vsub.f32 %v1048, %v1123
        %v1127 = vsub.f32 %v1051, %v1123
        %v1128 = vsub.f32 %v1056, %v1123
        %v1129 = vsub.f32 %v1059, %v1123
        %v1130 = vsub.f32 %v1064, %v1123
        %v1131 = vsub.f32 %v1067, %v1123
        %v1132 = vsub.f32 %v1072, %v1123
        %v1133 = vsub.f32 %v1075, %v1123
        %v1134 = vsub.f32 %v1080, %v1123
        %v1135 = vsub.f32 %v1083, %v1123
        %v1136 = vsub.f32 %v1088, %v1123
        %v1137 = vsub.f32 %v1091, %v1123
        %v1138 = vsub.f32 %v1096, %v1123
        %v1139 = vsub.f32 %v1099, %v1123
        %v1140 = vmul.f32 %v1124, %v1124
        %v1141 = vmul.f32 %v1125, %v1125
        %v1142 = vmul.f32 %v1126, %v1126
        %v1143 = vmul.f32 %v1127, %v1127
        %v1144 = vmul.f32 %v1128, %v1128
        %v1145 = vmul.f32 %v1129, %v1129
        %v1146 = vmul.f32 %v1130, %v1130
        %v1147 = vmul.f32 %v1131, %v1131
        %v1148 = vmul.f32 %v1132, %v1132
        %v1149 = vmul.f32 %v1133, %v1133
        %v1150 = vmul.f32 %v1134, %v1134
        %v1151 = vmul.f32 %v1135, %v1135
        %v1152 = vmul.f32 %v1136, %v1136
        %v1153 = vmul.f32 %v1137, %v1137
        %v1154 = vmul.f32 %v1138, %v1138
        %v1155 = vmul.f32 %v1139, %v1139
        %v1156 = vadd.f32 %v1140, %v1141
        %v1157 = vadd.f32 %v1156, %v1142
        %v1158 = vadd.f32 %v1157, %v1143
        %v1159 = vadd.f32 %v1158, %v1144
        %v1160 = vadd.f32 %v1159, %v1145
        %v1161 = vadd.f32 %v1160, %v1146
        %v1162 = vadd.f32 %v1161, %v1147
        %v1163 = vadd.f32 %v1162, %v1148
        %v1164 = vadd.f32 %v1163, %v1149
        %v1165 = vadd.f32 %v1164, %v1150
        %v1166 = vadd.f32 %v1165, %v1151
        %v1167 = vadd.f32 %v1166, %v1152
        %v1168 = vadd.f32 %v1167, %v1153
        %v1169 = vadd.f32 %v1168, %v1154
        %v1170 = vadd.f32 %v1169, %v1155
        %v1171 = vrot.slane %v1170, 4
        %v1172 = vadd.f32 %v1170, %v1171
        %v1173 = vrot.slane %v1172, 2
        %v1174 = vadd.f32 %v1172, %v1173
        %v1175 = vrot.slane %v1174, 1
        %v1176 = vadd.f32 %v1174, %v1175
        %v1177 = vmul.f32 %v1176, 0.0078125
        %v1178 = vadd.f32 %v1177, 1e-05
        %v1179 = vrsqrt.pop %v1178
        %v1180 = vmul.f32 %v641, %v1179
        %v1182 = vlaneseq
        %v1183 = vshrl.u32 %v1182, 7
        %v1184 = vsub.s32 0, %v1183
        %v1185 = vrot.slane %v1180, %v1184
        %v1187 = vmul.f32 %v1124, %v1185
        %v1188 = vmul.f32 %v1125, %v1185
        %v1189 = vmul.f32 %v1126, %v1185
        %v1190 = vmul.f32 %v1127, %v1185
        %v1191 = vmul.f32 %v1128, %v1185
        %v1192 = vmul.f32 %v1129, %v1185
        %v1193 = vmul.f32 %v1130, %v1185
        %v1194 = vmul.f32 %v1131, %v1185
        %v1195 = vmul.f32 %v1132, %v1185
        %v1196 = vmul.f32 %v1133, %v1185
        %v1197 = vmul.f32 %v1134, %v1185
        %v1198 = vmul.f32 %v1135, %v1185
        %v1199 = vmul.f32 %v1136, %v1185
        %v1200 = vmul.f32 %v1137, %v1185
        %v1201 = vmul.f32 %v1138, %v1185
        %v1202 = vmul.f32 %v1139, %v1185
        %v1204 = vlaneseq
        %v1205 = vshrl.u32 %v1204, 7
        %v1206 = vsub.s32 0, %v1205
        %v1207 = vrot.slane %v642, %v1206
        %v1209 = vadd.f32 %v1187, %v1207
        %v1210 = vadd.f32 %v1188, %v1207
        %v1211 = vadd.f32 %v1189, %v1207
        %v1212 = vadd.f32 %v1190, %v1207
        %v1213 = vadd.f32 %v1191, %v1207
        %v1214 = vadd.f32 %v1192, %v1207
        %v1215 = vadd.f32 %v1193, %v1207
        %v1216 = vadd.f32 %v1194, %v1207
        %v1217 = vadd.f32 %v1195, %v1207
        %v1218 = vadd.f32 %v1196, %v1207
        %v1219 = vadd.f32 %v1197, %v1207
        %v1220 = vadd.f32 %v1198, %v1207
        %v1221 = vadd.f32 %v1199, %v1207
        %v1222 = vadd.f32 %v1200, %v1207
        %v1223 = vadd.f32 %v1201, %v1207
        %v1224 = vadd.f32 %v1202, %v1207
        %v1225 = vmax.f32 %v1209, 0.0
        %v1226 = vmax.f32 %v1210, 0.0
        %v1227 = vmax.f32 %v1211, 0.0
        %v1228 = vmax.f32 %v1212, 0.0
        %v1229 = vmax.f32 %v1213, 0.0
        %v1230 = vmax.f32 %v1214, 0.0
        %v1231 = vmax.f32 %v1215, 0.0
        %v1232 = vmax.f32 %v1216, 0.0
        %v1233 = vmax.f32 %v1217, 0.0
        %v1234 = vmax.f32 %v1218, 0.0
        %v1235 = vmax.f32 %v1219, 0.0
        %v1236 = vmax.f32 %v1220, 0.0
        %v1237 = vmax.f32 %v1221, 0.0
        %v1238 = vmax.f32 %v1222, 0.0
        %v1239 = vmax.f32 %v1223, 0.0
        %v1240 = vmax.f32 %v1224, 0.0
        %v1241 = vadd.f32 %v1225, %v575
        %v1242 = vadd.f32 %v1226, %v576
        %v1243 = vadd.f32 %v1227, %v577
        %v1244 = vadd.f32 %v1228, %v578
        %v1245 = vadd.f32 %v1229, %v579
        %v1246 = vadd.f32 %v1230, %v580
        %v1247 = vadd.f32 %v1231, %v581
        %v1248 = vadd.f32 %v1232, %v582
        %v1249 = vadd.f32 %v1233, %v583
        %v1250 = vadd.f32 %v1234, %v584
        %v1251 = vadd.f32 %v1235, %v585
        %v1252 = vadd.f32 %v1236, %v586
        %v1253 = vadd.f32 %v1237, %v587
        %v1254 = vadd.f32 %v1238, %v588
        %v1255 = vadd.f32 %v1239, %v589
        %v1256 = vadd.f32 %v1240, %v590
        %1257 = vst [vmem:[#allocation15] sm:$0xff] %v1241
        %1258 = vst [vmem:[#allocation15 + $0x8] sm:$0xff] %v1242
        %1259 = vst [vmem:[#allocation15 + $0x10] sm:$0xff] %v1243
        %1260 = vst [vmem:[#allocation15 + $0x18] sm:$0xff] %v1244
        %1261 = vst [vmem:[#allocation15 + $0x20] sm:$0xff] %v1245
        %1262 = vst [vmem:[#allocation15 + $0x28] sm:$0xff] %v1246
        %1263 = vst [vmem:[#allocation15 + $0x30] sm:$0xff] %v1247
        %1264 = vst [vmem:[#allocation15 + $0x38] sm:$0xff] %v1248
        %1265 = vst [vmem:[#allocation15 + $0x40] sm:$0xff] %v1249
        %1266 = vst [vmem:[#allocation15 + $0x48] sm:$0xff] %v1250
        %1267 = vst [vmem:[#allocation15 + $0x50] sm:$0xff] %v1251
        %1268 = vst [vmem:[#allocation15 + $0x58] sm:$0xff] %v1252
        %1269 = vst [vmem:[#allocation15 + $0x60] sm:$0xff] %v1253
        %1270 = vst [vmem:[#allocation15 + $0x68] sm:$0xff] %v1254
        %1271 = vst [vmem:[#allocation15 + $0x70] sm:$0xff] %v1255
        %1272 = vst [vmem:[#allocation15 + $0x78] sm:$0xff] %v1256
        // Predicated region
        $region80: #{tpu_custom_call.1} parent=51 // pred_check
          %p1273 = pneg %p254
        $region81: #{tpu_custom_call.1} parent=51 // pred_check_branch
          %1275 = sbr.rel (%p1273) target = $region83
        $region82: #{tpu_custom_call.1} parent=51 // pred_region
          %s1277 = ssub.s32 2048, 2048
          %1278 = vsyncadd [#allocation9], %s1277
          %s1279 = sshll.u32 [#allocation15], 4
          %s1280 = int_to_ptr.vmem [resolvable:$true] %s1279
          %1285 = dma.vmem_to_hbm [thread:$0]  %s1280, 2048, %s11, [#allocation9], 128, 128, 8
        $region83: #{tpu_custom_call.1} parent=51 // pred_fallthru
          _
        // Predicated region
        $region84: #{tpu_custom_call.1} parent=51 // pred_check
          %p1286 = pneg %p254
        $region85: #{tpu_custom_call.1} parent=51 // pred_check_branch
          %1288 = sbr.rel (%p1286) target = $region87
        $region86: #{tpu_custom_call.1} parent=51 // pred_region
          %1289 = dma.done [#allocation9], 2048
        $region87: #{tpu_custom_call.1} parent=51 // pred_fallthru
          _
      $region52: #{tpu_custom_call.1} parent=5 // pred_fallthru
        _
      %p1290 = scmp.le.s32.totalorder 2, %s33
      // Predicated region
      $region88: #{tpu_custom_call.1} parent=5 // pred_check
        %p1291 = pneg %p1290
      $region89: #{tpu_custom_call.1} parent=5 // pred_check_branch
        %1293 = sbr.rel (%p1291) target = $region91
      $region90: #{tpu_custom_call.1} parent=5 // pred_region
        %s1294 = ssub.s32 %s33, 2
      $region91: #{tpu_custom_call.1} parent=5 // pred_fallthru
        _
    $region6: #{tpu_custom_call.1} parent=1 // loop_footer
      %s37 = sadd.s32 1, %s33
    $region7: #{tpu_custom_call.1} parent=1 // loop_footer_branch
      %32 = sbr.rel target = $region3
    $region8: #{tpu_custom_call.1} parent=1 // loop_exit
      _
    %1295 = vsyncpa [#allocation8], 1
    %s1296 = scalar_lea.sflag [#allocation8], 1
    %1297 = vsyncpa %s1296, 1
    %1298 = vsyncpa [#allocation11], 1
    %s1299 = scalar_lea.sflag [#allocation11], 1
    %1300 = vsyncpa %s1299, 1
    %1301 = vsyncpa [#allocation14], 1
    %s1302 = scalar_lea.sflag [#allocation14], 1
    %1303 = vsyncpa %s1302, 1
    %1304 = vsyncpa [#allocation9], 1
    %s1305 = scalar_lea.sflag [#allocation9], 1
    %1306 = vsyncpa %s1305, 1

// kernel: tpu_custom_call.1
$region0: #{tpu_custom_call.1}
  #allocation0 [shape = 'u32[]', space=smem, size = 0x4, offset = 0x4, fixed_abs, tag = 'smem constant byte address 0x4 - core index']
  #allocation1 [shape = 'u32[144,128]{1,0:T(1,128)}', space=vmem, size = 0x12000, scoped, tag = 'internal scratch']
  %s0 = inlined_call_operand.vmem [shape: f32[128,128], index: 0, kind: input, shape index: {}]
  %s1 = inlined_call_operand.hbm [shape: bf16[256,128], index: 1, kind: input, shape index: {}]
  %s2 = inlined_call_operand.hbm [shape: bf16[128,256], index: 2, kind: input, shape index: {}]
  %s3 = inlined_call_operand.vmem [shape: bf16[256,4], index: 3, kind: input, shape index: {}]
  %s4 = inlined_call_operand.hbm [shape: f32[3,4,128], index: 4, kind: input, shape index: {}]
  %s5 = inlined_call_operand.hbm [shape: bf16[3,128,256], index: 5, kind: input, shape index: {}]
  %s6 = inlined_call_operand.vmem [shape: f32[3,1,256], index: 6, kind: input, shape index: {}]
  %s7 = inlined_call_operand.hbm [shape: bf16[3,256,128], index: 7, kind: input, shape index: {}]
  %s8 = inlined_call_operand.vmem [shape: f32[3,1,128], index: 8, kind: input, shape index: {}]
  %s9 = inlined_call_operand.vmem [shape: f32[3,1,128], index: 9, kind: input, shape index: {}]
  %s10 = inlined_call_operand.vmem [shape: f32[3,1,128], index: 10, kind: input, shape index: {}]
  %s11 = inlined_call_operand.hbm [shape: f32[128,128], index: 11, kind: output, shape index: {}]
  %s12 = sld [smem:[#allocation0]]
  $region101: #{tpu_custom_call.1} parent=0
    _
  %s14 = ssub.s32 1, %s12
  %s15 = scalar_select 0, %s14, %s12
  $region1: #{tpu_custom_call.1} parent=0
    #allocation2 [shape = 'u8[65536]{0}', space=vmem, size = 0x10000, scoped, tag = 'input window, operand 1, single buffered']
    #allocation3 [shape = 's32[2]{0}', space=sflag, size = 0x8, scoped, tag = 'scoped memory for tpu_custom_call.1']
    #allocation4 [shape = 's32[2]{0}', space=sflag, size = 0x8, scoped, tag = 'scoped memory for tpu_custom_call.1']
    #allocation5 [shape = 'u8[65536]{0}', space=vmem, size = 0x10000, scoped, tag = 'input window, operand 2, single buffered']
    #allocation6 [shape = 's32[1]{0}', space=sflag, size = 0x4, scoped, tag = 'scoped memory for tpu_custom_call.1']
    #allocation7 [shape = 'u8[4096]{0}', space=vmem, size = 0x1000, scoped, tag = 'input window, operand 4']
    #allocation8 [shape = 'u8[131072]{0}', space=vmem, size = 0x20000, scoped, tag = 'input window, operand 5']
    #allocation9 [shape = 'u8[131072]{0}', space=vmem, size = 0x20000, scoped, tag = 'input window, operand 7']
    #allocation10 [shape = 'u8[65536]{0}', space=vmem, size = 0x10000, scoped, tag = 'output window, operand 0, single buffered']
    %16 = vsyncpa [#allocation3], 0
    %17 = vsyncpa [#allocation6], 0
    %18 = vsyncpa [#allocation4], 0
    loop: start=0, step=1, limit=5
    $region2: #{tpu_custom_call.1} parent=1 // loop_pre_header
      _
    $region3: #{tpu_custom_call.1} parent=1 // loop_header
      %s20 = sphi 0, %s24
      %p21 = scmp.ge.s32.totalorder %s20, 5
      %s28 = sphi 0, %s28
      %s30 = sphi 0, %s28
      %s31 = sphi 0, %s30
      %s45 = sphi 0, %s31
      %s49 = sphi 0, %s49
      %s51 = sphi 0, %s49
      %s52 = sphi 0, %s51
      %s66 = sphi 0, %s52
      %s70 = sphi 0, %s70
      %s72 = sphi 0, %s70
      %s73 = sphi 0, %s72
      %s87 = sphi 0, %s73
      %s91 = sphi 0, %s91
      %s93 = sphi 0, %s91
      %s94 = sphi 0, %s93
      %s108 = sphi 0, %s94
      %s114 = sphi 0, %s116
      %s117 = sphi 0, %s114
      %s118 = sphi 0, %s117
      %s134 = sphi 0, %s118
      %s140 = sphi 0, %s142
      %s143 = sphi 0, %s140
      %s144 = sphi 0, %s143
      %s160 = sphi 0, %s144
      %s166 = sphi 0, %s168
      %s169 = sphi 0, %s166
      %s170 = sphi 0, %s169
      %s186 = sphi 0, %s170
      %s192 = sphi 0, %s194
      %s195 = sphi 0, %s192
      %s196 = sphi 0, %s195
      %s212 = sphi 0, %s196
      %s218 = sphi 0, %s220
      %s221 = sphi 0, %s218
      %s222 = sphi 0, %s221
      %s238 = sphi 0, %s222
      %s244 = sphi 0, %s246
      %s247 = sphi 0, %s244
      %s248 = sphi 0, %s247
      %s264 = sphi 0, %s248
      %s270 = sphi 0, %s272
      %s273 = sphi 0, %s270
      %s274 = sphi 0, %s273
      %s290 = sphi 0, %s274
      %s294 = sphi 0, %s294
      %s296 = sphi 0, %s294
      %s297 = sphi 0, %s296
      %s311 = sphi 0, %s297
    $region4: #{tpu_custom_call.1} parent=1 // loop_header_branch
      %23 = sbr.rel (%p21) target = $region8
    $region5: #{tpu_custom_call.1} parent=1 // loop_body
      %s25 = ssub.s32 %s20, 1
      %s26 = ssub.s32 %s20, 2
      %s27 = sadd.s32 %s20, 1
      %s29 = sadd.s32 %s28, 1
      %p32 = scmp.eq.s32.totalorder %s20, 2
      %p33 = scmp.ne.s32.totalorder %s28, %s30
      %p34 = scmp.eq.s32.totalorder %s20, 0
      %p35 = por %p33, %p34
      %p36 = scmp.ne.s32.totalorder %s28, %s30
      %p37 = scmp.eq.s32.totalorder %s25, 2
      %p38 = por %p36, %p37
      %p39 = scmp.ne.s32.totalorder %s30, %s31
      %p40 = scmp.eq.s32.totalorder %s25, 0
      %p41 = por %p39, %p40
      %p42 = scmp.ne.s32.totalorder %s30, %s31
      %p43 = scmp.eq.s32.totalorder %s26, 2
      %p44 = por %p42, %p43
      %p46 = scmp.ne.s32.totalorder %s31, %s45
      %p47 = scmp.eq.s32.totalorder %s26, 0
      %p48 = por %p46, %p47
      %s50 = sadd.s32 %s49, 1
      %p53 = scmp.eq.s32.totalorder %s20, 2
      %p54 = scmp.ne.s32.totalorder %s49, %s51
      %p55 = scmp.eq.s32.totalorder %s20, 0
      %p56 = por %p54, %p55
      %p57 = scmp.ne.s32.totalorder %s49, %s51
      %p58 = scmp.eq.s32.totalorder %s25, 2
      %p59 = por %p57, %p58
      %p60 = scmp.ne.s32.totalorder %s51, %s52
      %p61 = scmp.eq.s32.totalorder %s25, 0
      %p62 = por %p60, %p61
      %p63 = scmp.ne.s32.totalorder %s51, %s52
      %p64 = scmp.eq.s32.totalorder %s26, 2
      %p65 = por %p63, %p64
      %p67 = scmp.ne.s32.totalorder %s52, %s66
      %p68 = scmp.eq.s32.totalorder %s26, 0
      %p69 = por %p67, %p68
      %s71 = sadd.s32 %s70, 1
      %p74 = scmp.eq.s32.totalorder %s20, 2
      %p75 = scmp.ne.s32.totalorder %s70, %s72
      %p76 = scmp.eq.s32.totalorder %s20, 0
      %p77 = por %p75, %p76
      %p78 = scmp.ne.s32.totalorder %s70, %s72
      %p79 = scmp.eq.s32.totalorder %s25, 2
      %p80 = por %p78, %p79
      %p81 = scmp.ne.s32.totalorder %s72, %s73
      %p82 = scmp.eq.s32.totalorder %s25, 0
      %p83 = por %p81, %p82
      %p84 = scmp.ne.s32.totalorder %s72, %s73
      %p85 = scmp.eq.s32.totalorder %s26, 2
      %p86 = por %p84, %p85
      %p88 = scmp.ne.s32.totalorder %s73, %s87
      %p89 = scmp.eq.s32.totalorder %s26, 0
      %p90 = por %p88, %p89
      %s92 = sadd.s32 %s91, 1
      %p95 = scmp.eq.s32.totalorder %s20, 2
      %p96 = scmp.ne.s32.totalorder %s91, %s93
      %p97 = scmp.eq.s32.totalorder %s20, 0
      %p98 = por %p96, %p97
      %p99 = scmp.ne.s32.totalorder %s91, %s93
      %p100 = scmp.eq.s32.totalorder %s25, 2
      %p101 = por %p99, %p100
      %p102 = scmp.ne.s32.totalorder %s93, %s94
      %p103 = scmp.eq.s32.totalorder %s25, 0
      %p104 = por %p102, %p103
      %p105 = scmp.ne.s32.totalorder %s93, %s94
      %p106 = scmp.eq.s32.totalorder %s26, 2
      %p107 = por %p105, %p106
      %p109 = scmp.ne.s32.totalorder %s94, %s108
      %p110 = scmp.eq.s32.totalorder %s26, 0
      %p111 = por %p109, %p110
      %s112 = ssub.s32 %s20, %s27
      %p113 = scmp.eq.s32.totalorder %s112, 0
      %s115 = sadd.s32 %s114, 1
      %s116 = scalar_select %p113, %s114, %s115
      %p119 = pneg %p113
      %p120 = scmp.eq.s32.totalorder %s20, 2
      %p121 = por %p119, %p120
      %p122 = scmp.ne.s32.totalorder %s114, %s117
      %p123 = scmp.eq.s32.totalorder %s20, 0
      %p124 = por %p122, %p123
      %p125 = scmp.ne.s32.totalorder %s114, %s117
      %p126 = scmp.eq.s32.totalorder %s25, 2
      %p127 = por %p125, %p126
      %p128 = scmp.ne.s32.totalorder %s117, %s118
      %p129 = scmp.eq.s32.totalorder %s25, 0
      %p130 = por %p128, %p129
      %p131 = scmp.ne.s32.totalorder %s117, %s118
      %p132 = scmp.eq.s32.totalorder %s26, 2
      %p133 = por %p131, %p132
      %p135 = scmp.ne.s32.totalorder %s118, %s134
      %p136 = scmp.eq.s32.totalorder %s26, 0
      %p137 = por %p135, %p136
      %s138 = ssub.s32 %s20, %s27
      %p139 = scmp.eq.s32.totalorder %s138, 0
      %s141 = sadd.s32 %s140, 1
      %s142 = scalar_select %p139, %s140, %s141
      %p145 = pneg %p139
      %p146 = scmp.eq.s32.totalorder %s20, 2
      %p147 = por %p145, %p146
      %p148 = scmp.ne.s32.totalorder %s140, %s143
      %p149 = scmp.eq.s32.totalorder %s20, 0
      %p150 = por %p148, %p149
      %p151 = scmp.ne.s32.totalorder %s140, %s143
      %p152 = scmp.eq.s32.totalorder %s25, 2
      %p153 = por %p151, %p152
      %p154 = scmp.ne.s32.totalorder %s143, %s144
      %p155 = scmp.eq.s32.totalorder %s25, 0
      %p156 = por %p154, %p155
      %p157 = scmp.ne.s32.totalorder %s143, %s144
      %p158 = scmp.eq.s32.totalorder %s26, 2
      %p159 = por %p157, %p158
      %p161 = scmp.ne.s32.totalorder %s144, %s160
      %p162 = scmp.eq.s32.totalorder %s26, 0
      %p163 = por %p161, %p162
      %s164 = ssub.s32 %s20, %s27
      %p165 = scmp.eq.s32.totalorder %s164, 0
      %s167 = sadd.s32 %s166, 1
      %s168 = scalar_select %p165, %s166, %s167
      %p171 = pneg %p165
      %p172 = scmp.eq.s32.totalorder %s20, 2
      %p173 = por %p171, %p172
      %p174 = scmp.ne.s32.totalorder %s166, %s169
      %p175 = scmp.eq.s32.totalorder %s20, 0
      %p176 = por %p174, %p175
      %p177 = scmp.ne.s32.totalorder %s166, %s169
      %p178 = scmp.eq.s32.totalorder %s25, 2
      %p179 = por %p177, %p178
      %p180 = scmp.ne.s32.totalorder %s169, %s170
      %p181 = scmp.eq.s32.totalorder %s25, 0
      %p182 = por %p180, %p181
      %p183 = scmp.ne.s32.totalorder %s169, %s170
      %p184 = scmp.eq.s32.totalorder %s26, 2
      %p185 = por %p183, %p184
      %p187 = scmp.ne.s32.totalorder %s170, %s186
      %p188 = scmp.eq.s32.totalorder %s26, 0
      %p189 = por %p187, %p188
      %s190 = ssub.s32 %s20, %s27
      %p191 = scmp.eq.s32.totalorder %s190, 0
      %s193 = sadd.s32 %s192, 1
      %s194 = scalar_select %p191, %s192, %s193
      %p197 = pneg %p191
      %p198 = scmp.eq.s32.totalorder %s20, 2
      %p199 = por %p197, %p198
      %p200 = scmp.ne.s32.totalorder %s192, %s195
      %p201 = scmp.eq.s32.totalorder %s20, 0
      %p202 = por %p200, %p201
      %p203 = scmp.ne.s32.totalorder %s192, %s195
      %p204 = scmp.eq.s32.totalorder %s25, 2
      %p205 = por %p203, %p204
      %p206 = scmp.ne.s32.totalorder %s195, %s196
      %p207 = scmp.eq.s32.totalorder %s25, 0
      %p208 = por %p206, %p207
      %p209 = scmp.ne.s32.totalorder %s195, %s196
      %p210 = scmp.eq.s32.totalorder %s26, 2
      %p211 = por %p209, %p210
      %p213 = scmp.ne.s32.totalorder %s196, %s212
      %p214 = scmp.eq.s32.totalorder %s26, 0
      %p215 = por %p213, %p214
      %s216 = ssub.s32 %s20, %s27
      %p217 = scmp.eq.s32.totalorder %s216, 0
      %s219 = sadd.s32 %s218, 1
      %s220 = scalar_select %p217, %s218, %s219
      %p223 = pneg %p217
      %p224 = scmp.eq.s32.totalorder %s20, 2
      %p225 = por %p223, %p224
      %p226 = scmp.ne.s32.totalorder %s218, %s221
      %p227 = scmp.eq.s32.totalorder %s20, 0
      %p228 = por %p226, %p227
      %p229 = scmp.ne.s32.totalorder %s218, %s221
      %p230 = scmp.eq.s32.totalorder %s25, 2
      %p231 = por %p229, %p230
      %p232 = scmp.ne.s32.totalorder %s221, %s222
      %p233 = scmp.eq.s32.totalorder %s25, 0
      %p234 = por %p232, %p233
      %p235 = scmp.ne.s32.totalorder %s221, %s222
      %p236 = scmp.eq.s32.totalorder %s26, 2
      %p237 = por %p235, %p236
      %p239 = scmp.ne.s32.totalorder %s222, %s238
      %p240 = scmp.eq.s32.totalorder %s26, 0
      %p241 = por %p239, %p240
      %s242 = ssub.s32 %s20, %s27
      %p243 = scmp.eq.s32.totalorder %s242, 0
      %s245 = sadd.s32 %s244, 1
      %s246 = scalar_select %p243, %s244, %s245
      %p249 = pneg %p243
      %p250 = scmp.eq.s32.totalorder %s20, 2
      %p251 = por %p249, %p250
      %p252 = scmp.ne.s32.totalorder %s244, %s247
      %p253 = scmp.eq.s32.totalorder %s20, 0
      %p254 = por %p252, %p253
      %p255 = scmp.ne.s32.totalorder %s244, %s247
      %p256 = scmp.eq.s32.totalorder %s25, 2
      %p257 = por %p255, %p256
      %p258 = scmp.ne.s32.totalorder %s247, %s248
      %p259 = scmp.eq.s32.totalorder %s25, 0
      %p260 = por %p258, %p259
      %p261 = scmp.ne.s32.totalorder %s247, %s248
      %p262 = scmp.eq.s32.totalorder %s26, 2
      %p263 = por %p261, %p262
      %p265 = scmp.ne.s32.totalorder %s248, %s264
      %p266 = scmp.eq.s32.totalorder %s26, 0
      %p267 = por %p265, %p266
      %s268 = ssub.s32 %s20, %s27
      %p269 = scmp.eq.s32.totalorder %s268, 0
      %s271 = sadd.s32 %s270, 1
      %s272 = scalar_select %p269, %s270, %s271
      %p275 = pneg %p269
      %p276 = scmp.eq.s32.totalorder %s20, 2
      %p277 = por %p275, %p276
      %p278 = scmp.ne.s32.totalorder %s270, %s273
      %p279 = scmp.eq.s32.totalorder %s20, 0
      %p280 = por %p278, %p279
      %p281 = scmp.ne.s32.totalorder %s270, %s273
      %p282 = scmp.eq.s32.totalorder %s25, 2
      %p283 = por %p281, %p282
      %p284 = scmp.ne.s32.totalorder %s273, %s274
      %p285 = scmp.eq.s32.totalorder %s25, 0
      %p286 = por %p284, %p285
      %p287 = scmp.ne.s32.totalorder %s273, %s274
      %p288 = scmp.eq.s32.totalorder %s26, 2
      %p289 = por %p287, %p288
      %p291 = scmp.ne.s32.totalorder %s274, %s290
      %p292 = scmp.eq.s32.totalorder %s26, 0
      %p293 = por %p291, %p292
      %s295 = sadd.s32 %s294, 1
      %p298 = scmp.eq.s32.totalorder %s20, 2
      %p299 = scmp.ne.s32.totalorder %s294, %s296
      %p300 = scmp.eq.s32.totalorder %s20, 0
      %p301 = por %p299, %p300
      %p302 = scmp.ne.s32.totalorder %s294, %s296
      %p303 = scmp.eq.s32.totalorder %s25, 2
      %p304 = por %p302, %p303
      %p305 = scmp.ne.s32.totalorder %s296, %s297
      %p306 = scmp.eq.s32.totalorder %s25, 0
      %p307 = por %p305, %p306
      %p308 = scmp.ne.s32.totalorder %s296, %s297
      %p309 = scmp.eq.s32.totalorder %s26, 2
      %p310 = por %p308, %p309
      %p312 = scmp.ne.s32.totalorder %s297, %s311
      %p313 = scmp.eq.s32.totalorder %s26, 0
      %p314 = por %p312, %p313
      %p315 = scmp.le.s32.totalorder 1, %s20
      %p316 = scmp.lt.s32.totalorder %s20, 4
      %p317 = pnand %p315, %p316
      %p318 = pneg %p317
      // Predicated region
      $region9: #{tpu_custom_call.1} parent=5 // pred_check
        _
      $region10: #{tpu_custom_call.1} parent=5 // pred_check_branch
        %320 = sbr.rel (%p317) target = $region12
      $region11: #{tpu_custom_call.1} parent=5 // pred_region
        %s321 = ssub.s32 %s20, 1
        // Predicated region
        $region13: #{tpu_custom_call.1} parent=11 // pred_check
          %p322 = pneg %p41
        $region14: #{tpu_custom_call.1} parent=11 // pred_check_branch
          %324 = sbr.rel (%p322) target = $region16
        $region15: #{tpu_custom_call.1} parent=11 // pred_region
          _
        $region16: #{tpu_custom_call.1} parent=11 // pred_fallthru
          _
        // Predicated region
        $region17: #{tpu_custom_call.1} parent=11 // pred_check
          %p325 = pneg %p62
        $region18: #{tpu_custom_call.1} parent=11 // pred_check_branch
          %327 = sbr.rel (%p325) target = $region20
        $region19: #{tpu_custom_call.1} parent=11 // pred_region
          %s329 = ssub.s32 2048, 2048
          %330 = vsyncadd [#allocation3], %s329
          %s331 = sshll.u32 [#allocation2], 4
          %s332 = int_to_ptr.vmem [resolvable:$true] %s331
          %337 = dma.hbm_to_vmem [thread:$0]  %s1, 2048, %s332, [#allocation3], 64, 64, 4
        $region20: #{tpu_custom_call.1} parent=11 // pred_fallthru
          _
        // Predicated region
        $region21: #{tpu_custom_call.1} parent=11 // pred_check
          %p338 = pneg %p83
        $region22: #{tpu_custom_call.1} parent=11 // pred_check_branch
          %340 = sbr.rel (%p338) target = $region24
        $region23: #{tpu_custom_call.1} parent=11 // pred_region
          %s342 = ssub.s32 2048, 2048
          %343 = vsyncadd [#allocation6], %s342
          %s344 = sshll.u32 [#allocation5], 4
          %s345 = int_to_ptr.vmem [resolvable:$true] %s344
          %350 = dma.hbm_to_vmem [thread:$0]  %s2, 2048, %s345, [#allocation6], 128, 128, 8
        $region24: #{tpu_custom_call.1} parent=11 // pred_fallthru
          _
        // Predicated region
        $region25: #{tpu_custom_call.1} parent=11 // pred_check
          %p351 = pneg %p104
        $region26: #{tpu_custom_call.1} parent=11 // pred_check_branch
          %353 = sbr.rel (%p351) target = $region28
        $region27: #{tpu_custom_call.1} parent=11 // pred_region
          _
        $region28: #{tpu_custom_call.1} parent=11 // pred_fallthru
          _
      $region12: #{tpu_custom_call.1} parent=5 // pred_fallthru
        _
      %p354 = scmp.lt.s32.totalorder %s20, 3
      // Predicated region
      $region29: #{tpu_custom_call.1} parent=5 // pred_check
        %p355 = pneg %p354
      $region30: #{tpu_custom_call.1} parent=5 // pred_check_branch
        %357 = sbr.rel (%p355) target = $region32
      $region31: #{tpu_custom_call.1} parent=5 // pred_region
        // Predicated region
        $region33: #{tpu_custom_call.1} parent=31 // pred_check
          %p358 = pneg %p124
        $region34: #{tpu_custom_call.1} parent=31 // pred_check_branch
          %360 = sbr.rel (%p358) target = $region36
        $region35: #{tpu_custom_call.1} parent=31 // pred_region
          %s361 = sand.u32 %s20, 1
          %s362 = scalar_lea.sflag [#allocation3], %s361
          %s363 = sand.u32 %s114, 1
          %s364 = smul.addr %s363, 4
          %s365 = scalar_lea.vmem [#allocation7], %s364
          %s367 = ssub.s32 64, 64
          %368 = vsyncadd %s362, %s367
          %s369 = smul.addr %s20, 64
          %s370 = scalar_lea.hbm %s4, %s369
          %s372 = sshll.u32 %s365, 4
          %s373 = int_to_ptr.vmem [resolvable:$true] %s372
          %375 = dma.hbm_to_vmem [thread:$0]  %s370, 64, %s373, %s362
        $region36: #{tpu_custom_call.1} parent=31 // pred_fallthru
          _
        // Predicated region
        $region37: #{tpu_custom_call.1} parent=31 // pred_check
          %p376 = pneg %p150
        $region38: #{tpu_custom_call.1} parent=31 // pred_check_branch
          %378 = sbr.rel (%p376) target = $region40
        $region39: #{tpu_custom_call.1} parent=31 // pred_region
          %s379 = sand.u32 %s20, 1
          %s380 = scalar_lea.sflag [#allocation3], %s379
          %s381 = sand.u32 %s140, 1
          %s382 = smul.addr %s381, 128
          %s383 = scalar_lea.vmem [#allocation8], %s382
          %s385 = ssub.s32 2048, 2048
          %386 = vsyncadd %s380, %s385
          %s387 = smul.addr %s20, 32
          %s388 = smul.addr %s387, 64
          %s389 = scalar_lea.hbm %s5, %s388
          %s390 = sshll.u32 %s383, 4
          %s391 = int_to_ptr.vmem [resolvable:$true] %s390
          %396 = dma.hbm_to_vmem [thread:$0]  %s389, 2048, %s391, %s380, 128, 128, 8
        $region40: #{tpu_custom_call.1} parent=31 // pred_fallthru
          _
        // Predicated region
        $region41: #{tpu_custom_call.1} parent=31 // pred_check
          %p397 = pneg %p176
        $region42: #{tpu_custom_call.1} parent=31 // pred_check_branch
          %399 = sbr.rel (%p397) target = $region44
        $region43: #{tpu_custom_call.1} parent=31 // pred_region
          %p400 = scmp.lt.s32.totalorder %s20, 2
          %s401 = scalar_select %p400, %s20, 2
          %s402 = smul.addr %s401, 2
          %s403 = scalar_lea.vmem %s6, %s402
        $region44: #{tpu_custom_call.1} parent=31 // pred_fallthru
          _
        // Predicated region
        $region45: #{tpu_custom_call.1} parent=31 // pred_check
          %p404 = pneg %p202
        $region46: #{tpu_custom_call.1} parent=31 // pred_check_branch
          %406 = sbr.rel (%p404) target = $region48
        $region47: #{tpu_custom_call.1} parent=31 // pred_region
          %s407 = sand.u32 %s20, 1
          %s408 = scalar_lea.sflag [#allocation3], %s407
          %s409 = sand.u32 %s192, 1
          %s410 = smul.addr %s409, 128
          %s411 = scalar_lea.vmem [#allocation9], %s410
          %s413 = ssub.s32 2048, 2048
          %414 = vsyncadd %s408, %s413
          %s415 = smul.addr %s20, 32
          %s416 = smul.addr %s415, 64
          %s417 = scalar_lea.hbm %s7, %s416
          %s418 = sshll.u32 %s411, 4
          %s419 = int_to_ptr.vmem [resolvable:$true] %s418
          %424 = dma.hbm_to_vmem [thread:$0]  %s417, 2048, %s419, %s408, 64, 64, 4
        $region48: #{tpu_custom_call.1} parent=31 // pred_fallthru
          _
        // Predicated region
        $region49: #{tpu_custom_call.1} parent=31 // pred_check
          %p425 = pneg %p228
        $region50: #{tpu_custom_call.1} parent=31 // pred_check_branch
          %427 = sbr.rel (%p425) target = $region52
        $region51: #{tpu_custom_call.1} parent=31 // pred_region
          %p428 = scmp.lt.s32.totalorder %s20, 2
          %s429 = scalar_select %p428, %s20, 2
          %s430 = scalar_lea.vmem %s8, %s429
        $region52: #{tpu_custom_call.1} parent=31 // pred_fallthru
          _
        // Predicated region
        $region53: #{tpu_custom_call.1} parent=31 // pred_check
          %p431 = pneg %p254
        $region54: #{tpu_custom_call.1} parent=31 // pred_check_branch
          %433 = sbr.rel (%p431) target = $region56
        $region55: #{tpu_custom_call.1} parent=31 // pred_region
          %p434 = scmp.lt.s32.totalorder %s20, 2
          %s435 = scalar_select %p434, %s20, 2
          %s436 = scalar_lea.vmem %s9, %s435
        $region56: #{tpu_custom_call.1} parent=31 // pred_fallthru
          _
        // Predicated region
        $region57: #{tpu_custom_call.1} parent=31 // pred_check
          %p437 = pneg %p280
        $region58: #{tpu_custom_call.1} parent=31 // pred_check_branch
          %439 = sbr.rel (%p437) target = $region60
        $region59: #{tpu_custom_call.1} parent=31 // pred_region
          %p440 = scmp.lt.s32.totalorder %s20, 2
          %s441 = scalar_select %p440, %s20, 2
          %s442 = scalar_lea.vmem %s10, %s441
        $region60: #{tpu_custom_call.1} parent=31 // pred_fallthru
          _
      $region32: #{tpu_custom_call.1} parent=5 // pred_fallthru
        _
      %p443 = scmp.le.s32.totalorder 1, %s20
      %p444 = scmp.lt.s32.totalorder %s20, 4
      %p445 = pnand %p443, %p444
      %p446 = pneg %p445
      // Predicated region
      $region61: #{tpu_custom_call.1} parent=5 // pred_check
        _
      $region62: #{tpu_custom_call.1} parent=5 // pred_check_branch
        %448 = sbr.rel (%p445) target = $region64
      $region63: #{tpu_custom_call.1} parent=5 // pred_region
        %s449 = ssub.s32 %s20, 1
        // Predicated region
        $region65: #{tpu_custom_call.1} parent=63 // pred_check
          %p450 = pneg %p62
        $region66: #{tpu_custom_call.1} parent=63 // pred_check_branch
          %452 = sbr.rel (%p450) target = $region68
        $region67: #{tpu_custom_call.1} parent=63 // pred_region
          %453 = dma.done [#allocation3], 2048
        $region68: #{tpu_custom_call.1} parent=63 // pred_fallthru
          _
        // Predicated region
        $region69: #{tpu_custom_call.1} parent=63 // pred_check
          %p454 = pneg %p83
        $region70: #{tpu_custom_call.1} parent=63 // pred_check_branch
          %456 = sbr.rel (%p454) target = $region72
        $region71: #{tpu_custom_call.1} parent=63 // pred_region
          %457 = dma.done [#allocation6], 2048
        $region72: #{tpu_custom_call.1} parent=63 // pred_fallthru
          _
        %s458 = sand.u32 %s25, 1
        %s459 = scalar_lea.sflag [#allocation3], %s458
        %s460 = sand.u32 %s117, 1
        %s461 = smul.addr %s460, 4
        %s462 = scalar_lea.vmem [#allocation7], %s461
        // Predicated region
        $region73: #{tpu_custom_call.1} parent=63 // pred_check
          %p463 = pneg %p130
        $region74: #{tpu_custom_call.1} parent=63 // pred_check_branch
          %465 = sbr.rel (%p463) target = $region76
        $region75: #{tpu_custom_call.1} parent=63 // pred_region
          %466 = dma.done %s459, 64
        $region76: #{tpu_custom_call.1} parent=63 // pred_fallthru
          _
        %s467 = sand.u32 %s25, 1
        %s468 = scalar_lea.sflag [#allocation3], %s467
        %s469 = sand.u32 %s143, 1
        %s470 = smul.addr %s469, 128
        %s471 = scalar_lea.vmem [#allocation8], %s470
        // Predicated region
        $region77: #{tpu_custom_call.1} parent=63 // pred_check
          %p472 = pneg %p156
        $region78: #{tpu_custom_call.1} parent=63 // pred_check_branch
          %474 = sbr.rel (%p472) target = $region80
        $region79: #{tpu_custom_call.1} parent=63 // pred_region
          %475 = dma.done %s468, 2048
        $region80: #{tpu_custom_call.1} parent=63 // pred_fallthru
          _
        %s476 = sand.u32 %s25, 1
        %s477 = scalar_lea.sflag [#allocation3], %s476
        %s478 = sand.u32 %s195, 1
        %s479 = smul.addr %s478, 128
        %s480 = scalar_lea.vmem [#allocation9], %s479
        // Predicated region
        $region81: #{tpu_custom_call.1} parent=63 // pred_check
          %p481 = pneg %p208
        $region82: #{tpu_custom_call.1} parent=63 // pred_check_branch
          %483 = sbr.rel (%p481) target = $region84
        $region83: #{tpu_custom_call.1} parent=63 // pred_region
          %484 = dma.done %s477, 2048
        $region84: #{tpu_custom_call.1} parent=63 // pred_fallthru
          _
        %p485 = pneg %p41
        %p486 = pneg %p38
        %p487 = pneg %p62
        %p488 = pneg %p59
        %p489 = pneg %p83
        %p490 = pneg %p80
        %p491 = pneg %p104
        %p492 = pneg %p101
        %s493 = sand.u32 %s25, 1
        %s494 = scalar_lea.sflag [#allocation3], %s493
        %s495 = sand.u32 %s117, 1
        %s496 = smul.addr %s495, 4
        %s497 = scalar_lea.vmem [#allocation7], %s496
        %p498 = pneg %p130
        %p499 = pneg %p127
        %s500 = sand.u32 %s25, 1
        %s501 = scalar_lea.sflag [#allocation3], %s500
        %s502 = sand.u32 %s143, 1
        %s503 = smul.addr %s502, 128
        %s504 = scalar_lea.vmem [#allocation8], %s503
        %p505 = pneg %p156
        %p506 = pneg %p153
        %p507 = scmp.lt.s32.totalorder %s25, 2
        %s508 = scalar_select %p507, %s25, 2
        %s509 = smul.addr %s508, 2
        %s510 = scalar_lea.vmem %s6, %s509
        %p511 = pneg %p182
        %p512 = pneg %p179
        %s513 = sand.u32 %s25, 1
        %s514 = scalar_lea.sflag [#allocation3], %s513
        %s515 = sand.u32 %s195, 1
        %s516 = smul.addr %s515, 128
        %s517 = scalar_lea.vmem [#allocation9], %s516
        %p518 = pneg %p208
        %p519 = pneg %p205
        %p520 = scmp.lt.s32.totalorder %s25, 2
        %s521 = scalar_select %p520, %s25, 2
        %s522 = scalar_lea.vmem %s8, %s521
        %p523 = pneg %p234
        %p524 = pneg %p231
        %p525 = scmp.lt.s32.totalorder %s25, 2
        %s526 = scalar_select %p525, %s25, 2
        %s527 = scalar_lea.vmem %s9, %s526
        %p528 = pneg %p260
        %p529 = pneg %p257
        %p530 = scmp.lt.s32.totalorder %s25, 2
        %s531 = scalar_select %p530, %s25, 2
        %s532 = scalar_lea.vmem %s10, %s531
        %p533 = pneg %p286
        %p534 = pneg %p283
        %p535 = pneg %p307
        %p536 = pneg %p304
        %p537 = scmp.lt.s32.totalorder %s25, 2
        %s538 = scalar_select %p537, %s25, 2
        %s539 = smul.addr %s538, 2
        %s540 = scalar_lea.vmem %s6, %s539
        %p541 = scmp.lt.s32.totalorder %s25, 2
        %s542 = scalar_select %p541, %s25, 2
        %s543 = scalar_lea.vmem %s8, %s542
        %p544 = scmp.lt.s32.totalorder %s25, 2
        %s545 = scalar_select %p544, %s25, 2
        %s546 = scalar_lea.vmem %s9, %s545
        %p547 = scmp.lt.s32.totalorder %s25, 2
        %s548 = scalar_select %p547, %s25, 2
        %s549 = scalar_lea.vmem %s10, %s548
        %p551 = scmp.eq.s32.totalorder %s25, 0
        // Predicated region
        $region85: #{tpu_custom_call.1} parent=63 // pred_check
          %p552 = pneg %p551
        $region86: #{tpu_custom_call.1} parent=63 // pred_check_branch
          %554 = sbr.rel (%p552) target = $region88
        $region87: #{tpu_custom_call.1} parent=63 // pred_region
          %v555 = vld [vmem:[%s0] sm:$0xff]
          %v556 = vld [vmem:[%s0 + $0x8] sm:$0xff]
          %v557 = vld [vmem:[%s0 + $0x10] sm:$0xff]
          %v558 = vld [vmem:[%s0 + $0x18] sm:$0xff]
          %v559 = vld [vmem:[%s0 + $0x20] sm:$0xff]
          %v560 = vld [vmem:[%s0 + $0x28] sm:$0xff]
          %v561 = vld [vmem:[%s0 + $0x30] sm:$0xff]
          %v562 = vld [vmem:[%s0 + $0x38] sm:$0xff]
          %v563 = vld [vmem:[%s0 + $0x40] sm:$0xff]
          %v564 = vld [vmem:[%s0 + $0x48] sm:$0xff]
          %v565 = vld [vmem:[%s0 + $0x50] sm:$0xff]
          %v566 = vld [vmem:[%s0 + $0x58] sm:$0xff]
          %v567 = vld [vmem:[%s0 + $0x60] sm:$0xff]
          %v568 = vld [vmem:[%s0 + $0x68] sm:$0xff]
          %v569 = vld [vmem:[%s0 + $0x70] sm:$0xff]
          %v570 = vld [vmem:[%s0 + $0x78] sm:$0xff]
          %571 = vst [vmem:[#allocation10] sm:$0xff] %v555
          %572 = vst [vmem:[#allocation10 + $0x8] sm:$0xff] %v556
          %573 = vst [vmem:[#allocation10 + $0x10] sm:$0xff] %v557
          %574 = vst [vmem:[#allocation10 + $0x18] sm:$0xff] %v558
          %575 = vst [vmem:[#allocation10 + $0x20] sm:$0xff] %v559
          %576 = vst [vmem:[#allocation10 + $0x28] sm:$0xff] %v560
          %577 = vst [vmem:[#allocation10 + $0x30] sm:$0xff] %v561
          %578 = vst [vmem:[#allocation10 + $0x38] sm:$0xff] %v562
          %579 = vst [vmem:[#allocation10 + $0x40] sm:$0xff] %v563
          %580 = vst [vmem:[#allocation10 + $0x48] sm:$0xff] %v564
          %581 = vst [vmem:[#allocation10 + $0x50] sm:$0xff] %v565
          %582 = vst [vmem:[#allocation10 + $0x58] sm:$0xff] %v566
          %583 = vst [vmem:[#allocation10 + $0x60] sm:$0xff] %v567
          %584 = vst [vmem:[#allocation10 + $0x68] sm:$0xff] %v568
          %585 = vst [vmem:[#allocation10 + $0x70] sm:$0xff] %v569
          %586 = vst [vmem:[#allocation10 + $0x78] sm:$0xff] %v570
        $region88: #{tpu_custom_call.1} parent=63 // pred_fallthru
          _
        %v587 = vld [vmem:[#allocation10] sm:$0xff]
        %v588 = vld [vmem:[#allocation10 + $0x8] sm:$0xff]
        %v589 = vld [vmem:[#allocation10 + $0x10] sm:$0xff]
        %v590 = vld [vmem:[#allocation10 + $0x18] sm:$0xff]
        %v591 = vld [vmem:[#allocation10 + $0x20] sm:$0xff]
        %v592 = vld [vmem:[#allocation10 + $0x28] sm:$0xff]
        %v593 = vld [vmem:[#allocation10 + $0x30] sm:$0xff]
        %v594 = vld [vmem:[#allocation10 + $0x38] sm:$0xff]
        %v595 = vld [vmem:[#allocation10 + $0x40] sm:$0xff]
        %v596 = vld [vmem:[#allocation10 + $0x48] sm:$0xff]
        %v597 = vld [vmem:[#allocation10 + $0x50] sm:$0xff]
        %v598 = vld [vmem:[#allocation10 + $0x58] sm:$0xff]
        %v599 = vld [vmem:[#allocation10 + $0x60] sm:$0xff]
        %v600 = vld [vmem:[#allocation10 + $0x68] sm:$0xff]
        %v601 = vld [vmem:[#allocation10 + $0x70] sm:$0xff]
        %v602 = vld [vmem:[#allocation10 + $0x78] sm:$0xff]
        %v603 = vpack.c.bf16 %v588, %v587
        %v604 = vpack.c.bf16 %v590, %v589
        %v605 = vpack.c.bf16 %v592, %v591
        %v606 = vpack.c.bf16 %v594, %v593
        %v607 = vpack.c.bf16 %v596, %v595
        %v608 = vpack.c.bf16 %v598, %v597
        %v609 = vpack.c.bf16 %v600, %v599
        %v610 = vpack.c.bf16 %v602, %v601
        %v611 = vld [vmem:[%s462] sm:$0xf]
        %v612 = vld [vmem:[%s3] sm:$0xf]
        %v613 = vld [vmem:[%s3 + $0x4] sm:$0xf]
        %v614 = vld [vmem:[%s3 + $0x8] sm:$0xf]
        %v615 = vld [vmem:[%s3 + $0xc] sm:$0xf]
        %v616 = vld [vmem:[%s3 + $0x10] sm:$0xf]
        %v617 = vld [vmem:[%s3 + $0x14] sm:$0xf]
        %v618 = vld [vmem:[%s3 + $0x18] sm:$0xf]
        %v619 = vld [vmem:[%s3 + $0x1c] sm:$0xf]
        %v620 = vld [vmem:[%s3 + $0x20] sm:$0xf]
        %v621 = vld [vmem:[%s3 + $0x24] sm:$0xf]
        %v622 = vld [vmem:[%s3 + $0x28] sm:$0xf]
        %v623 = vld [vmem:[%s3 + $0x2c] sm:$0xf]
        %v624 = vld [vmem:[%s3 + $0x30] sm:$0xf]
        %v625 = vld [vmem:[%s3 + $0x34] sm:$0xf]
        %v626 = vld [vmem:[%s3 + $0x38] sm:$0xf]
        %v627 = vld [vmem:[%s3 + $0x3c] sm:$0xf]
        %v628 = vld [vmem:[%s3 + $0x40] sm:$0xf]
        %v629 = vld [vmem:[%s3 + $0x44] sm:$0xf]
        %v630 = vld [vmem:[%s3 + $0x48] sm:$0xf]
        %v631 = vld [vmem:[%s3 + $0x4c] sm:$0xf]
        %v632 = vld [vmem:[%s3 + $0x50] sm:$0xf]
        %v633 = vld [vmem:[%s3 + $0x54] sm:$0xf]
        %v634 = vld [vmem:[%s3 + $0x58] sm:$0xf]
        %v635 = vld [vmem:[%s3 + $0x5c] sm:$0xf]
        %v636 = vld [vmem:[%s3 + $0x60] sm:$0xf]
        %v637 = vld [vmem:[%s3 + $0x64] sm:$0xf]
        %v638 = vld [vmem:[%s3 + $0x68] sm:$0xf]
        %v639 = vld [vmem:[%s3 + $0x6c] sm:$0xf]
        %v640 = vld [vmem:[%s3 + $0x70] sm:$0xf]
        %v641 = vld [vmem:[%s3 + $0x74] sm:$0xf]
        %v642 = vld [vmem:[%s3 + $0x78] sm:$0xf]
        %v643 = vld [vmem:[%s3 + $0x7c] sm:$0xf]
        %v644 = vunpack.c.l.bf16 %v612
        %v645 = vunpack.c.l.bf16 %v613
        %v646 = vunpack.c.l.bf16 %v614
        %v647 = vunpack.c.l.bf16 %v615
        %v648 = vunpack.c.l.bf16 %v616
        %v649 = vunpack.c.l.bf16 %v617
        %v650 = vunpack.c.l.bf16 %v618
        %v651 = vunpack.c.l.bf16 %v619
        %v652 = vunpack.c.l.bf16 %v620
        %v653 = vunpack.c.l.bf16 %v621
        %v654 = vunpack.c.l.bf16 %v622
        %v655 = vunpack.c.l.bf16 %v623
        %v656 = vunpack.c.l.bf16 %v624
        %v657 = vunpack.c.l.bf16 %v625
        %v658 = vunpack.c.l.bf16 %v626
        %v659 = vunpack.c.l.bf16 %v627
        %v660 = vunpack.c.l.bf16 %v628
        %v661 = vunpack.c.l.bf16 %v629
        %v662 = vunpack.c.l.bf16 %v630
        %v663 = vunpack.c.l.bf16 %v631
        %v664 = vunpack.c.l.bf16 %v632
        %v665 = vunpack.c.l.bf16 %v633
        %v666 = vunpack.c.l.bf16 %v634
        %v667 = vunpack.c.l.bf16 %v635
        %v668 = vunpack.c.l.bf16 %v636
        %v669 = vunpack.c.l.bf16 %v637
        %v670 = vunpack.c.l.bf16 %v638
        %v671 = vunpack.c.l.bf16 %v639
        %v672 = vunpack.c.l.bf16 %v640
        %v673 = vunpack.c.l.bf16 %v641
        %v674 = vunpack.c.l.bf16 %v642
        %v675 = vunpack.c.l.bf16 %v643
        %677 = vset.pattern.permute.xlu0 0
        %678 = vperm.xlu0 %677, %v644
        %v679 = vpop.permute.xlu0 %678
        %682 = vset.pattern.permute.xlu0 0
        %683 = vperm.xlu0 %682, %v645
        %v684 = vpop.permute.xlu0 %683
        %687 = vset.pattern.permute.xlu0 0
        %688 = vperm.xlu0 %687, %v646
        %v689 = vpop.permute.xlu0 %688
        %692 = vset.pattern.permute.xlu0 0
        %693 = vperm.xlu0 %692, %v647
        %v694 = vpop.permute.xlu0 %693
        %697 = vset.pattern.permute.xlu0 0
        %698 = vperm.xlu0 %697, %v648
        %v699 = vpop.permute.xlu0 %698
        %702 = vset.pattern.permute.xlu0 0
        %703 = vperm.xlu0 %702, %v649
        %v704 = vpop.permute.xlu0 %703
        %707 = vset.pattern.permute.xlu0 0
        %708 = vperm.xlu0 %707, %v650
        %v709 = vpop.permute.xlu0 %708
        %712 = vset.pattern.permute.xlu0 0
        %713 = vperm.xlu0 %712, %v651
        %v714 = vpop.permute.xlu0 %713
        %717 = vset.pattern.permute.xlu0 0
        %718 = vperm.xlu0 %717, %v652
        %v719 = vpop.permute.xlu0 %718
        %722 = vset.pattern.permute.xlu0 0
        %723 = vperm.xlu0 %722, %v653
        %v724 = vpop.permute.xlu0 %723
        %727 = vset.pattern.permute.xlu0 0
        %728 = vperm.xlu0 %727, %v654
        %v729 = vpop.permute.xlu0 %728
        %732 = vset.pattern.permute.xlu0 0
        %733 = vperm.xlu0 %732, %v655
        %v734 = vpop.permute.xlu0 %733
        %737 = vset.pattern.permute.xlu0 0
        %738 = vperm.xlu0 %737, %v656
        %v739 = vpop.permute.xlu0 %738
        %742 = vset.pattern.permute.xlu0 0
        %743 = vperm.xlu0 %742, %v657
        %v744 = vpop.permute.xlu0 %743
        %747 = vset.pattern.permute.xlu0 0
        %748 = vperm.xlu0 %747, %v658
        %v749 = vpop.permute.xlu0 %748
        %752 = vset.pattern.permute.xlu0 0
        %753 = vperm.xlu0 %752, %v659
        %v754 = vpop.permute.xlu0 %753
        %757 = vset.pattern.permute.xlu0 0
        %758 = vperm.xlu0 %757, %v660
        %v759 = vpop.permute.xlu0 %758
        %762 = vset.pattern.permute.xlu0 0
        %763 = vperm.xlu0 %762, %v661
        %v764 = vpop.permute.xlu0 %763
        %767 = vset.pattern.permute.xlu0 0
        %768 = vperm.xlu0 %767, %v662
        %v769 = vpop.permute.xlu0 %768
        %772 = vset.pattern.permute.xlu0 0
        %773 = vperm.xlu0 %772, %v663
        %v774 = vpop.permute.xlu0 %773
        %777 = vset.pattern.permute.xlu0 0
        %778 = vperm.xlu0 %777, %v664
        %v779 = vpop.permute.xlu0 %778
        %782 = vset.pattern.permute.xlu0 0
        %783 = vperm.xlu0 %782, %v665
        %v784 = vpop.permute.xlu0 %783
        %787 = vset.pattern.permute.xlu0 0
        %788 = vperm.xlu0 %787, %v666
        %v789 = vpop.permute.xlu0 %788
        %792 = vset.pattern.permute.xlu0 0
        %793 = vperm.xlu0 %792, %v667
        %v794 = vpop.permute.xlu0 %793
        %797 = vset.pattern.permute.xlu0 0
        %798 = vperm.xlu0 %797, %v668
        %v799 = vpop.permute.xlu0 %798
        %802 = vset.pattern.permute.xlu0 0
        %803 = vperm.xlu0 %802, %v669
        %v804 = vpop.permute.xlu0 %803
        %807 = vset.pattern.permute.xlu0 0
        %808 = vperm.xlu0 %807, %v670
        %v809 = vpop.permute.xlu0 %808
        %812 = vset.pattern.permute.xlu0 0
        %813 = vperm.xlu0 %812, %v671
        %v814 = vpop.permute.xlu0 %813
        %817 = vset.pattern.permute.xlu0 0
        %818 = vperm.xlu0 %817, %v672
        %v819 = vpop.permute.xlu0 %818
        %822 = vset.pattern.permute.xlu0 0
        %823 = vperm.xlu0 %822, %v673
        %v824 = vpop.permute.xlu0 %823
        %827 = vset.pattern.permute.xlu0 0
        %828 = vperm.xlu0 %827, %v674
        %v829 = vpop.permute.xlu0 %828
        %832 = vset.pattern.permute.xlu0 0
        %833 = vperm.xlu0 %832, %v675
        %v834 = vpop.permute.xlu0 %833
        %v836 = vlaneseq
        %v837 = vshrl.u32 %v836, 7
        %v838 = vsub.s32 0, %v837
        %v839 = vrot.slane %v611, %v838
        %v840 = vmul.f32 %v679, %v839
        %v841 = vmul.f32 %v684, %v839
        %v842 = vmul.f32 %v689, %v839
        %v843 = vmul.f32 %v694, %v839
        %v844 = vmul.f32 %v699, %v839
        %v845 = vmul.f32 %v704, %v839
        %v846 = vmul.f32 %v709, %v839
        %v847 = vmul.f32 %v714, %v839
        %v848 = vmul.f32 %v719, %v839
        %v849 = vmul.f32 %v724, %v839
        %v850 = vmul.f32 %v729, %v839
        %v851 = vmul.f32 %v734, %v839
        %v852 = vmul.f32 %v739, %v839
        %v853 = vmul.f32 %v744, %v839
        %v854 = vmul.f32 %v749, %v839
        %v855 = vmul.f32 %v754, %v839
        %v856 = vmul.f32 %v759, %v839
        %v857 = vmul.f32 %v764, %v839
        %v858 = vmul.f32 %v769, %v839
        %v859 = vmul.f32 %v774, %v839
        %v860 = vmul.f32 %v779, %v839
        %v861 = vmul.f32 %v784, %v839
        %v862 = vmul.f32 %v789, %v839
        %v863 = vmul.f32 %v794, %v839
        %v864 = vmul.f32 %v799, %v839
        %v865 = vmul.f32 %v804, %v839
        %v866 = vmul.f32 %v809, %v839
        %v867 = vmul.f32 %v814, %v839
        %v868 = vmul.f32 %v819, %v839
        %v869 = vmul.f32 %v824, %v839
        %v870 = vmul.f32 %v829, %v839
        %v871 = vmul.f32 %v834, %v839
        %872 = vset.pattern.permute.xlu0 1
        %873 = vperm.xlu0 %872, %v644
        %v874 = vpop.permute.xlu0 %873
        %876 = vset.pattern.permute.xlu0 1
        %877 = vperm.xlu0 %876, %v645
        %v878 = vpop.permute.xlu0 %877
        %880 = vset.pattern.permute.xlu0 1
        %881 = vperm.xlu0 %880, %v646
        %v882 = vpop.permute.xlu0 %881
        %884 = vset.pattern.permute.xlu0 1
        %885 = vperm.xlu0 %884, %v647
        %v886 = vpop.permute.xlu0 %885
        %888 = vset.pattern.permute.xlu0 1
        %889 = vperm.xlu0 %888, %v648
        %v890 = vpop.permute.xlu0 %889
        %892 = vset.pattern.permute.xlu0 1
        %893 = vperm.xlu0 %892, %v649
        %v894 = vpop.permute.xlu0 %893
        %896 = vset.pattern.permute.xlu0 1
        %897 = vperm.xlu0 %896, %v650
        %v898 = vpop.permute.xlu0 %897
        %900 = vset.pattern.permute.xlu0 1
        %901 = vperm.xlu0 %900, %v651
        %v902 = vpop.permute.xlu0 %901
        %904 = vset.pattern.permute.xlu0 1
        %905 = vperm.xlu0 %904, %v652
        %v906 = vpop.permute.xlu0 %905
        %908 = vset.pattern.permute.xlu0 1
        %909 = vperm.xlu0 %908, %v653
        %v910 = vpop.permute.xlu0 %909
        %912 = vset.pattern.permute.xlu0 1
        %913 = vperm.xlu0 %912, %v654
        %v914 = vpop.permute.xlu0 %913
        %916 = vset.pattern.permute.xlu0 1
        %917 = vperm.xlu0 %916, %v655
        %v918 = vpop.permute.xlu0 %917
        %920 = vset.pattern.permute.xlu0 1
        %921 = vperm.xlu0 %920, %v656
        %v922 = vpop.permute.xlu0 %921
        %924 = vset.pattern.permute.xlu0 1
        %925 = vperm.xlu0 %924, %v657
        %v926 = vpop.permute.xlu0 %925
        %928 = vset.pattern.permute.xlu0 1
        %929 = vperm.xlu0 %928, %v658
        %v930 = vpop.permute.xlu0 %929
        %932 = vset.pattern.permute.xlu0 1
        %933 = vperm.xlu0 %932, %v659
        %v934 = vpop.permute.xlu0 %933
        %936 = vset.pattern.permute.xlu0 1
        %937 = vperm.xlu0 %936, %v660
        %v938 = vpop.permute.xlu0 %937
        %940 = vset.pattern.permute.xlu0 1
        %941 = vperm.xlu0 %940, %v661
        %v942 = vpop.permute.xlu0 %941
        %944 = vset.pattern.permute.xlu0 1
        %945 = vperm.xlu0 %944, %v662
        %v946 = vpop.permute.xlu0 %945
        %948 = vset.pattern.permute.xlu0 1
        %949 = vperm.xlu0 %948, %v663
        %v950 = vpop.permute.xlu0 %949
        %952 = vset.pattern.permute.xlu0 1
        %953 = vperm.xlu0 %952, %v664
        %v954 = vpop.permute.xlu0 %953
        %956 = vset.pattern.permute.xlu0 1
        %957 = vperm.xlu0 %956, %v665
        %v958 = vpop.permute.xlu0 %957
        %960 = vset.pattern.permute.xlu0 1
        %961 = vperm.xlu0 %960, %v666
        %v962 = vpop.permute.xlu0 %961
        %964 = vset.pattern.permute.xlu0 1
        %965 = vperm.xlu0 %964, %v667
        %v966 = vpop.permute.xlu0 %965
        %968 = vset.pattern.permute.xlu0 1
        %969 = vperm.xlu0 %968, %v668
        %v970 = vpop.permute.xlu0 %969
        %972 = vset.pattern.permute.xlu0 1
        %973 = vperm.xlu0 %972, %v669
        %v974 = vpop.permute.xlu0 %973
        %976 = vset.pattern.permute.xlu0 1
        %977 = vperm.xlu0 %976, %v670
        %v978 = vpop.permute.xlu0 %977
        %980 = vset.pattern.permute.xlu0 1
        %981 = vperm.xlu0 %980, %v671
        %v982 = vpop.permute.xlu0 %981
        %984 = vset.pattern.permute.xlu0 1
        %985 = vperm.xlu0 %984, %v672
        %v986 = vpop.permute.xlu0 %985
        %988 = vset.pattern.permute.xlu0 1
        %989 = vperm.xlu0 %988, %v673
        %v990 = vpop.permute.xlu0 %989
        %992 = vset.pattern.permute.xlu0 1
        %993 = vperm.xlu0 %992, %v674
        %v994 = vpop.permute.xlu0 %993
        %996 = vset.pattern.permute.xlu0 1
        %997 = vperm.xlu0 %996, %v675
        %v998 = vpop.permute.xlu0 %997
        %v1000 = vlaneseq
        %v1001 = vshrl.u32 %v1000, 7
        %v1002 = vsub.s32 1, %v1001
        %v1003 = vrot.slane %v611, %v1002
        %v1004 = vmul.f32 %v874, %v1003
        %v1005 = vmul.f32 %v878, %v1003
        %v1006 = vmul.f32 %v882, %v1003
        %v1007 = vmul.f32 %v886, %v1003
        %v1008 = vmul.f32 %v890, %v1003
        %v1009 = vmul.f32 %v894, %v1003
        %v1010 = vmul.f32 %v898, %v1003
        %v1011 = vmul.f32 %v902, %v1003
        %v1012 = vmul.f32 %v906, %v1003
        %v1013 = vmul.f32 %v910, %v1003
        %v1014 = vmul.f32 %v914, %v1003
        %v1015 = vmul.f32 %v918, %v1003
        %v1016 = vmul.f32 %v922, %v1003
        %v1017 = vmul.f32 %v926, %v1003
        %v1018 = vmul.f32 %v930, %v1003
        %v1019 = vmul.f32 %v934, %v1003
        %v1020 = vmul.f32 %v938, %v1003
        %v1021 = vmul.f32 %v942, %v1003
        %v1022 = vmul.f32 %v946, %v1003
        %v1023 = vmul.f32 %v950, %v1003
        %v1024 = vmul.f32 %v954, %v1003
        %v1025 = vmul.f32 %v958, %v1003
        %v1026 = vmul.f32 %v962, %v1003
        %v1027 = vmul.f32 %v966, %v1003
        %v1028 = vmul.f32 %v970, %v1003
        %v1029 = vmul.f32 %v974, %v1003
        %v1030 = vmul.f32 %v978, %v1003
        %v1031 = vmul.f32 %v982, %v1003
        %v1032 = vmul.f32 %v986, %v1003
        %v1033 = vmul.f32 %v990, %v1003
        %v1034 = vmul.f32 %v994, %v1003
        %v1035 = vmul.f32 %v998, %v1003
        %v1036 = vadd.f32 %v840, %v1004
        %v1037 = vadd.f32 %v841, %v1005
        %v1038 = vadd.f32 %v842, %v1006
        %v1039 = vadd.f32 %v843, %v1007
        %v1040 = vadd.f32 %v844, %v1008
        %v1041 = vadd.f32 %v845, %v1009
        %v1042 = vadd.f32 %v846, %v1010
        %v1043 = vadd.f32 %v847, %v1011
        %v1044 = vadd.f32 %v848, %v1012
        %v1045 = vadd.f32 %v849, %v1013
        %v1046 = vadd.f32 %v850, %v1014
        %v1047 = vadd.f32 %v851, %v1015
        %v1048 = vadd.f32 %v852, %v1016
        %v1049 = vadd.f32 %v853, %v1017
        %v1050 = vadd.f32 %v854, %v1018
        %v1051 = vadd.f32 %v855, %v1019
        %v1052 = vadd.f32 %v856, %v1020
        %v1053 = vadd.f32 %v857, %v1021
        %v1054 = vadd.f32 %v858, %v1022
        %v1055 = vadd.f32 %v859, %v1023
        %v1056 = vadd.f32 %v860, %v1024
        %v1057 = vadd.f32 %v861, %v1025
        %v1058 = vadd.f32 %v862, %v1026
        %v1059 = vadd.f32 %v863, %v1027
        %v1060 = vadd.f32 %v864, %v1028
        %v1061 = vadd.f32 %v865, %v1029
        %v1062 = vadd.f32 %v866, %v1030
        %v1063 = vadd.f32 %v867, %v1031
        %v1064 = vadd.f32 %v868, %v1032
        %v1065 = vadd.f32 %v869, %v1033
        %v1066 = vadd.f32 %v870, %v1034
        %v1067 = vadd.f32 %v871, %v1035
        %1068 = vset.pattern.permute.xlu0 2
        %1069 = vperm.xlu0 %1068, %v644
        %v1070 = vpop.permute.xlu0 %1069
        %1072 = vset.pattern.permute.xlu0 2
        %1073 = vperm.xlu0 %1072, %v645
        %v1074 = vpop.permute.xlu0 %1073
        %1076 = vset.pattern.permute.xlu0 2
        %1077 = vperm.xlu0 %1076, %v646
        %v1078 = vpop.permute.xlu0 %1077
        %1080 = vset.pattern.permute.xlu0 2
        %1081 = vperm.xlu0 %1080, %v647
        %v1082 = vpop.permute.xlu0 %1081
        %1084 = vset.pattern.permute.xlu0 2
        %1085 = vperm.xlu0 %1084, %v648
        %v1086 = vpop.permute.xlu0 %1085
        %1088 = vset.pattern.permute.xlu0 2
        %1089 = vperm.xlu0 %1088, %v649
        %v1090 = vpop.permute.xlu0 %1089
        %1092 = vset.pattern.permute.xlu0 2
        %1093 = vperm.xlu0 %1092, %v650
        %v1094 = vpop.permute.xlu0 %1093
        %1096 = vset.pattern.permute.xlu0 2
        %1097 = vperm.xlu0 %1096, %v651
        %v1098 = vpop.permute.xlu0 %1097
        %1100 = vset.pattern.permute.xlu0 2
        %1101 = vperm.xlu0 %1100, %v652
        %v1102 = vpop.permute.xlu0 %1101
        %1104 = vset.pattern.permute.xlu0 2
        %1105 = vperm.xlu0 %1104, %v653
        %v1106 = vpop.permute.xlu0 %1105
        %1108 = vset.pattern.permute.xlu0 2
        %1109 = vperm.xlu0 %1108, %v654
        %v1110 = vpop.permute.xlu0 %1109
        %1112 = vset.pattern.permute.xlu0 2
        %1113 = vperm.xlu0 %1112, %v655
        %v1114 = vpop.permute.xlu0 %1113
        %1116 = vset.pattern.permute.xlu0 2
        %1117 = vperm.xlu0 %1116, %v656
        %v1118 = vpop.permute.xlu0 %1117
        %1120 = vset.pattern.permute.xlu0 2
        %1121 = vperm.xlu0 %1120, %v657
        %v1122 = vpop.permute.xlu0 %1121
        %1124 = vset.pattern.permute.xlu0 2
        %1125 = vperm.xlu0 %1124, %v658
        %v1126 = vpop.permute.xlu0 %1125
        %1128 = vset.pattern.permute.xlu0 2
        %1129 = vperm.xlu0 %1128, %v659
        %v1130 = vpop.permute.xlu0 %1129
        %1132 = vset.pattern.permute.xlu0 2
        %1133 = vperm.xlu0 %1132, %v660
        %v1134 = vpop.permute.xlu0 %1133
        %1136 = vset.pattern.permute.xlu0 2
        %1137 = vperm.xlu0 %1136, %v661
        %v1138 = vpop.permute.xlu0 %1137
        %1140 = vset.pattern.permute.xlu0 2
        %1141 = vperm.xlu0 %1140, %v662
        %v1142 = vpop.permute.xlu0 %1141
        %1144 = vset.pattern.permute.xlu0 2
        %1145 = vperm.xlu0 %1144, %v663
        %v1146 = vpop.permute.xlu0 %1145
        %1148 = vset.pattern.permute.xlu0 2
        %1149 = vperm.xlu0 %1148, %v664
        %v1150 = vpop.permute.xlu0 %1149
        %1152 = vset.pattern.permute.xlu0 2
        %1153 = vperm.xlu0 %1152, %v665
        %v1154 = vpop.permute.xlu0 %1153
        %1156 = vset.pattern.permute.xlu0 2
        %1157 = vperm.xlu0 %1156, %v666
        %v1158 = vpop.permute.xlu0 %1157
        %1160 = vset.pattern.permute.xlu0 2
        %1161 = vperm.xlu0 %1160, %v667
        %v1162 = vpop.permute.xlu0 %1161
        %1164 = vset.pattern.permute.xlu0 2
        %1165 = vperm.xlu0 %1164, %v668
        %v1166 = vpop.permute.xlu0 %1165
        %1168 = vset.pattern.permute.xlu0 2
        %1169 = vperm.xlu0 %1168, %v669
        %v1170 = vpop.permute.xlu0 %1169
        %1172 = vset.pattern.permute.xlu0 2
        %1173 = vperm.xlu0 %1172, %v670
        %v1174 = vpop.permute.xlu0 %1173
        %1176 = vset.pattern.permute.xlu0 2
        %1177 = vperm.xlu0 %1176, %v671
        %v1178 = vpop.permute.xlu0 %1177
        %1180 = vset.pattern.permute.xlu0 2
        %1181 = vperm.xlu0 %1180, %v672
        %v1182 = vpop.permute.xlu0 %1181
        %1184 = vset.pattern.permute.xlu0 2
        %1185 = vperm.xlu0 %1184, %v673
        %v1186 = vpop.permute.xlu0 %1185
        %1188 = vset.pattern.permute.xlu0 2
        %1189 = vperm.xlu0 %1188, %v674
        %v1190 = vpop.permute.xlu0 %1189
        %1192 = vset.pattern.permute.xlu0 2
        %1193 = vperm.xlu0 %1192, %v675
        %v1194 = vpop.permute.xlu0 %1193
        %v1196 = vlaneseq
        %v1197 = vshrl.u32 %v1196, 7
        %v1198 = vsub.s32 2, %v1197
        %v1199 = vrot.slane %v611, %v1198
        %v1200 = vmul.f32 %v1070, %v1199
        %v1201 = vmul.f32 %v1074, %v1199
        %v1202 = vmul.f32 %v1078, %v1199
        %v1203 = vmul.f32 %v1082, %v1199
        %v1204 = vmul.f32 %v1086, %v1199
        %v1205 = vmul.f32 %v1090, %v1199
        %v1206 = vmul.f32 %v1094, %v1199
        %v1207 = vmul.f32 %v1098, %v1199
        %v1208 = vmul.f32 %v1102, %v1199
        %v1209 = vmul.f32 %v1106, %v1199
        %v1210 = vmul.f32 %v1110, %v1199
        %v1211 = vmul.f32 %v1114, %v1199
        %v1212 = vmul.f32 %v1118, %v1199
        %v1213 = vmul.f32 %v1122, %v1199
        %v1214 = vmul.f32 %v1126, %v1199
        %v1215 = vmul.f32 %v1130, %v1199
        %v1216 = vmul.f32 %v1134, %v1199
        %v1217 = vmul.f32 %v1138, %v1199
        %v1218 = vmul.f32 %v1142, %v1199
        %v1219 = vmul.f32 %v1146, %v1199
        %v1220 = vmul.f32 %v1150, %v1199
        %v1221 = vmul.f32 %v1154, %v1199
        %v1222 = vmul.f32 %v1158, %v1199
        %v1223 = vmul.f32 %v1162, %v1199
        %v1224 = vmul.f32 %v1166, %v1199
        %v1225 = vmul.f32 %v1170, %v1199
        %v1226 = vmul.f32 %v1174, %v1199
        %v1227 = vmul.f32 %v1178, %v1199
        %v1228 = vmul.f32 %v1182, %v1199
        %v1229 = vmul.f32 %v1186, %v1199
        %v1230 = vmul.f32 %v1190, %v1199
        %v1231 = vmul.f32 %v1194, %v1199
        %v1232 = vadd.f32 %v1036, %v1200
        %v1233 = vadd.f32 %v1037, %v1201
        %v1234 = vadd.f32 %v1038, %v1202
        %v1235 = vadd.f32 %v1039, %v1203
        %v1236 = vadd.f32 %v1040, %v1204
        %v1237 = vadd.f32 %v1041, %v1205
        %v1238 = vadd.f32 %v1042, %v1206
        %v1239 = vadd.f32 %v1043, %v1207
        %v1240 = vadd.f32 %v1044, %v1208
        %v1241 = vadd.f32 %v1045, %v1209
        %v1242 = vadd.f32 %v1046, %v1210
        %v1243 = vadd.f32 %v1047, %v1211
        %v1244 = vadd.f32 %v1048, %v1212
        %v1245 = vadd.f32 %v1049, %v1213
        %v1246 = vadd.f32 %v1050, %v1214
        %v1247 = vadd.f32 %v1051, %v1215
        %v1248 = vadd.f32 %v1052, %v1216
        %v1249 = vadd.f32 %v1053, %v1217
        %v1250 = vadd.f32 %v1054, %v1218
        %v1251 = vadd.f32 %v1055, %v1219
        %v1252 = vadd.f32 %v1056, %v1220
        %v1253 = vadd.f32 %v1057, %v1221
        %v1254 = vadd.f32 %v1058, %v1222
        %v1255 = vadd.f32 %v1059, %v1223
        %v1256 = vadd.f32 %v1060, %v1224
        %v1257 = vadd.f32 %v1061, %v1225
        %v1258 = vadd.f32 %v1062, %v1226
        %v1259 = vadd.f32 %v1063, %v1227
        %v1260 = vadd.f32 %v1064, %v1228
        %v1261 = vadd.f32 %v1065, %v1229
        %v1262 = vadd.f32 %v1066, %v1230
        %v1263 = vadd.f32 %v1067, %v1231
        %1264 = vset.pattern.permute.xlu0 3
        %1265 = vperm.xlu0 %1264, %v644
        %v1266 = vpop.permute.xlu0 %1265
        %1268 = vset.pattern.permute.xlu0 3
        %1269 = vperm.xlu0 %1268, %v645
        %v1270 = vpop.permute.xlu0 %1269
        %1272 = vset.pattern.permute.xlu0 3
        %1273 = vperm.xlu0 %1272, %v646
        %v1274 = vpop.permute.xlu0 %1273
        %1276 = vset.pattern.permute.xlu0 3
        %1277 = vperm.xlu0 %1276, %v647
        %v1278 = vpop.permute.xlu0 %1277
        %1280 = vset.pattern.permute.xlu0 3
        %1281 = vperm.xlu0 %1280, %v648
        %v1282 = vpop.permute.xlu0 %1281
        %1284 = vset.pattern.permute.xlu0 3
        %1285 = vperm.xlu0 %1284, %v649
        %v1286 = vpop.permute.xlu0 %1285
        %1288 = vset.pattern.permute.xlu0 3
        %1289 = vperm.xlu0 %1288, %v650
        %v1290 = vpop.permute.xlu0 %1289
        %1292 = vset.pattern.permute.xlu0 3
        %1293 = vperm.xlu0 %1292, %v651
        %v1294 = vpop.permute.xlu0 %1293
        %1296 = vset.pattern.permute.xlu0 3
        %1297 = vperm.xlu0 %1296, %v652
        %v1298 = vpop.permute.xlu0 %1297
        %1300 = vset.pattern.permute.xlu0 3
        %1301 = vperm.xlu0 %1300, %v653
        %v1302 = vpop.permute.xlu0 %1301
        %1304 = vset.pattern.permute.xlu0 3
        %1305 = vperm.xlu0 %1304, %v654
        %v1306 = vpop.permute.xlu0 %1305
        %1308 = vset.pattern.permute.xlu0 3
        %1309 = vperm.xlu0 %1308, %v655
        %v1310 = vpop.permute.xlu0 %1309
        %1312 = vset.pattern.permute.xlu0 3
        %1313 = vperm.xlu0 %1312, %v656
        %v1314 = vpop.permute.xlu0 %1313
        %1316 = vset.pattern.permute.xlu0 3
        %1317 = vperm.xlu0 %1316, %v657
        %v1318 = vpop.permute.xlu0 %1317
        %1320 = vset.pattern.permute.xlu0 3
        %1321 = vperm.xlu0 %1320, %v658
        %v1322 = vpop.permute.xlu0 %1321
        %1324 = vset.pattern.permute.xlu0 3
        %1325 = vperm.xlu0 %1324, %v659
        %v1326 = vpop.permute.xlu0 %1325
        %1328 = vset.pattern.permute.xlu0 3
        %1329 = vperm.xlu0 %1328, %v660
        %v1330 = vpop.permute.xlu0 %1329
        %1332 = vset.pattern.permute.xlu0 3
        %1333 = vperm.xlu0 %1332, %v661
        %v1334 = vpop.permute.xlu0 %1333
        %1336 = vset.pattern.permute.xlu0 3
        %1337 = vperm.xlu0 %1336, %v662
        %v1338 = vpop.permute.xlu0 %1337
        %1340 = vset.pattern.permute.xlu0 3
        %1341 = vperm.xlu0 %1340, %v663
        %v1342 = vpop.permute.xlu0 %1341
        %1344 = vset.pattern.permute.xlu0 3
        %1345 = vperm.xlu0 %1344, %v664
        %v1346 = vpop.permute.xlu0 %1345
        %1348 = vset.pattern.permute.xlu0 3
        %1349 = vperm.xlu0 %1348, %v665
        %v1350 = vpop.permute.xlu0 %1349
        %1352 = vset.pattern.permute.xlu0 3
        %1353 = vperm.xlu0 %1352, %v666
        %v1354 = vpop.permute.xlu0 %1353
        %1356 = vset.pattern.permute.xlu0 3
        %1357 = vperm.xlu0 %1356, %v667
        %v1358 = vpop.permute.xlu0 %1357
        %1360 = vset.pattern.permute.xlu0 3
        %1361 = vperm.xlu0 %1360, %v668
        %v1362 = vpop.permute.xlu0 %1361
        %1364 = vset.pattern.permute.xlu0 3
        %1365 = vperm.xlu0 %1364, %v669
        %v1366 = vpop.permute.xlu0 %1365
        %1368 = vset.pattern.permute.xlu0 3
        %1369 = vperm.xlu0 %1368, %v670
        %v1370 = vpop.permute.xlu0 %1369
        %1372 = vset.pattern.permute.xlu0 3
        %1373 = vperm.xlu0 %1372, %v671
        %v1374 = vpop.permute.xlu0 %1373
        %1376 = vset.pattern.permute.xlu0 3
        %1377 = vperm.xlu0 %1376, %v672
        %v1378 = vpop.permute.xlu0 %1377
        %1380 = vset.pattern.permute.xlu0 3
        %1381 = vperm.xlu0 %1380, %v673
        %v1382 = vpop.permute.xlu0 %1381
        %1384 = vset.pattern.permute.xlu0 3
        %1385 = vperm.xlu0 %1384, %v674
        %v1386 = vpop.permute.xlu0 %1385
        %1388 = vset.pattern.permute.xlu0 3
        %1389 = vperm.xlu0 %1388, %v675
        %v1390 = vpop.permute.xlu0 %1389
        %v1392 = vlaneseq
        %v1393 = vshrl.u32 %v1392, 7
        %v1394 = vsub.s32 3, %v1393
        %v1395 = vrot.slane %v611, %v1394
        %v1396 = vmul.f32 %v1266, %v1395
        %v1397 = vmul.f32 %v1270, %v1395
        %v1398 = vmul.f32 %v1274, %v1395
        %v1399 = vmul.f32 %v1278, %v1395
        %v1400 = vmul.f32 %v1282, %v1395
        %v1401 = vmul.f32 %v1286, %v1395
        %v1402 = vmul.f32 %v1290, %v1395
        %v1403 = vmul.f32 %v1294, %v1395
        %v1404 = vmul.f32 %v1298, %v1395
        %v1405 = vmul.f32 %v1302, %v1395
        %v1406 = vmul.f32 %v1306, %v1395
        %v1407 = vmul.f32 %v1310, %v1395
        %v1408 = vmul.f32 %v1314, %v1395
        %v1409 = vmul.f32 %v1318, %v1395
        %v1410 = vmul.f32 %v1322, %v1395
        %v1411 = vmul.f32 %v1326, %v1395
        %v1412 = vmul.f32 %v1330, %v1395
        %v1413 = vmul.f32 %v1334, %v1395
        %v1414 = vmul.f32 %v1338, %v1395
        %v1415 = vmul.f32 %v1342, %v1395
        %v1416 = vmul.f32 %v1346, %v1395
        %v1417 = vmul.f32 %v1350, %v1395
        %v1418 = vmul.f32 %v1354, %v1395
        %v1419 = vmul.f32 %v1358, %v1395
        %v1420 = vmul.f32 %v1362, %v1395
        %v1421 = vmul.f32 %v1366, %v1395
        %v1422 = vmul.f32 %v1370, %v1395
        %v1423 = vmul.f32 %v1374, %v1395
        %v1424 = vmul.f32 %v1378, %v1395
        %v1425 = vmul.f32 %v1382, %v1395
        %v1426 = vmul.f32 %v1386, %v1395
        %v1427 = vmul.f32 %v1390, %v1395
        %v1428 = vadd.f32 %v1232, %v1396
        %v1429 = vadd.f32 %v1233, %v1397
        %v1430 = vadd.f32 %v1234, %v1398
        %v1431 = vadd.f32 %v1235, %v1399
        %v1432 = vadd.f32 %v1236, %v1400
        %v1433 = vadd.f32 %v1237, %v1401
        %v1434 = vadd.f32 %v1238, %v1402
        %v1435 = vadd.f32 %v1239, %v1403
        %v1436 = vadd.f32 %v1240, %v1404
        %v1437 = vadd.f32 %v1241, %v1405
        %v1438 = vadd.f32 %v1242, %v1406
        %v1439 = vadd.f32 %v1243, %v1407
        %v1440 = vadd.f32 %v1244, %v1408
        %v1441 = vadd.f32 %v1245, %v1409
        %v1442 = vadd.f32 %v1246, %v1410
        %v1443 = vadd.f32 %v1247, %v1411
        %v1444 = vadd.f32 %v1248, %v1412
        %v1445 = vadd.f32 %v1249, %v1413
        %v1446 = vadd.f32 %v1250, %v1414
        %v1447 = vadd.f32 %v1251, %v1415
        %v1448 = vadd.f32 %v1252, %v1416
        %v1449 = vadd.f32 %v1253, %v1417
        %v1450 = vadd.f32 %v1254, %v1418
        %v1451 = vadd.f32 %v1255, %v1419
        %v1452 = vadd.f32 %v1256, %v1420
        %v1453 = vadd.f32 %v1257, %v1421
        %v1454 = vadd.f32 %v1258, %v1422
        %v1455 = vadd.f32 %v1259, %v1423
        %v1456 = vadd.f32 %v1260, %v1424
        %v1457 = vadd.f32 %v1261, %v1425
        %v1458 = vadd.f32 %v1262, %v1426
        %v1459 = vadd.f32 %v1263, %v1427
        %v1460 = vld [vmem:[#allocation2] sm:$0xf]
        %v1461 = vld [vmem:[#allocation2 + $0x4] sm:$0xf]
        %v1462 = vld [vmem:[#allocation2 + $0x8] sm:$0xf]
        %v1463 = vld [vmem:[#allocation2 + $0xc] sm:$0xf]
        %v1464 = vld [vmem:[#allocation2 + $0x10] sm:$0xf]
        %v1465 = vld [vmem:[#allocation2 + $0x14] sm:$0xf]
        %v1466 = vld [vmem:[#allocation2 + $0x18] sm:$0xf]
        %v1467 = vld [vmem:[#allocation2 + $0x1c] sm:$0xf]
        %v1468 = vld [vmem:[#allocation2 + $0x20] sm:$0xf]
        %v1469 = vld [vmem:[#allocation2 + $0x24] sm:$0xf]
        %v1470 = vld [vmem:[#allocation2 + $0x28] sm:$0xf]
        %v1471 = vld [vmem:[#allocation2 + $0x2c] sm:$0xf]
        %v1472 = vld [vmem:[#allocation2 + $0x30] sm:$0xf]
        %v1473 = vld [vmem:[#allocation2 + $0x34] sm:$0xf]
        %v1474 = vld [vmem:[#allocation2 + $0x38] sm:$0xf]
        %v1475 = vld [vmem:[#allocation2 + $0x3c] sm:$0xf]
        %v1476 = vld [vmem:[#allocation2 + $0x40] sm:$0xf]
        %v1477 = vld [vmem:[#allocation2 + $0x44] sm:$0xf]
        %v1478 = vld [vmem:[#allocation2 + $0x48] sm:$0xf]
        %v1479 = vld [vmem:[#allocation2 + $0x4c] sm:$0xf]
        %v1480 = vld [vmem:[#allocation2 + $0x50] sm:$0xf]
        %v1481 = vld [vmem:[#allocation2 + $0x54] sm:$0xf]
        %v1482 = vld [vmem:[#allocation2 + $0x58] sm:$0xf]
        %v1483 = vld [vmem:[#allocation2 + $0x5c] sm:$0xf]
        %v1484 = vld [vmem:[#allocation2 + $0x60] sm:$0xf]
        %v1485 = vld [vmem:[#allocation2 + $0x64] sm:$0xf]
        %v1486 = vld [vmem:[#allocation2 + $0x68] sm:$0xf]
        %v1487 = vld [vmem:[#allocation2 + $0x6c] sm:$0xf]
        %v1488 = vld [vmem:[#allocation2 + $0x70] sm:$0xf]
        %v1489 = vld [vmem:[#allocation2 + $0x74] sm:$0xf]
        %v1490 = vld [vmem:[#allocation2 + $0x78] sm:$0xf]
        %v1491 = vld [vmem:[#allocation2 + $0x7c] sm:$0xf]
        %v1524 = vunpack.c.l.b16 %v1460
        %v1525 = vunpack.c.l.b16 %v1461
        %v1526 = vunpack.c.l.b16 %v1462
        %v1527 = vunpack.c.l.b16 %v1463
        %v1528 = vunpack.c.l.b16 %v1464
        %v1529 = vunpack.c.l.b16 %v1465
        %v1530 = vunpack.c.l.b16 %v1466
        %v1531 = vunpack.c.l.b16 %v1467
        %v1532 = vunpack.c.l.b16 %v1468
        %v1533 = vunpack.c.l.b16 %v1469
        %v1534 = vunpack.c.l.b16 %v1470
        %v1535 = vunpack.c.l.b16 %v1471
        %v1536 = vunpack.c.l.b16 %v1472
        %v1537 = vunpack.c.l.b16 %v1473
        %v1538 = vunpack.c.l.b16 %v1474
        %v1539 = vunpack.c.l.b16 %v1475
        %v1540 = vunpack.c.l.b16 %v1476
        %v1541 = vunpack.c.l.b16 %v1477
        %v1542 = vunpack.c.l.b16 %v1478
        %v1543 = vunpack.c.l.b16 %v1479
        %v1544 = vunpack.c.l.b16 %v1480
        %v1545 = vunpack.c.l.b16 %v1481
        %v1546 = vunpack.c.l.b16 %v1482
        %v1547 = vunpack.c.l.b16 %v1483
        %v1548 = vunpack.c.l.b16 %v1484
        %v1549 = vunpack.c.l.b16 %v1485
        %v1550 = vunpack.c.l.b16 %v1486
        %v1551 = vunpack.c.l.b16 %v1487
        %v1552 = vunpack.c.l.b16 %v1488
        %v1553 = vunpack.c.l.b16 %v1489
        %v1554 = vunpack.c.l.b16 %v1490
        %v1555 = vunpack.c.l.b16 %v1491
        %v1556 = vpack.c.b16 %v1525, %v1524
        %v1557 = vpack.c.b16 %v1527, %v1526
        %v1558 = vpack.c.b16 %v1529, %v1528
        %v1559 = vpack.c.b16 %v1531, %v1530
        %v1560 = vpack.c.b16 %v1533, %v1532
        %v1561 = vpack.c.b16 %v1535, %v1534
        %v1562 = vpack.c.b16 %v1537, %v1536
        %v1563 = vpack.c.b16 %v1539, %v1538
        %v1564 = vpack.c.b16 %v1541, %v1540
        %v1565 = vpack.c.b16 %v1543, %v1542
        %v1566 = vpack.c.b16 %v1545, %v1544
        %v1567 = vpack.c.b16 %v1547, %v1546
        %v1568 = vpack.c.b16 %v1549, %v1548
        %v1569 = vpack.c.b16 %v1551, %v1550
        %v1570 = vpack.c.b16 %v1553, %v1552
        %v1571 = vpack.c.b16 %v1555, %v1554
        %1588 = vmatprep.subr.bf16.mxu0 0
        %1589 = vmatpush1.bf16.msra.mxu0 %v610
        %1590 = vmatprep.subr.bf16.mxu0 0
        %1591 = vmatpush1.bf16.msra.mxu0 %v609
        %1592 = vmatprep.subr.bf16.mxu0 0
        %1593 = vmatpush1.bf16.msra.mxu0 %v608
        %1594 = vmatprep.subr.bf16.mxu0 0
        %1595 = vmatpush1.bf16.msra.mxu0 %v607
        %1596 = vmatprep.subr.bf16.mxu0 0
        %1597 = vmatpush1.bf16.msra.mxu0 %v606
        %1598 = vmatprep.subr.bf16.mxu0 0
        %1599 = vmatpush1.bf16.msra.mxu0 %v605
        %1600 = vmatprep.subr.bf16.mxu0 0
        %1601 = vmatpush1.bf16.msra.mxu0 %v604
        %1602 = vmatprep.subr.bf16.mxu0 0
        %1603 = vmatpush1.bf16.msra.mxu0 %v603
        %1604 = vmatprep.subr.bf16.mxu0 0
        %1605 = vmatpush2.bf16.msra.mxu0 0
        %1606 = vmatprep.subr.bf16.mxu0 0
        %1607 = vmatpush2.bf16.msra.mxu0 0
        %1608 = vmatprep.subr.bf16.mxu0 0
        %1609 = vmatpush2.bf16.msra.mxu0 0
        %1610 = vmatprep.subr.bf16.mxu0 0
        %1611 = vmatpush2.bf16.msra.mxu0 0
        %1612 = vmatprep.subr.bf16.mxu0 0
        %1613 = vmatpush2.bf16.msra.mxu0 0
        %1614 = vmatprep.subr.bf16.mxu0 0
        %1615 = vmatpush2.bf16.msra.mxu0 0
        %1616 = vmatprep.subr.bf16.mxu0 0
        %1617 = vmatpush2.bf16.msra.mxu0 0
        %1618 = vmatprep.subr.bf16.mxu0 0
        %1619 = vmatpush2.bf16.msra.mxu0 0
        %1620 = vmatprep.mubr.bf16.mxu0 0
        %1621 = vmatmul.mubr.bf16.gmra.mxu0 %v1556
        %v1622 = vpop.f32.mrf.mxu0
        %v1623 = vadd.f32 %v1428, %v1622
        %v1624 = vpop.f32.mrf.mxu0
        %v1625 = vpop.f32.mrf.mxu0
        %v1626 = vadd.f32 %v1429, %v1625
        %v1627 = vpop.f32.mrf.mxu0
        %1628 = vmatprep.mubr.bf16.mxu0 0
        %1629 = vmatmul.mubr.bf16.gmra.mxu0 %v1557
        %v1630 = vpop.f32.mrf.mxu0
        %v1631 = vadd.f32 %v1430, %v1630
        %v1632 = vpop.f32.mrf.mxu0
        %v1633 = vpop.f32.mrf.mxu0
        %v1634 = vadd.f32 %v1431, %v1633
        %v1635 = vpop.f32.mrf.mxu0
        %1636 = vmatprep.mubr.bf16.mxu0 0
        %1637 = vmatmul.mubr.bf16.gmra.mxu0 %v1558
        %v1638 = vpop.f32.mrf.mxu0
        %v1639 = vadd.f32 %v1432, %v1638
        %v1640 = vpop.f32.mrf.mxu0
        %v1641 = vpop.f32.mrf.mxu0
        %v1642 = vadd.f32 %v1433, %v1641
        %v1643 = vpop.f32.mrf.mxu0
        %1644 = vmatprep.mubr.bf16.mxu0 0
        %1645 = vmatmul.mubr.bf16.gmra.mxu0 %v1559
        %v1646 = vpop.f32.mrf.mxu0
        %v1647 = vadd.f32 %v1434, %v1646
        %v1648 = vpop.f32.mrf.mxu0
        %v1649 = vpop.f32.mrf.mxu0
        %v1650 = vadd.f32 %v1435, %v1649
        %v1651 = vpop.f32.mrf.mxu0
        %1652 = vmatprep.mubr.bf16.mxu0 0
        %1653 = vmatmul.mubr.bf16.gmra.mxu0 %v1560
        %v1654 = vpop.f32.mrf.mxu0
        %v1655 = vadd.f32 %v1436, %v1654
        %v1656 = vpop.f32.mrf.mxu0
        %v1657 = vpop.f32.mrf.mxu0
        %v1658 = vadd.f32 %v1437, %v1657
        %v1659 = vpop.f32.mrf.mxu0
        %1660 = vmatprep.mubr.bf16.mxu0 0
        %1661 = vmatmul.mubr.bf16.gmra.mxu0 %v1561
        %v1662 = vpop.f32.mrf.mxu0
        %v1663 = vadd.f32 %v1438, %v1662
        %v1664 = vpop.f32.mrf.mxu0
        %v1665 = vpop.f32.mrf.mxu0
        %v1666 = vadd.f32 %v1439, %v1665
        %v1667 = vpop.f32.mrf.mxu0
        %1668 = vmatprep.mubr.bf16.mxu0 0
        %1669 = vmatmul.mubr.bf16.gmra.mxu0 %v1562
        %v1670 = vpop.f32.mrf.mxu0
        %v1671 = vadd.f32 %v1440, %v1670
        %v1672 = vpop.f32.mrf.mxu0
        %v1673 = vpop.f32.mrf.mxu0
        %v1674 = vadd.f32 %v1441, %v1673
        %v1675 = vpop.f32.mrf.mxu0
        %1676 = vmatprep.mubr.bf16.mxu0 0
        %1677 = vmatmul.mubr.bf16.gmra.mxu0 %v1563
        %v1678 = vpop.f32.mrf.mxu0
        %v1679 = vadd.f32 %v1442, %v1678
        %v1680 = vpop.f32.mrf.mxu0
        %v1681 = vpop.f32.mrf.mxu0
        %v1682 = vadd.f32 %v1443, %v1681
        %v1683 = vpop.f32.mrf.mxu0
        %1684 = vmatprep.mubr.bf16.mxu0 0
        %1685 = vmatmul.mubr.bf16.gmra.mxu0 %v1564
        %v1686 = vpop.f32.mrf.mxu0
        %v1687 = vadd.f32 %v1444, %v1686
        %v1688 = vpop.f32.mrf.mxu0
        %v1689 = vpop.f32.mrf.mxu0
        %v1690 = vadd.f32 %v1445, %v1689
        %v1691 = vpop.f32.mrf.mxu0
        %1692 = vmatprep.mubr.bf16.mxu0 0
        %1693 = vmatmul.mubr.bf16.gmra.mxu0 %v1565
        %v1694 = vpop.f32.mrf.mxu0
        %v1695 = vadd.f32 %v1446, %v1694
        %v1696 = vpop.f32.mrf.mxu0
        %v1697 = vpop.f32.mrf.mxu0
        %v1698 = vadd.f32 %v1447, %v1697
        %v1699 = vpop.f32.mrf.mxu0
        %1700 = vmatprep.mubr.bf16.mxu0 0
        %1701 = vmatmul.mubr.bf16.gmra.mxu0 %v1566
        %v1702 = vpop.f32.mrf.mxu0
        %v1703 = vadd.f32 %v1448, %v1702
        %v1704 = vpop.f32.mrf.mxu0
        %v1705 = vpop.f32.mrf.mxu0
        %v1706 = vadd.f32 %v1449, %v1705
        %v1707 = vpop.f32.mrf.mxu0
        %1708 = vmatprep.mubr.bf16.mxu0 0
        %1709 = vmatmul.mubr.bf16.gmra.mxu0 %v1567
        %v1710 = vpop.f32.mrf.mxu0
        %v1711 = vadd.f32 %v1450, %v1710
        %v1712 = vpop.f32.mrf.mxu0
        %v1713 = vpop.f32.mrf.mxu0
        %v1714 = vadd.f32 %v1451, %v1713
        %v1715 = vpop.f32.mrf.mxu0
        %1716 = vmatprep.mubr.bf16.mxu0 0
        %1717 = vmatmul.mubr.bf16.gmra.mxu0 %v1568
        %v1718 = vpop.f32.mrf.mxu0
        %v1719 = vadd.f32 %v1452, %v1718
        %v1720 = vpop.f32.mrf.mxu0
        %v1721 = vpop.f32.mrf.mxu0
        %v1722 = vadd.f32 %v1453, %v1721
        %v1723 = vpop.f32.mrf.mxu0
        %1724 = vmatprep.mubr.bf16.mxu0 0
        %1725 = vmatmul.mubr.bf16.gmra.mxu0 %v1569
        %v1726 = vpop.f32.mrf.mxu0
        %v1727 = vadd.f32 %v1454, %v1726
        %v1728 = vpop.f32.mrf.mxu0
        %v1729 = vpop.f32.mrf.mxu0
        %v1730 = vadd.f32 %v1455, %v1729
        %v1731 = vpop.f32.mrf.mxu0
        %1732 = vmatprep.mubr.bf16.mxu0 0
        %1733 = vmatmul.mubr.bf16.gmra.mxu0 %v1570
        %v1734 = vpop.f32.mrf.mxu0
        %v1735 = vadd.f32 %v1456, %v1734
        %v1736 = vpop.f32.mrf.mxu0
        %v1737 = vpop.f32.mrf.mxu0
        %v1738 = vadd.f32 %v1457, %v1737
        %v1739 = vpop.f32.mrf.mxu0
        %1740 = vmatprep.mubr.bf16.mxu0 0
        %1741 = vmatmul.mubr.bf16.gmra.mxu0 %v1571
        %v1742 = vpop.f32.mrf.mxu0
        %v1743 = vadd.f32 %v1458, %v1742
        %v1744 = vpop.f32.mrf.mxu0
        %v1745 = vpop.f32.mrf.mxu0
        %v1746 = vadd.f32 %v1459, %v1745
        %v1747 = vpop.f32.mrf.mxu0
        %1748 = vdwg.mxu0
        %v1749 = vmax.f32 %v1623, 0.0
        %v1750 = vmax.f32 %v1626, 0.0
        %v1751 = vmax.f32 %v1631, 0.0
        %v1752 = vmax.f32 %v1634, 0.0
        %v1753 = vmax.f32 %v1639, 0.0
        %v1754 = vmax.f32 %v1642, 0.0
        %v1755 = vmax.f32 %v1647, 0.0
        %v1756 = vmax.f32 %v1650, 0.0
        %v1757 = vmax.f32 %v1655, 0.0
        %v1758 = vmax.f32 %v1658, 0.0
        %v1759 = vmax.f32 %v1663, 0.0
        %v1760 = vmax.f32 %v1666, 0.0
        %v1761 = vmax.f32 %v1671, 0.0
        %v1762 = vmax.f32 %v1674, 0.0
        %v1763 = vmax.f32 %v1679, 0.0
        %v1764 = vmax.f32 %v1682, 0.0
        %v1765 = vmax.f32 %v1687, 0.0
        %v1766 = vmax.f32 %v1690, 0.0
        %v1767 = vmax.f32 %v1695, 0.0
        %v1768 = vmax.f32 %v1698, 0.0
        %v1769 = vmax.f32 %v1703, 0.0
        %v1770 = vmax.f32 %v1706, 0.0
        %v1771 = vmax.f32 %v1711, 0.0
        %v1772 = vmax.f32 %v1714, 0.0
        %v1773 = vmax.f32 %v1719, 0.0
        %v1774 = vmax.f32 %v1722, 0.0
        %v1775 = vmax.f32 %v1727, 0.0
        %v1776 = vmax.f32 %v1730, 0.0
        %v1777 = vmax.f32 %v1735, 0.0
        %v1778 = vmax.f32 %v1738, 0.0
        %v1779 = vmax.f32 %v1743, 0.0
        %v1780 = vmax.f32 %v1746, 0.0
        %v1781 = vld [vmem:[#allocation5] sm:$0xff]
        %v1782 = vld [vmem:[#allocation5 + $0x8] sm:$0xff]
        %v1783 = vld [vmem:[#allocation5 + $0x10] sm:$0xff]
        %v1784 = vld [vmem:[#allocation5 + $0x18] sm:$0xff]
        %v1785 = vld [vmem:[#allocation5 + $0x20] sm:$0xff]
        %v1786 = vld [vmem:[#allocation5 + $0x28] sm:$0xff]
        %v1787 = vld [vmem:[#allocation5 + $0x30] sm:$0xff]
        %v1788 = vld [vmem:[#allocation5 + $0x38] sm:$0xff]
        %v1789 = vld [vmem:[#allocation5 + $0x40] sm:$0xff]
        %v1790 = vld [vmem:[#allocation5 + $0x48] sm:$0xff]
        %v1791 = vld [vmem:[#allocation5 + $0x50] sm:$0xff]
        %v1792 = vld [vmem:[#allocation5 + $0x58] sm:$0xff]
        %v1793 = vld [vmem:[#allocation5 + $0x60] sm:$0xff]
        %v1794 = vld [vmem:[#allocation5 + $0x68] sm:$0xff]
        %v1795 = vld [vmem:[#allocation5 + $0x70] sm:$0xff]
        %v1796 = vld [vmem:[#allocation5 + $0x78] sm:$0xff]
        %v1797 = vpack.c.bf16 %v1750, %v1749
        %v1798 = vpack.c.bf16 %v1752, %v1751
        %v1799 = vpack.c.bf16 %v1754, %v1753
        %v1800 = vpack.c.bf16 %v1756, %v1755
        %v1801 = vpack.c.bf16 %v1758, %v1757
        %v1802 = vpack.c.bf16 %v1760, %v1759
        %v1803 = vpack.c.bf16 %v1762, %v1761
        %v1804 = vpack.c.bf16 %v1764, %v1763
        %v1805 = vpack.c.bf16 %v1766, %v1765
        %v1806 = vpack.c.bf16 %v1768, %v1767
        %v1807 = vpack.c.bf16 %v1770, %v1769
        %v1808 = vpack.c.bf16 %v1772, %v1771
        %v1809 = vpack.c.bf16 %v1774, %v1773
        %v1810 = vpack.c.bf16 %v1776, %v1775
        %v1811 = vpack.c.bf16 %v1778, %v1777
        %v1812 = vpack.c.bf16 %v1780, %v1779
        %v1829 = vunpack.c.l.b16 %v1781
        %v1830 = vunpack.c.h.b16 %v1781
        %v1831 = vunpack.c.l.b16 %v1782
        %v1832 = vunpack.c.h.b16 %v1782
        %v1833 = vunpack.c.l.b16 %v1783
        %v1834 = vunpack.c.h.b16 %v1783
        %v1835 = vunpack.c.l.b16 %v1784
        %v1836 = vunpack.c.h.b16 %v1784
        %v1837 = vunpack.c.l.b16 %v1785
        %v1838 = vunpack.c.h.b16 %v1785
        %v1839 = vunpack.c.l.b16 %v1786
        %v1840 = vunpack.c.h.b16 %v1786
        %v1841 = vunpack.c.l.b16 %v1787
        %v1842 = vunpack.c.h.b16 %v1787
        %v1843 = vunpack.c.l.b16 %v1788
        %v1844 = vunpack.c.h.b16 %v1788
        %v1845 = vunpack.c.l.b16 %v1789
        %v1846 = vunpack.c.h.b16 %v1789
        %v1847 = vunpack.c.l.b16 %v1790
        %v1848 = vunpack.c.h.b16 %v1790
        %v1849 = vunpack.c.l.b16 %v1791
        %v1850 = vunpack.c.h.b16 %v1791
        %v1851 = vunpack.c.l.b16 %v1792
        %v1852 = vunpack.c.h.b16 %v1792
        %v1853 = vunpack.c.l.b16 %v1793
        %v1854 = vunpack.c.h.b16 %v1793
        %v1855 = vunpack.c.l.b16 %v1794
        %v1856 = vunpack.c.h.b16 %v1794
        %v1857 = vunpack.c.l.b16 %v1795
        %v1858 = vunpack.c.h.b16 %v1795
        %v1859 = vunpack.c.l.b16 %v1796
        %v1860 = vunpack.c.h.b16 %v1796
        %v1861 = vpack.c.b16 %v1831, %v1829
        %v1862 = vpack.c.b16 %v1832, %v1830
        %v1863 = vpack.c.b16 %v1835, %v1833
        %v1864 = vpack.c.b16 %v1836, %v1834
        %v1865 = vpack.c.b16 %v1839, %v1837
        %v1866 = vpack.c.b16 %v1840, %v1838
        %v1867 = vpack.c.b16 %v1843, %v1841
        %v1868 = vpack.c.b16 %v1844, %v1842
        %v1869 = vpack.c.b16 %v1847, %v1845
        %v1870 = vpack.c.b16 %v1848, %v1846
        %v1871 = vpack.c.b16 %v1851, %v1849
        %v1872 = vpack.c.b16 %v1852, %v1850
        %v1873 = vpack.c.b16 %v1855, %v1853
        %v1874 = vpack.c.b16 %v1856, %v1854
        %v1875 = vpack.c.b16 %v1859, %v1857
        %v1876 = vpack.c.b16 %v1860, %v1858
        %1893 = vmatprep.subr.bf16.mxu0 0
        %1894 = vmatpush1.bf16.msra.mxu0 %v1804
        %1895 = vmatprep.subr.bf16.mxu0 0
        %1896 = vmatpush1.bf16.msra.mxu0 %v1803
        %1897 = vmatprep.subr.bf16.mxu0 0
        %1898 = vmatpush1.bf16.msra.mxu0 %v1802
        %1899 = vmatprep.subr.bf16.mxu0 0
        %1900 = vmatpush1.bf16.msra.mxu0 %v1801
        %1901 = vmatprep.subr.bf16.mxu0 0
        %1902 = vmatpush1.bf16.msra.mxu0 %v1800
        %1903 = vmatprep.subr.bf16.mxu0 0
        %1904 = vmatpush1.bf16.msra.mxu0 %v1799
        %1905 = vmatprep.subr.bf16.mxu0 0
        %1906 = vmatpush1.bf16.msra.mxu0 %v1798
        %1907 = vmatprep.subr.bf16.mxu0 0
        %1908 = vmatpush1.bf16.msra.mxu0 %v1797
        %1909 = vmatprep.subr.bf16.mxu0 0
        %1910 = vmatpush2.bf16.msra.mxu0 %v1812
        %1911 = vmatprep.subr.bf16.mxu0 0
        %1912 = vmatpush2.bf16.msra.mxu0 %v1811
        %1913 = vmatprep.subr.bf16.mxu0 0
        %1914 = vmatpush2.bf16.msra.mxu0 %v1810
        %1915 = vmatprep.subr.bf16.mxu0 0
        %1916 = vmatpush2.bf16.msra.mxu0 %v1809
        %1917 = vmatprep.subr.bf16.mxu0 0
        %1918 = vmatpush2.bf16.msra.mxu0 %v1808
        %1919 = vmatprep.subr.bf16.mxu0 0
        %1920 = vmatpush2.bf16.msra.mxu0 %v1807
        %1921 = vmatprep.subr.bf16.mxu0 0
        %1922 = vmatpush2.bf16.msra.mxu0 %v1806
        %1923 = vmatprep.subr.bf16.mxu0 0
        %1924 = vmatpush2.bf16.msra.mxu0 %v1805
        %1925 = vmatprep.mubr.bf16.mxu0 %v1862
        %1926 = vmatmul.mubr.bf16.gmra.mxu0 %v1861
        %v1927 = vpop.f32.mrf.mxu0
        %v1928 = vadd.f32 0.0, %v1927
        %v1929 = vpop.f32.mrf.mxu0
        %v1930 = vpop.f32.mrf.mxu0
        %v1931 = vadd.f32 0.0, %v1930
        %v1932 = vpop.f32.mrf.mxu0
        %1933 = vmatprep.mubr.bf16.mxu0 %v1864
        %1934 = vmatmul.mubr.bf16.gmra.mxu0 %v1863
        %v1935 = vpop.f32.mrf.mxu0
        %v1936 = vadd.f32 0.0, %v1935
        %v1937 = vpop.f32.mrf.mxu0
        %v1938 = vpop.f32.mrf.mxu0
        %v1939 = vadd.f32 0.0, %v1938
        %v1940 = vpop.f32.mrf.mxu0
        %1941 = vmatprep.mubr.bf16.mxu0 %v1866
        %1942 = vmatmul.mubr.bf16.gmra.mxu0 %v1865
        %v1943 = vpop.f32.mrf.mxu0
        %v1944 = vadd.f32 0.0, %v1943
        %v1945 = vpop.f32.mrf.mxu0
        %v1946 = vpop.f32.mrf.mxu0
        %v1947 = vadd.f32 0.0, %v1946
        %v1948 = vpop.f32.mrf.mxu0
        %1949 = vmatprep.mubr.bf16.mxu0 %v1868
        %1950 = vmatmul.mubr.bf16.gmra.mxu0 %v1867
        %v1951 = vpop.f32.mrf.mxu0
        %v1952 = vadd.f32 0.0, %v1951
        %v1953 = vpop.f32.mrf.mxu0
        %v1954 = vpop.f32.mrf.mxu0
        %v1955 = vadd.f32 0.0, %v1954
        %v1956 = vpop.f32.mrf.mxu0
        %1957 = vmatprep.mubr.bf16.mxu0 %v1870
        %1958 = vmatmul.mubr.bf16.gmra.mxu0 %v1869
        %v1959 = vpop.f32.mrf.mxu0
        %v1960 = vadd.f32 0.0, %v1959
        %v1961 = vpop.f32.mrf.mxu0
        %v1962 = vpop.f32.mrf.mxu0
        %v1963 = vadd.f32 0.0, %v1962
        %v1964 = vpop.f32.mrf.mxu0
        %1965 = vmatprep.mubr.bf16.mxu0 %v1872
        %1966 = vmatmul.mubr.bf16.gmra.mxu0 %v1871
        %v1967 = vpop.f32.mrf.mxu0
        %v1968 = vadd.f32 0.0, %v1967
        %v1969 = vpop.f32.mrf.mxu0
        %v1970 = vpop.f32.mrf.mxu0
        %v1971 = vadd.f32 0.0, %v1970
        %v1972 = vpop.f32.mrf.mxu0
        %1973 = vmatprep.mubr.bf16.mxu0 %v1874
        %1974 = vmatmul.mubr.bf16.gmra.mxu0 %v1873
        %v1975 = vpop.f32.mrf.mxu0
        %v1976 = vadd.f32 0.0, %v1975
        %v1977 = vpop.f32.mrf.mxu0
        %v1978 = vpop.f32.mrf.mxu0
        %v1979 = vadd.f32 0.0, %v1978
        %v1980 = vpop.f32.mrf.mxu0
        %1981 = vmatprep.mubr.bf16.mxu0 %v1876
        %1982 = vmatmul.mubr.bf16.gmra.mxu0 %v1875
        %v1983 = vpop.f32.mrf.mxu0
        %v1984 = vadd.f32 0.0, %v1983
        %v1985 = vpop.f32.mrf.mxu0
        %v1986 = vpop.f32.mrf.mxu0
        %v1987 = vadd.f32 0.0, %v1986
        %v1988 = vpop.f32.mrf.mxu0
        %1989 = vdwg.mxu0
        %v1990 = vadd.f32 %v587, %v1928
        %v1991 = vadd.f32 %v588, %v1931
        %v1992 = vadd.f32 %v589, %v1936
        %v1993 = vadd.f32 %v590, %v1939
        %v1994 = vadd.f32 %v591, %v1944
        %v1995 = vadd.f32 %v592, %v1947
        %v1996 = vadd.f32 %v593, %v1952
        %v1997 = vadd.f32 %v594, %v1955
        %v1998 = vadd.f32 %v595, %v1960
        %v1999 = vadd.f32 %v596, %v1963
        %v2000 = vadd.f32 %v597, %v1968
        %v2001 = vadd.f32 %v598, %v1971
        %v2002 = vadd.f32 %v599, %v1976
        %v2003 = vadd.f32 %v600, %v1979
        %v2004 = vadd.f32 %v601, %v1984
        %v2005 = vadd.f32 %v602, %v1987
        %v2006 = vld [vmem:[%s471] sm:$0xff]
        %v2007 = vld [vmem:[%s471 + $0x8] sm:$0xff]
        %v2008 = vld [vmem:[%s471 + $0x10] sm:$0xff]
        %v2009 = vld [vmem:[%s471 + $0x18] sm:$0xff]
        %v2010 = vld [vmem:[%s471 + $0x20] sm:$0xff]
        %v2011 = vld [vmem:[%s471 + $0x28] sm:$0xff]
        %v2012 = vld [vmem:[%s471 + $0x30] sm:$0xff]
        %v2013 = vld [vmem:[%s471 + $0x38] sm:$0xff]
        %v2014 = vld [vmem:[%s471 + $0x40] sm:$0xff]
        %v2015 = vld [vmem:[%s471 + $0x48] sm:$0xff]
        %v2016 = vld [vmem:[%s471 + $0x50] sm:$0xff]
        %v2017 = vld [vmem:[%s471 + $0x58] sm:$0xff]
        %v2018 = vld [vmem:[%s471 + $0x60] sm:$0xff]
        %v2019 = vld [vmem:[%s471 + $0x68] sm:$0xff]
        %v2020 = vld [vmem:[%s471 + $0x70] sm:$0xff]
        %v2021 = vld [vmem:[%s471 + $0x78] sm:$0xff]
        %v2022 = vld [vmem:[%s540] sm:$0x3]
        %v2023 = vld [vmem:[%s480] sm:$0xf]
        %v2024 = vld [vmem:[%s480 + $0x4] sm:$0xf]
        %v2025 = vld [vmem:[%s480 + $0x8] sm:$0xf]
        %v2026 = vld [vmem:[%s480 + $0xc] sm:$0xf]
        %v2027 = vld [vmem:[%s480 + $0x10] sm:$0xf]
        %v2028 = vld [vmem:[%s480 + $0x14] sm:$0xf]
        %v2029 = vld [vmem:[%s480 + $0x18] sm:$0xf]
        %v2030 = vld [vmem:[%s480 + $0x1c] sm:$0xf]
        %v2031 = vld [vmem:[%s480 + $0x20] sm:$0xf]
        %v2032 = vld [vmem:[%s480 + $0x24] sm:$0xf]
        %v2033 = vld [vmem:[%s480 + $0x28] sm:$0xf]
        %v2034 = vld [vmem:[%s480 + $0x2c] sm:$0xf]
        %v2035 = vld [vmem:[%s480 + $0x30] sm:$0xf]
        %v2036 = vld [vmem:[%s480 + $0x34] sm:$0xf]
        %v2037 = vld [vmem:[%s480 + $0x38] sm:$0xf]
        %v2038 = vld [vmem:[%s480 + $0x3c] sm:$0xf]
        %v2039 = vld [vmem:[%s480 + $0x40] sm:$0xf]
        %v2040 = vld [vmem:[%s480 + $0x44] sm:$0xf]
        %v2041 = vld [vmem:[%s480 + $0x48] sm:$0xf]
        %v2042 = vld [vmem:[%s480 + $0x4c] sm:$0xf]
        %v2043 = vld [vmem:[%s480 + $0x50] sm:$0xf]
        %v2044 = vld [vmem:[%s480 + $0x54] sm:$0xf]
        %v2045 = vld [vmem:[%s480 + $0x58] sm:$0xf]
        %v2046 = vld [vmem:[%s480 + $0x5c] sm:$0xf]
        %v2047 = vld [vmem:[%s480 + $0x60] sm:$0xf]
        %v2048 = vld [vmem:[%s480 + $0x64] sm:$0xf]
        %v2049 = vld [vmem:[%s480 + $0x68] sm:$0xf]
        %v2050 = vld [vmem:[%s480 + $0x6c] sm:$0xf]
        %v2051 = vld [vmem:[%s480 + $0x70] sm:$0xf]
        %v2052 = vld [vmem:[%s480 + $0x74] sm:$0xf]
        %v2053 = vld [vmem:[%s480 + $0x78] sm:$0xf]
        %v2054 = vld [vmem:[%s480 + $0x7c] sm:$0xf]
        %v2055 = vld [vmem:[%s543] sm:$0x1]
        %v2056 = vld [vmem:[%s546] sm:$0x1]
        %v2057 = vld [vmem:[%s549] sm:$0x1]
        %v2058 = vpack.c.bf16 %v1991, %v1990
        %v2059 = vpack.c.bf16 %v1993, %v1992
        %v2060 = vpack.c.bf16 %v1995, %v1994
        %v2061 = vpack.c.bf16 %v1997, %v1996
        %v2062 = vpack.c.bf16 %v1999, %v1998
        %v2063 = vpack.c.bf16 %v2001, %v2000
        %v2064 = vpack.c.bf16 %v2003, %v2002
        %v2065 = vpack.c.bf16 %v2005, %v2004
        %v2067 = vlaneseq
        %v2068 = vshrl.u32 %v2067, 7
        %v2069 = vsub.s32 0, %v2068
        %v2070 = vrot.slane %v2022, %v2069
        %v2071 = vlaneseq
        %v2072 = vshrl.u32 %v2071, 7
        %v2073 = vsub.s32 1, %v2072
        %v2074 = vrot.slane %v2022, %v2073
        %v2093 = vunpack.c.l.b16 %v2006
        %v2094 = vunpack.c.h.b16 %v2006
        %v2095 = vunpack.c.l.b16 %v2007
        %v2096 = vunpack.c.h.b16 %v2007
        %v2097 = vunpack.c.l.b16 %v2008
        %v2098 = vunpack.c.h.b16 %v2008
        %v2099 = vunpack.c.l.b16 %v2009
        %v2100 = vunpack.c.h.b16 %v2009
        %v2101 = vunpack.c.l.b16 %v2010
        %v2102 = vunpack.c.h.b16 %v2010
        %v2103 = vunpack.c.l.b16 %v2011
        %v2104 = vunpack.c.h.b16 %v2011
        %v2105 = vunpack.c.l.b16 %v2012
        %v2106 = vunpack.c.h.b16 %v2012
        %v2107 = vunpack.c.l.b16 %v2013
        %v2108 = vunpack.c.h.b16 %v2013
        %v2109 = vunpack.c.l.b16 %v2014
        %v2110 = vunpack.c.h.b16 %v2014
        %v2111 = vunpack.c.l.b16 %v2015
        %v2112 = vunpack.c.h.b16 %v2015
        %v2113 = vunpack.c.l.b16 %v2016
        %v2114 = vunpack.c.h.b16 %v2016
        %v2115 = vunpack.c.l.b16 %v2017
        %v2116 = vunpack.c.h.b16 %v2017
        %v2117 = vunpack.c.l.b16 %v2018
        %v2118 = vunpack.c.h.b16 %v2018
        %v2119 = vunpack.c.l.b16 %v2019
        %v2120 = vunpack.c.h.b16 %v2019
        %v2121 = vunpack.c.l.b16 %v2020
        %v2122 = vunpack.c.h.b16 %v2020
        %v2123 = vunpack.c.l.b16 %v2021
        %v2124 = vunpack.c.h.b16 %v2021
        %v2125 = vpack.c.b16 %v2095, %v2093
        %v2126 = vpack.c.b16 %v2096, %v2094
        %v2127 = vpack.c.b16 %v2099, %v2097
        %v2128 = vpack.c.b16 %v2100, %v2098
        %v2129 = vpack.c.b16 %v2103, %v2101
        %v2130 = vpack.c.b16 %v2104, %v2102
        %v2131 = vpack.c.b16 %v2107, %v2105
        %v2132 = vpack.c.b16 %v2108, %v2106
        %v2133 = vpack.c.b16 %v2111, %v2109
        %v2134 = vpack.c.b16 %v2112, %v2110
        %v2135 = vpack.c.b16 %v2115, %v2113
        %v2136 = vpack.c.b16 %v2116, %v2114
        %v2137 = vpack.c.b16 %v2119, %v2117
        %v2138 = vpack.c.b16 %v2120, %v2118
        %v2139 = vpack.c.b16 %v2123, %v2121
        %v2140 = vpack.c.b16 %v2124, %v2122
        %2157 = vmatprep.subr.bf16.mxu0 %v2140
        %2158 = vmatpush1.bf16.msra.mxu0 %v2139
        %2159 = vmatprep.subr.bf16.mxu0 %v2138
        %2160 = vmatpush1.bf16.msra.mxu0 %v2137
        %2161 = vmatprep.subr.bf16.mxu0 %v2136
        %2162 = vmatpush1.bf16.msra.mxu0 %v2135
        %2163 = vmatprep.subr.bf16.mxu0 %v2134
        %2164 = vmatpush1.bf16.msra.mxu0 %v2133
        %2165 = vmatprep.subr.bf16.mxu0 %v2132
        %2166 = vmatpush1.bf16.msra.mxu0 %v2131
        %2167 = vmatprep.subr.bf16.mxu0 %v2130
        %2168 = vmatpush1.bf16.msra.mxu0 %v2129
        %2169 = vmatprep.subr.bf16.mxu0 %v2128
        %2170 = vmatpush1.bf16.msra.mxu0 %v2127
        %2171 = vmatprep.subr.bf16.mxu0 %v2126
        %2172 = vmatpush1.bf16.msra.mxu0 %v2125
        %2173 = vmatprep.subr.bf16.mxu0 0
        %2174 = vmatpush2.bf16.msra.mxu0 0
        %2175 = vmatprep.subr.bf16.mxu0 0
        %2176 = vmatpush2.bf16.msra.mxu0 0
        %2177 = vmatprep.subr.bf16.mxu0 0
        %2178 = vmatpush2.bf16.msra.mxu0 0
        %2179 = vmatprep.subr.bf16.mxu0 0
        %2180 = vmatpush2.bf16.msra.mxu0 0
        %2181 = vmatprep.subr.bf16.mxu0 0
        %2182 = vmatpush2.bf16.msra.mxu0 0
        %2183 = vmatprep.subr.bf16.mxu0 0
        %2184 = vmatpush2.bf16.msra.mxu0 0
        %2185 = vmatprep.subr.bf16.mxu0 0
        %2186 = vmatpush2.bf16.msra.mxu0 0
        %2187 = vmatprep.subr.bf16.mxu0 0
        %2188 = vmatpush2.bf16.msra.mxu0 0
        %2189 = vmatprep.mubr.bf16.mxu0 0
        %2190 = vmatmul.mubr.bf16.gmra.mxu0 %v2058
        %v2191 = vpop.f32.mrf.mxu0
        %v2192 = vadd.f32 %v2070, %v2191
        %v2193 = vpop.f32.mrf.mxu0
        %v2194 = vadd.f32 %v2074, %v2193
        %v2195 = vpop.f32.mrf.mxu0
        %v2196 = vadd.f32 %v2070, %v2195
        %v2197 = vpop.f32.mrf.mxu0
        %v2198 = vadd.f32 %v2074, %v2197
        %2199 = vmatprep.mubr.bf16.mxu0 0
        %2200 = vmatmul.mubr.bf16.gmra.mxu0 %v2059
        %v2201 = vpop.f32.mrf.mxu0
        %v2202 = vadd.f32 %v2070, %v2201
        %v2203 = vpop.f32.mrf.mxu0
        %v2204 = vadd.f32 %v2074, %v2203
        %v2205 = vpop.f32.mrf.mxu0
        %v2206 = vadd.f32 %v2070, %v2205
        %v2207 = vpop.f32.mrf.mxu0
        %v2208 = vadd.f32 %v2074, %v2207
        %2209 = vmatprep.mubr.bf16.mxu0 0
        %2210 = vmatmul.mubr.bf16.gmra.mxu0 %v2060
        %v2211 = vpop.f32.mrf.mxu0
        %v2212 = vadd.f32 %v2070, %v2211
        %v2213 = vpop.f32.mrf.mxu0
        %v2214 = vadd.f32 %v2074, %v2213
        %v2215 = vpop.f32.mrf.mxu0
        %v2216 = vadd.f32 %v2070, %v2215
        %v2217 = vpop.f32.mrf.mxu0
        %v2218 = vadd.f32 %v2074, %v2217
        %2219 = vmatprep.mubr.bf16.mxu0 0
        %2220 = vmatmul.mubr.bf16.gmra.mxu0 %v2061
        %v2221 = vpop.f32.mrf.mxu0
        %v2222 = vadd.f32 %v2070, %v2221
        %v2223 = vpop.f32.mrf.mxu0
        %v2224 = vadd.f32 %v2074, %v2223
        %v2225 = vpop.f32.mrf.mxu0
        %v2226 = vadd.f32 %v2070, %v2225
        %v2227 = vpop.f32.mrf.mxu0
        %v2228 = vadd.f32 %v2074, %v2227
        %2229 = vmatprep.mubr.bf16.mxu0 0
        %2230 = vmatmul.mubr.bf16.gmra.mxu0 %v2062
        %v2231 = vpop.f32.mrf.mxu0
        %v2232 = vadd.f32 %v2070, %v2231
        %v2233 = vpop.f32.mrf.mxu0
        %v2234 = vadd.f32 %v2074, %v2233
        %v2235 = vpop.f32.mrf.mxu0
        %v2236 = vadd.f32 %v2070, %v2235
        %v2237 = vpop.f32.mrf.mxu0
        %v2238 = vadd.f32 %v2074, %v2237
        %2239 = vmatprep.mubr.bf16.mxu0 0
        %2240 = vmatmul.mubr.bf16.gmra.mxu0 %v2063
        %v2241 = vpop.f32.mrf.mxu0
        %v2242 = vadd.f32 %v2070, %v2241
        %v2243 = vpop.f32.mrf.mxu0
        %v2244 = vadd.f32 %v2074, %v2243
        %v2245 = vpop.f32.mrf.mxu0
        %v2246 = vadd.f32 %v2070, %v2245
        %v2247 = vpop.f32.mrf.mxu0
        %v2248 = vadd.f32 %v2074, %v2247
        %2249 = vmatprep.mubr.bf16.mxu0 0
        %2250 = vmatmul.mubr.bf16.gmra.mxu0 %v2064
        %v2251 = vpop.f32.mrf.mxu0
        %v2252 = vadd.f32 %v2070, %v2251
        %v2253 = vpop.f32.mrf.mxu0
        %v2254 = vadd.f32 %v2074, %v2253
        %v2255 = vpop.f32.mrf.mxu0
        %v2256 = vadd.f32 %v2070, %v2255
        %v2257 = vpop.f32.mrf.mxu0
        %v2258 = vadd.f32 %v2074, %v2257
        %2259 = vmatprep.mubr.bf16.mxu0 0
        %2260 = vmatmul.mubr.bf16.gmra.mxu0 %v2065
        %v2261 = vpop.f32.mrf.mxu0
        %v2262 = vadd.f32 %v2070, %v2261
        %v2263 = vpop.f32.mrf.mxu0
        %v2264 = vadd.f32 %v2074, %v2263
        %v2265 = vpop.f32.mrf.mxu0
        %v2266 = vadd.f32 %v2070, %v2265
        %v2267 = vpop.f32.mrf.mxu0
        %v2268 = vadd.f32 %v2074, %v2267
        %2269 = vdwg.mxu0
        %v2270 = vmax.f32 %v2192, 0.0
        %v2271 = vmax.f32 %v2194, 0.0
        %v2272 = vmax.f32 %v2196, 0.0
        %v2273 = vmax.f32 %v2198, 0.0
        %v2274 = vmax.f32 %v2202, 0.0
        %v2275 = vmax.f32 %v2204, 0.0
        %v2276 = vmax.f32 %v2206, 0.0
        %v2277 = vmax.f32 %v2208, 0.0
        %v2278 = vmax.f32 %v2212, 0.0
        %v2279 = vmax.f32 %v2214, 0.0
        %v2280 = vmax.f32 %v2216, 0.0
        %v2281 = vmax.f32 %v2218, 0.0
        %v2282 = vmax.f32 %v2222, 0.0
        %v2283 = vmax.f32 %v2224, 0.0
        %v2284 = vmax.f32 %v2226, 0.0
        %v2285 = vmax.f32 %v2228, 0.0
        %v2286 = vmax.f32 %v2232, 0.0
        %v2287 = vmax.f32 %v2234, 0.0
        %v2288 = vmax.f32 %v2236, 0.0
        %v2289 = vmax.f32 %v2238, 0.0
        %v2290 = vmax.f32 %v2242, 0.0
        %v2291 = vmax.f32 %v2244, 0.0
        %v2292 = vmax.f32 %v2246, 0.0
        %v2293 = vmax.f32 %v2248, 0.0
        %v2294 = vmax.f32 %v2252, 0.0
        %v2295 = vmax.f32 %v2254, 0.0
        %v2296 = vmax.f32 %v2256, 0.0
        %v2297 = vmax.f32 %v2258, 0.0
        %v2298 = vmax.f32 %v2262, 0.0
        %v2299 = vmax.f32 %v2264, 0.0
        %v2300 = vmax.f32 %v2266, 0.0
        %v2301 = vmax.f32 %v2268, 0.0
        %v2302 = vpack.c.bf16 %v2272, %v2270
        %v2303 = vpack.c.bf16 %v2273, %v2271
        %v2304 = vpack.c.bf16 %v2276, %v2274
        %v2305 = vpack.c.bf16 %v2277, %v2275
        %v2306 = vpack.c.bf16 %v2280, %v2278
        %v2307 = vpack.c.bf16 %v2281, %v2279
        %v2308 = vpack.c.bf16 %v2284, %v2282
        %v2309 = vpack.c.bf16 %v2285, %v2283
        %v2310 = vpack.c.bf16 %v2288, %v2286
        %v2311 = vpack.c.bf16 %v2289, %v2287
        %v2312 = vpack.c.bf16 %v2292, %v2290
        %v2313 = vpack.c.bf16 %v2293, %v2291
        %v2314 = vpack.c.bf16 %v2296, %v2294
        %v2315 = vpack.c.bf16 %v2297, %v2295
        %v2316 = vpack.c.bf16 %v2300, %v2298
        %v2317 = vpack.c.bf16 %v2301, %v2299
        %v2319 = vlaneseq
        %v2320 = vshrl.u32 %v2319, 7
        %v2321 = vsub.s32 0, %v2320
        %v2322 = vrot.slane %v2055, %v2321
        %v2356 = vunpack.c.l.b16 %v2023
        %v2357 = vunpack.c.l.b16 %v2024
        %v2358 = vunpack.c.l.b16 %v2025
        %v2359 = vunpack.c.l.b16 %v2026
        %v2360 = vunpack.c.l.b16 %v2027
        %v2361 = vunpack.c.l.b16 %v2028
        %v2362 = vunpack.c.l.b16 %v2029
        %v2363 = vunpack.c.l.b16 %v2030
        %v2364 = vunpack.c.l.b16 %v2031
        %v2365 = vunpack.c.l.b16 %v2032
        %v2366 = vunpack.c.l.b16 %v2033
        %v2367 = vunpack.c.l.b16 %v2034
        %v2368 = vunpack.c.l.b16 %v2035
        %v2369 = vunpack.c.l.b16 %v2036
        %v2370 = vunpack.c.l.b16 %v2037
        %v2371 = vunpack.c.l.b16 %v2038
        %v2372 = vunpack.c.l.b16 %v2039
        %v2373 = vunpack.c.l.b16 %v2040
        %v2374 = vunpack.c.l.b16 %v2041
        %v2375 = vunpack.c.l.b16 %v2042
        %v2376 = vunpack.c.l.b16 %v2043
        %v2377 = vunpack.c.l.b16 %v2044
        %v2378 = vunpack.c.l.b16 %v2045
        %v2379 = vunpack.c.l.b16 %v2046
        %v2380 = vunpack.c.l.b16 %v2047
        %v2381 = vunpack.c.l.b16 %v2048
        %v2382 = vunpack.c.l.b16 %v2049
        %v2383 = vunpack.c.l.b16 %v2050
        %v2384 = vunpack.c.l.b16 %v2051
        %v2385 = vunpack.c.l.b16 %v2052
        %v2386 = vunpack.c.l.b16 %v2053
        %v2387 = vunpack.c.l.b16 %v2054
        %v2388 = vpack.c.b16 %v2357, %v2356
        %v2389 = vpack.c.b16 %v2359, %v2358
        %v2390 = vpack.c.b16 %v2361, %v2360
        %v2391 = vpack.c.b16 %v2363, %v2362
        %v2392 = vpack.c.b16 %v2365, %v2364
        %v2393 = vpack.c.b16 %v2367, %v2366
        %v2394 = vpack.c.b16 %v2369, %v2368
        %v2395 = vpack.c.b16 %v2371, %v2370
        %v2396 = vpack.c.b16 %v2373, %v2372
        %v2397 = vpack.c.b16 %v2375, %v2374
        %v2398 = vpack.c.b16 %v2377, %v2376
        %v2399 = vpack.c.b16 %v2379, %v2378
        %v2400 = vpack.c.b16 %v2381, %v2380
        %v2401 = vpack.c.b16 %v2383, %v2382
        %v2402 = vpack.c.b16 %v2385, %v2384
        %v2403 = vpack.c.b16 %v2387, %v2386
        %2420 = vmatprep.subr.bf16.mxu0 0
        %2421 = vmatpush1.bf16.msra.mxu0 %v2395
        %2422 = vmatprep.subr.bf16.mxu0 0
        %2423 = vmatpush1.bf16.msra.mxu0 %v2394
        %2424 = vmatprep.subr.bf16.mxu0 0
        %2425 = vmatpush1.bf16.msra.mxu0 %v2393
        %2426 = vmatprep.subr.bf16.mxu0 0
        %2427 = vmatpush1.bf16.msra.mxu0 %v2392
        %2428 = vmatprep.subr.bf16.mxu0 0
        %2429 = vmatpush1.bf16.msra.mxu0 %v2391
        %2430 = vmatprep.subr.bf16.mxu0 0
        %2431 = vmatpush1.bf16.msra.mxu0 %v2390
        %2432 = vmatprep.subr.bf16.mxu0 0
        %2433 = vmatpush1.bf16.msra.mxu0 %v2389
        %2434 = vmatprep.subr.bf16.mxu0 0
        %2435 = vmatpush1.bf16.msra.mxu0 %v2388
        %2436 = vmatprep.subr.bf16.mxu0 0
        %2437 = vmatpush2.bf16.msra.mxu0 %v2403
        %2438 = vmatprep.subr.bf16.mxu0 0
        %2439 = vmatpush2.bf16.msra.mxu0 %v2402
        %2440 = vmatprep.subr.bf16.mxu0 0
        %2441 = vmatpush2.bf16.msra.mxu0 %v2401
        %2442 = vmatprep.subr.bf16.mxu0 0
        %2443 = vmatpush2.bf16.msra.mxu0 %v2400
        %2444 = vmatprep.subr.bf16.mxu0 0
        %2445 = vmatpush2.bf16.msra.mxu0 %v2399
        %2446 = vmatprep.subr.bf16.mxu0 0
        %2447 = vmatpush2.bf16.msra.mxu0 %v2398
        %2448 = vmatprep.subr.bf16.mxu0 0
        %2449 = vmatpush2.bf16.msra.mxu0 %v2397
        %2450 = vmatprep.subr.bf16.mxu0 0
        %2451 = vmatpush2.bf16.msra.mxu0 %v2396
        %2452 = vmatprep.mubr.bf16.mxu0 %v2303
        %2453 = vmatmul.mubr.bf16.gmra.mxu0 %v2302
        %v2454 = vpop.f32.mrf.mxu0
        %v2455 = vadd.f32 %v2322, %v2454
        %v2456 = vpop.f32.mrf.mxu0
        %v2457 = vpop.f32.mrf.mxu0
        %v2458 = vadd.f32 %v2322, %v2457
        %v2459 = vpop.f32.mrf.mxu0
        %2460 = vmatprep.mubr.bf16.mxu0 %v2305
        %2461 = vmatmul.mubr.bf16.gmra.mxu0 %v2304
        %v2462 = vpop.f32.mrf.mxu0
        %v2463 = vadd.f32 %v2322, %v2462
        %v2464 = vpop.f32.mrf.mxu0
        %v2465 = vpop.f32.mrf.mxu0
        %v2466 = vadd.f32 %v2322, %v2465
        %v2467 = vpop.f32.mrf.mxu0
        %2468 = vmatprep.mubr.bf16.mxu0 %v2307
        %2469 = vmatmul.mubr.bf16.gmra.mxu0 %v2306
        %v2470 = vpop.f32.mrf.mxu0
        %v2471 = vadd.f32 %v2322, %v2470
        %v2472 = vpop.f32.mrf.mxu0
        %v2473 = vpop.f32.mrf.mxu0
        %v2474 = vadd.f32 %v2322, %v2473
        %v2475 = vpop.f32.mrf.mxu0
        %2476 = vmatprep.mubr.bf16.mxu0 %v2309
        %2477 = vmatmul.mubr.bf16.gmra.mxu0 %v2308
        %v2478 = vpop.f32.mrf.mxu0
        %v2479 = vadd.f32 %v2322, %v2478
        %v2480 = vpop.f32.mrf.mxu0
        %v2481 = vpop.f32.mrf.mxu0
        %v2482 = vadd.f32 %v2322, %v2481
        %v2483 = vpop.f32.mrf.mxu0
        %2484 = vmatprep.mubr.bf16.mxu0 %v2311
        %2485 = vmatmul.mubr.bf16.gmra.mxu0 %v2310
        %v2486 = vpop.f32.mrf.mxu0
        %v2487 = vadd.f32 %v2322, %v2486
        %v2488 = vpop.f32.mrf.mxu0
        %v2489 = vpop.f32.mrf.mxu0
        %v2490 = vadd.f32 %v2322, %v2489
        %v2491 = vpop.f32.mrf.mxu0
        %2492 = vmatprep.mubr.bf16.mxu0 %v2313
        %2493 = vmatmul.mubr.bf16.gmra.mxu0 %v2312
        %v2494 = vpop.f32.mrf.mxu0
        %v2495 = vadd.f32 %v2322, %v2494
        %v2496 = vpop.f32.mrf.mxu0
        %v2497 = vpop.f32.mrf.mxu0
        %v2498 = vadd.f32 %v2322, %v2497
        %v2499 = vpop.f32.mrf.mxu0
        %2500 = vmatprep.mubr.bf16.mxu0 %v2315
        %2501 = vmatmul.mubr.bf16.gmra.mxu0 %v2314
        %v2502 = vpop.f32.mrf.mxu0
        %v2503 = vadd.f32 %v2322, %v2502
        %v2504 = vpop.f32.mrf.mxu0
        %v2505 = vpop.f32.mrf.mxu0
        %v2506 = vadd.f32 %v2322, %v2505
        %v2507 = vpop.f32.mrf.mxu0
        %2508 = vmatprep.mubr.bf16.mxu0 %v2317
        %2509 = vmatmul.mubr.bf16.gmra.mxu0 %v2316
        %v2510 = vpop.f32.mrf.mxu0
        %v2511 = vadd.f32 %v2322, %v2510
        %v2512 = vpop.f32.mrf.mxu0
        %v2513 = vpop.f32.mrf.mxu0
        %v2514 = vadd.f32 %v2322, %v2513
        %v2515 = vpop.f32.mrf.mxu0
        %2516 = vdwg.mxu0
        %v2517 = vadd.f32 %v2455, %v2458
        %v2518 = vadd.f32 %v2517, %v2463
        %v2519 = vadd.f32 %v2518, %v2466
        %v2520 = vadd.f32 %v2519, %v2471
        %v2521 = vadd.f32 %v2520, %v2474
        %v2522 = vadd.f32 %v2521, %v2479
        %v2523 = vadd.f32 %v2522, %v2482
        %v2524 = vadd.f32 %v2523, %v2487
        %v2525 = vadd.f32 %v2524, %v2490
        %v2526 = vadd.f32 %v2525, %v2495
        %v2527 = vadd.f32 %v2526, %v2498
        %v2528 = vadd.f32 %v2527, %v2503
        %v2529 = vadd.f32 %v2528, %v2506
        %v2530 = vadd.f32 %v2529, %v2511
        %v2531 = vadd.f32 %v2530, %v2514
        %v2532 = vrot.slane %v2531, 4
        %v2533 = vadd.f32 %v2531, %v2532
        %v2534 = vrot.slane %v2533, 2
        %v2535 = vadd.f32 %v2533, %v2534
        %v2536 = vrot.slane %v2535, 1
        %v2537 = vadd.f32 %v2535, %v2536
        %v2538 = vmul.f32 %v2537, 0.0078125
        %v2539 = vsub.f32 %v2455, %v2538
        %v2540 = vsub.f32 %v2458, %v2538
        %v2541 = vsub.f32 %v2463, %v2538
        %v2542 = vsub.f32 %v2466, %v2538
        %v2543 = vsub.f32 %v2471, %v2538
        %v2544 = vsub.f32 %v2474, %v2538
        %v2545 = vsub.f32 %v2479, %v2538
        %v2546 = vsub.f32 %v2482, %v2538
        %v2547 = vsub.f32 %v2487, %v2538
        %v2548 = vsub.f32 %v2490, %v2538
        %v2549 = vsub.f32 %v2495, %v2538
        %v2550 = vsub.f32 %v2498, %v2538
        %v2551 = vsub.f32 %v2503, %v2538
        %v2552 = vsub.f32 %v2506, %v2538
        %v2553 = vsub.f32 %v2511, %v2538
        %v2554 = vsub.f32 %v2514, %v2538
        %v2555 = vmul.f32 %v2539, %v2539
        %v2556 = vmul.f32 %v2540, %v2540
        %v2557 = vmul.f32 %v2541, %v2541
        %v2558 = vmul.f32 %v2542, %v2542
        %v2559 = vmul.f32 %v2543, %v2543
        %v2560 = vmul.f32 %v2544, %v2544
        %v2561 = vmul.f32 %v2545, %v2545
        %v2562 = vmul.f32 %v2546, %v2546
        %v2563 = vmul.f32 %v2547, %v2547
        %v2564 = vmul.f32 %v2548, %v2548
        %v2565 = vmul.f32 %v2549, %v2549
        %v2566 = vmul.f32 %v2550, %v2550
        %v2567 = vmul.f32 %v2551, %v2551
        %v2568 = vmul.f32 %v2552, %v2552
        %v2569 = vmul.f32 %v2553, %v2553
        %v2570 = vmul.f32 %v2554, %v2554
        %v2571 = vadd.f32 %v2555, %v2556
        %v2572 = vadd.f32 %v2571, %v2557
        %v2573 = vadd.f32 %v2572, %v2558
        %v2574 = vadd.f32 %v2573, %v2559
        %v2575 = vadd.f32 %v2574, %v2560
        %v2576 = vadd.f32 %v2575, %v2561
        %v2577 = vadd.f32 %v2576, %v2562
        %v2578 = vadd.f32 %v2577, %v2563
        %v2579 = vadd.f32 %v2578, %v2564
        %v2580 = vadd.f32 %v2579, %v2565
        %v2581 = vadd.f32 %v2580, %v2566
        %v2582 = vadd.f32 %v2581, %v2567
        %v2583 = vadd.f32 %v2582, %v2568
        %v2584 = vadd.f32 %v2583, %v2569
        %v2585 = vadd.f32 %v2584, %v2570
        %v2586 = vrot.slane %v2585, 4
        %v2587 = vadd.f32 %v2585, %v2586
        %v2588 = vrot.slane %v2587, 2
        %v2589 = vadd.f32 %v2587, %v2588
        %v2590 = vrot.slane %v2589, 1
        %v2591 = vadd.f32 %v2589, %v2590
        %v2592 = vmul.f32 %v2591, 0.0078125
        %v2593 = vadd.f32 %v2592, 1e-05
        %v2594 = vrsqrt.pop %v2593
        %v2595 = vmul.f32 %v2056, %v2594
        %v2597 = vlaneseq
        %v2598 = vshrl.u32 %v2597, 7
        %v2599 = vsub.s32 0, %v2598
        %v2600 = vrot.slane %v2595, %v2599
        %v2602 = vmul.f32 %v2539, %v2600
        %v2603 = vmul.f32 %v2540, %v2600
        %v2604 = vmul.f32 %v2541, %v2600
        %v2605 = vmul.f32 %v2542, %v2600
        %v2606 = vmul.f32 %v2543, %v2600
        %v2607 = vmul.f32 %v2544, %v2600
        %v2608 = vmul.f32 %v2545, %v2600
        %v2609 = vmul.f32 %v2546, %v2600
        %v2610 = vmul.f32 %v2547, %v2600
        %v2611 = vmul.f32 %v2548, %v2600
        %v2612 = vmul.f32 %v2549, %v2600
        %v2613 = vmul.f32 %v2550, %v2600
        %v2614 = vmul.f32 %v2551, %v2600
        %v2615 = vmul.f32 %v2552, %v2600
        %v2616 = vmul.f32 %v2553, %v2600
        %v2617 = vmul.f32 %v2554, %v2600
        %v2619 = vlaneseq
        %v2620 = vshrl.u32 %v2619, 7
        %v2621 = vsub.s32 0, %v2620
        %v2622 = vrot.slane %v2057, %v2621
        %v2624 = vadd.f32 %v2602, %v2622
        %v2625 = vadd.f32 %v2603, %v2622
        %v2626 = vadd.f32 %v2604, %v2622
        %v2627 = vadd.f32 %v2605, %v2622
        %v2628 = vadd.f32 %v2606, %v2622
        %v2629 = vadd.f32 %v2607, %v2622
        %v2630 = vadd.f32 %v2608, %v2622
        %v2631 = vadd.f32 %v2609, %v2622
        %v2632 = vadd.f32 %v2610, %v2622
        %v2633 = vadd.f32 %v2611, %v2622
        %v2634 = vadd.f32 %v2612, %v2622
        %v2635 = vadd.f32 %v2613, %v2622
        %v2636 = vadd.f32 %v2614, %v2622
        %v2637 = vadd.f32 %v2615, %v2622
        %v2638 = vadd.f32 %v2616, %v2622
        %v2639 = vadd.f32 %v2617, %v2622
        %v2640 = vmax.f32 %v2624, 0.0
        %v2641 = vmax.f32 %v2625, 0.0
        %v2642 = vmax.f32 %v2626, 0.0
        %v2643 = vmax.f32 %v2627, 0.0
        %v2644 = vmax.f32 %v2628, 0.0
        %v2645 = vmax.f32 %v2629, 0.0
        %v2646 = vmax.f32 %v2630, 0.0
        %v2647 = vmax.f32 %v2631, 0.0
        %v2648 = vmax.f32 %v2632, 0.0
        %v2649 = vmax.f32 %v2633, 0.0
        %v2650 = vmax.f32 %v2634, 0.0
        %v2651 = vmax.f32 %v2635, 0.0
        %v2652 = vmax.f32 %v2636, 0.0
        %v2653 = vmax.f32 %v2637, 0.0
        %v2654 = vmax.f32 %v2638, 0.0
        %v2655 = vmax.f32 %v2639, 0.0
        %v2656 = vadd.f32 %v2640, %v587
        %v2657 = vadd.f32 %v2641, %v588
        %v2658 = vadd.f32 %v2642, %v589
        %v2659 = vadd.f32 %v2643, %v590
        %v2660 = vadd.f32 %v2644, %v591
        %v2661 = vadd.f32 %v2645, %v592
        %v2662 = vadd.f32 %v2646, %v593
        %v2663 = vadd.f32 %v2647, %v594
        %v2664 = vadd.f32 %v2648, %v595
        %v2665 = vadd.f32 %v2649, %v596
        %v2666 = vadd.f32 %v2650, %v597
        %v2667 = vadd.f32 %v2651, %v598
        %v2668 = vadd.f32 %v2652, %v599
        %v2669 = vadd.f32 %v2653, %v600
        %v2670 = vadd.f32 %v2654, %v601
        %v2671 = vadd.f32 %v2655, %v602
        %2672 = vst [vmem:[#allocation10] sm:$0xff] %v2656
        %2673 = vst [vmem:[#allocation10 + $0x8] sm:$0xff] %v2657
        %2674 = vst [vmem:[#allocation10 + $0x10] sm:$0xff] %v2658
        %2675 = vst [vmem:[#allocation10 + $0x18] sm:$0xff] %v2659
        %2676 = vst [vmem:[#allocation10 + $0x20] sm:$0xff] %v2660
        %2677 = vst [vmem:[#allocation10 + $0x28] sm:$0xff] %v2661
        %2678 = vst [vmem:[#allocation10 + $0x30] sm:$0xff] %v2662
        %2679 = vst [vmem:[#allocation10 + $0x38] sm:$0xff] %v2663
        %2680 = vst [vmem:[#allocation10 + $0x40] sm:$0xff] %v2664
        %2681 = vst [vmem:[#allocation10 + $0x48] sm:$0xff] %v2665
        %2682 = vst [vmem:[#allocation10 + $0x50] sm:$0xff] %v2666
        %2683 = vst [vmem:[#allocation10 + $0x58] sm:$0xff] %v2667
        %2684 = vst [vmem:[#allocation10 + $0x60] sm:$0xff] %v2668
        %2685 = vst [vmem:[#allocation10 + $0x68] sm:$0xff] %v2669
        %2686 = vst [vmem:[#allocation10 + $0x70] sm:$0xff] %v2670
        %2687 = vst [vmem:[#allocation10 + $0x78] sm:$0xff] %v2671
        // Predicated region
        $region89: #{tpu_custom_call.1} parent=63 // pred_check
          %p2688 = pneg %p304
        $region90: #{tpu_custom_call.1} parent=63 // pred_check_branch
          %2690 = sbr.rel (%p2688) target = $region92
        $region91: #{tpu_custom_call.1} parent=63 // pred_region
          %s2692 = ssub.s32 2048, 2048
          %2693 = vsyncadd [#allocation4], %s2692
          %s2694 = sshll.u32 [#allocation10], 4
          %s2695 = int_to_ptr.vmem [resolvable:$true] %s2694
          %2700 = dma.vmem_to_hbm [thread:$0]  %s2695, 2048, %s11, [#allocation4], 128, 128, 8
        $region92: #{tpu_custom_call.1} parent=63 // pred_fallthru
          _
        // Predicated region
        $region93: #{tpu_custom_call.1} parent=63 // pred_check
          %p2701 = pneg %p304
        $region94: #{tpu_custom_call.1} parent=63 // pred_check_branch
          %2703 = sbr.rel (%p2701) target = $region96
        $region95: #{tpu_custom_call.1} parent=63 // pred_region
          %2704 = dma.done [#allocation4], 2048
        $region96: #{tpu_custom_call.1} parent=63 // pred_fallthru
          _
      $region64: #{tpu_custom_call.1} parent=5 // pred_fallthru
        _
      %p2705 = scmp.le.s32.totalorder 2, %s20
      // Predicated region
      $region97: #{tpu_custom_call.1} parent=5 // pred_check
        %p2706 = pneg %p2705
      $region98: #{tpu_custom_call.1} parent=5 // pred_check_branch
        %2708 = sbr.rel (%p2706) target = $region100
      $region99: #{tpu_custom_call.1} parent=5 // pred_region
        %s2709 = ssub.s32 %s20, 2
      $region100: #{tpu_custom_call.1} parent=5 // pred_fallthru
        _
    $region6: #{tpu_custom_call.1} parent=1 // loop_footer
      %s24 = sadd.s32 1, %s20
    $region7: #{tpu_custom_call.1} parent=1 // loop_footer_branch
      %19 = sbr.rel target = $region3
    $region8: #{tpu_custom_call.1} parent=1 // loop_exit
      _
    %2710 = vsyncpa [#allocation3], 1
    %s2711 = scalar_lea.sflag [#allocation3], 1
    %2712 = vsyncpa %s2711, 1
    %2713 = vsyncpa [#allocation6], 1
    %2714 = vsyncpa [#allocation4], 1
    %s2715 = scalar_lea.sflag [#allocation4], 1
    %2716 = vsyncpa %s2715, 1

</llo_original>
